<compile_context>
chip_gen: v6e
topology: v6e:2x2x1
jax: 0.10.0
libtpu: 0.0.40
codegen_flags: <defaults>
</compile_context>

<pallas_src>
import functools

import jax
import jax.numpy as jnp
from jax.experimental import pallas as pl
from jax.experimental.pallas import tpu as pltpu


def _round_up(n, m):
    return ((n + m - 1) // m) * m


def _choose_batch_tile(batch, *, max_tile=1024, align=16):
    """Pick an M tile: 16-aligned (bf16 sublane pack), <= max_tile (v7x VMEM),
    and an even number of grid steps when possible so both v7x TensorCores get
    balanced work with minimal batch-pad waste (e.g. B=300 -> 2 x 160)."""
    if batch <= align:
        return align
    n_steps = pl.cdiv(batch, max_tile)
    if batch > 2 * align:
        n_steps = max(n_steps, 2)
    if n_steps > 1 and n_steps % 2 == 1:
        n_steps += 1
    return min(max_tile, _round_up(pl.cdiv(batch, n_steps), align))


# ----------------------------------------------------------------------------
# Kernel: the entire encoder+decoder MLP for one (batch_tile, D_in) tile.
# ----------------------------------------------------------------------------
def _autoencoder_kernel(
    x_ref,
    w1_ref, b1_ref,
    w2_ref, b2_ref,
    w34_ref, b34_ref,
    w5_ref, b5_ref,
    w6_ref, b6_ref,
    out_ref,
):
    def dense(h_bf16, w_ref, b_ref):
        # bf16 x bf16 MXU matmul with f32 accumulation, f32 bias add.
        return (
            jnp.dot(h_bf16, w_ref[...], preferred_element_type=jnp.float32)
            + b_ref[...]
        )

    def relu_bf16(y_f32):
        # ReLU in f32, then a single cast; activations travel between layers
        # as bf16 to halve VMEM spill / load-store traffic.
        return jnp.maximum(y_f32, 0.0).astype(jnp.bfloat16)

    h = x_ref[...]                            # bf16 (batch_tile, D_in)

    h = relu_bf16(dense(h, w1_ref, b1_ref))   # D_in -> 512, ReLU
    h = relu_bf16(dense(h, w2_ref, b2_ref))   # 512  -> 128, ReLU
    h = relu_bf16(dense(h, w34_ref, b34_ref)) # 128  -> 128 (enc[2]+dec[0] fused), ReLU
    h = relu_bf16(dense(h, w5_ref, b5_ref))   # 128  -> 512, ReLU
    y = dense(h, w6_ref, b6_ref)              # 512  -> D_in, f32 logits

    # sigmoid(y) = 1 / (1 + exp(-y)): exp on the EUP, reciprocal via the approx
    # EUP op (separate bundle slot), bf16 lane-dense store (D_in = 1024 lanes).
    out_ref[...] = pl.reciprocal(1.0 + jnp.exp(-y), approx=True).astype(out_ref.dtype)


# ----------------------------------------------------------------------------
# One-time weight prep:
#   * fold layers 3 and 4 (Linear(128,64) then Linear(64,128), no nonlinearity
#     between them) into a single 128->128 dense, done in f32;
#   * cast weights to bf16 (MXU inputs), keep biases in f32.
# ----------------------------------------------------------------------------
def prepare_params(params):
    (w1, b1), (w2, b2), (w3, b3), (w4, b4), (w5, b5), (w6, b6) = params
    w34 = w3 @ w4                 # (128, 128), folded in f32
    b34 = b3 @ w4 + b4            # (1, 128)

    flat = []
    for w, b in ((w1, b1), (w2, b2), (w34, b34), (w5, b5), (w6, b6)):
        flat.append(w.astype(jnp.bfloat16))
        flat.append(b.astype(jnp.float32))
    return tuple(flat)


# ----------------------------------------------------------------------------
# Wrapper: bf16 activations in/out, ragged batch grid (no host-side pad/slice),
# all weights VMEM-resident for the whole grid, batch axis "parallel".
# ----------------------------------------------------------------------------
@functools.partial(jax.jit, static_argnames=("batch_tile",))
def autoencoder_forward(x, prepped, *, batch_tile=None):
    B, D_in = x.shape
    if x.dtype != jnp.bfloat16:
        # Kernel consumes bf16 anyway; callers should hand over bf16 to avoid
        # this extra XLA cast pass over HBM.
        x = x.astype(jnp.bfloat16)

    if batch_tile is None:
        batch_tile = _choose_batch_tile(B)
    assert batch_tile % 16 == 0, "batch_tile must be a multiple of 16 (bf16 sublane tile)"

    # Ragged last block: Pallas masks the out-of-bounds rows on output writeback,
    # so no jnp.pad on input and no out[:B] slice afterwards.
    grid = (pl.cdiv(B, batch_tile),)

    x_spec = pl.BlockSpec((batch_tile, D_in), lambda i: (i, 0))
    out_spec = pl.BlockSpec((batch_tile, D_in), lambda i: (i, 0))
    # Whole-array, VMEM-resident weights/biases: not pipelined, no double buffer.
    weight_specs = [pl.BlockSpec(memory_space=pltpu.MemorySpace.VMEM)] * len(prepped)

    weight_bytes = sum(int(p.size) * p.dtype.itemsize for p in prepped)
    flops = 2 * B * (
        D_in * 512 + 512 * 128 + 128 * 128 + 128 * 512 + 512 * D_in
    )
    cost = pl.CostEstimate(
        flops=flops,
        transcendentals=2 * B * D_in,                     # exp + approx reciprocal
        bytes_accessed=2 * B * D_in * 2 + weight_bytes,   # bf16 in + bf16 out
    )

    out = pl.pallas_call(
        _autoencoder_kernel,
        out_shape=jax.ShapeDtypeStruct((B, D_in), jnp.bfloat16),
        grid_spec=pltpu.PrefetchScalarGridSpec(
            num_scalar_prefetch=0,
            grid=grid,
            in_specs=[x_spec] + weight_specs,
            out_specs=out_spec,
        ),
        compiler_params=pltpu.CompilerParams(
            dimension_semantics=("parallel",),
            # Raised above v5e's 16 MiB default; well under v7x's 64 MiB physical.
            vmem_limit_bytes=48 * 1024 * 1024,
        ),
        cost_estimate=cost,
    )(x, *prepped)

    return out


# ----------------------------------------------------------------------------
# Deterministic parameter init (PyTorch-style uniform +-1/sqrt(fan_in)).
# Weights stored as (in_features, out_features); biases as (1, out_features).
# ----------------------------------------------------------------------------
def init_params(key, input_dim):
    dims = [(input_dim, 512), (512, 128), (128, 64),
            (64, 128), (128, 512), (512, input_dim)]
    params = []
    for fan_in, fan_out in dims:
        key, kw, kb = jax.random.split(key, 3)
        bound = 1.0 / jnp.sqrt(fan_in)
        w = jax.random.uniform(kw, (fan_in, fan_out), jnp.float32, -bound, bound)
        b = jax.random.uniform(kb, (1, fan_out), jnp.float32, -bound, bound)
        params.append((w, b))
    return params


# Pure-JAX f32 reference (unfused, unpadded) for correctness checking.
def reference_forward(x, params):
    (w1, b1), (w2, b2), (w3, b3), (w4, b4), (w5, b5), (w6, b6) = params
    h = jax.nn.relu(x @ w1 + b1)
    h = jax.nn.relu(h @ w2 + b2)
    z = h @ w3 + b3
    h = jax.nn.relu(z @ w4 + b4)
    h = jax.nn.relu(h @ w5 + b5)
    return jax.nn.sigmoid(h @ w6 + b6)


if __name__ == "__main__":
    # Module constructed with input_shape = (height, width, channels).
    height, width, channels = 16, 16, 4
    input_dim = height * width * channels  # 1024
    # Small batch that is not a multiple of the chosen tile: exercises the
    # auto tile choice (32), a 2-step parallel grid, and the ragged last block.
    batch = 37

    key = jax.random.PRNGKey(0)
    key, kx = jax.random.split(key)
    # Forward takes pre-flattened frames: (batch, H*W*C), values in [0, 1].
    x = jax.random.uniform(kx, (batch, input_dim), jnp.float32)
    x_bf16 = x.astype(jnp.bfloat16)  # HBM-facing activations live in bf16

    params = init_params(key, input_dim)
    prepped = prepare_params(params)

    out = autoencoder_forward(x_bf16, prepped)
    out = jax.block_until_ready(out)

    ref = reference_forward(x_bf16.astype(jnp.float32), params)
    assert out.shape == (batch, input_dim)
    assert out.dtype == jnp.bfloat16
    # bf16 MXU matmuls (f32 accumulation), fused layer-3/4, bf16 output store
    # vs. a pure-f32 unfused reference.
    max_err = jnp.max(jnp.abs(out.astype(jnp.float32) - ref))
    assert max_err < 3e-2, f"mismatch vs reference: max abs err {max_err}"

    print("KERNEL_OK")
</pallas_src>

<mosaic_0001>
module attributes {stable_mosaic.version = 11 : i64} {
  func.func @_autoencoder_kernel(%arg0: i32, %arg1: memref<32x1024xbf16, #tpu.memory_space<vmem>>, %arg2: memref<1024x512xbf16, #tpu.memory_space<vmem>>, %arg3: memref<1x512xf32, #tpu.memory_space<vmem>>, %arg4: memref<512x128xbf16, #tpu.memory_space<vmem>>, %arg5: memref<1x128xf32, #tpu.memory_space<vmem>>, %arg6: memref<128x128xbf16, #tpu.memory_space<vmem>>, %arg7: memref<1x128xf32, #tpu.memory_space<vmem>>, %arg8: memref<128x512xbf16, #tpu.memory_space<vmem>>, %arg9: memref<1x512xf32, #tpu.memory_space<vmem>>, %arg10: memref<512x1024xbf16, #tpu.memory_space<vmem>>, %arg11: memref<1x1024xf32, #tpu.memory_space<vmem>>, %arg12: memref<32x1024xbf16, #tpu.memory_space<vmem>>) attributes {dimension_semantics = [#tpu.dimension_semantics<parallel>], iteration_bounds = array<i64: 2>, scalar_prefetch = 0 : i64, scratch_operands = 0 : i64, tpu.core_type = #tpu.core_type<tc>, window_params = [{transform_indices = @transform_0, window_bounds = array<i64: 32, 1024>}, {pipeline_mode = #tpu.pipeline_mode<synchronous>, transform_indices = @transform_1, window_bounds = array<i64: 1024, 512>}, {pipeline_mode = #tpu.pipeline_mode<synchronous>, transform_indices = @transform_2, window_bounds = array<i64: 1, 512>}, {pipeline_mode = #tpu.pipeline_mode<synchronous>, transform_indices = @transform_3, window_bounds = array<i64: 512, 128>}, {pipeline_mode = #tpu.pipeline_mode<synchronous>, transform_indices = @transform_4, window_bounds = array<i64: 1, 128>}, {pipeline_mode = #tpu.pipeline_mode<synchronous>, transform_indices = @transform_5, window_bounds = array<i64: 128, 128>}, {pipeline_mode = #tpu.pipeline_mode<synchronous>, transform_indices = @transform_6, window_bounds = array<i64: 1, 128>}, {pipeline_mode = #tpu.pipeline_mode<synchronous>, transform_indices = @transform_7, window_bounds = array<i64: 128, 512>}, {pipeline_mode = #tpu.pipeline_mode<synchronous>, transform_indices = @transform_8, window_bounds = array<i64: 1, 512>}, {pipeline_mode = #tpu.pipeline_mode<synchronous>, transform_indices = @transform_9, window_bounds = array<i64: 512, 1024>}, {pipeline_mode = #tpu.pipeline_mode<synchronous>, transform_indices = @transform_10, window_bounds = array<i64: 1, 1024>}, {transform_indices = @transform_11, window_bounds = array<i64: 32, 1024>}]} {
    %c0 = arith.constant 0 : index
    %c0_0 = arith.constant 0 : index
    %0 = vector.load %arg1[%c0, %c0_0] : memref<32x1024xbf16, #tpu.memory_space<vmem>>, vector<32x1024xbf16>
    %c0_1 = arith.constant 0 : index
    %c0_2 = arith.constant 0 : index
    %1 = vector.load %arg2[%c0_1, %c0_2] : memref<1024x512xbf16, #tpu.memory_space<vmem>>, vector<1024x512xbf16>
    %cst = arith.constant dense<0.000000e+00> : vector<32x512xf32>
    %2 = tpu.matmul %0, %1, %cst {dimension_numbers = #tpu.dot_dimension_numbers<[1], [0], [0], [1], [0, 0, 1, 1], [], []>} : vector<32x1024xbf16>, vector<1024x512xbf16>, vector<32x512xf32> -> vector<32x512xf32>
    %c0_3 = arith.constant 0 : index
    %c0_4 = arith.constant 0 : index
    %3 = vector.load %arg3[%c0_3, %c0_4] : memref<1x512xf32, #tpu.memory_space<vmem>>, vector<1x512xf32>
    %4 = vector.broadcast %3 : vector<1x512xf32> to vector<32x512xf32>
    %5 = arith.addf %2, %4 : vector<32x512xf32>
    %cst_5 = arith.constant 0.000000e+00 : f32
    %6 = vector.broadcast %cst_5 : f32 to vector<32x512xf32>
    %7 = arith.maximumf %5, %6 : vector<32x512xf32>
    %8 = arith.truncf %7 : vector<32x512xf32> to vector<32x512xbf16>
    %c0_6 = arith.constant 0 : index
    %c0_7 = arith.constant 0 : index
    %9 = vector.load %arg4[%c0_6, %c0_7] : memref<512x128xbf16, #tpu.memory_space<vmem>>, vector<512x128xbf16>
    %cst_8 = arith.constant dense<0.000000e+00> : vector<32x128xf32>
    %10 = tpu.matmul %8, %9, %cst_8 {dimension_numbers = #tpu.dot_dimension_numbers<[1], [0], [0], [1], [0, 0, 1, 1], [], []>} : vector<32x512xbf16>, vector<512x128xbf16>, vector<32x128xf32> -> vector<32x128xf32>
    %c0_9 = arith.constant 0 : index
    %c0_10 = arith.constant 0 : index
    %11 = vector.load %arg5[%c0_9, %c0_10] : memref<1x128xf32, #tpu.memory_space<vmem>>, vector<1x128xf32>
    %12 = vector.broadcast %11 : vector<1x128xf32> to vector<32x128xf32>
    %13 = arith.addf %10, %12 : vector<32x128xf32>
    %cst_11 = arith.constant 0.000000e+00 : f32
    %14 = vector.broadcast %cst_11 : f32 to vector<32x128xf32>
    %15 = arith.maximumf %13, %14 : vector<32x128xf32>
    %16 = arith.truncf %15 : vector<32x128xf32> to vector<32x128xbf16>
    %c0_12 = arith.constant 0 : index
    %c0_13 = arith.constant 0 : index
    %17 = vector.load %arg6[%c0_12, %c0_13] : memref<128x128xbf16, #tpu.memory_space<vmem>>, vector<128x128xbf16>
    %cst_14 = arith.constant dense<0.000000e+00> : vector<32x128xf32>
    %18 = tpu.matmul %16, %17, %cst_14 {dimension_numbers = #tpu.dot_dimension_numbers<[1], [0], [0], [1], [0, 0, 1, 1], [], []>} : vector<32x128xbf16>, vector<128x128xbf16>, vector<32x128xf32> -> vector<32x128xf32>
    %c0_15 = arith.constant 0 : index
    %c0_16 = arith.constant 0 : index
    %19 = vector.load %arg7[%c0_15, %c0_16] : memref<1x128xf32, #tpu.memory_space<vmem>>, vector<1x128xf32>
    %20 = vector.broadcast %19 : vector<1x128xf32> to vector<32x128xf32>
    %21 = arith.addf %18, %20 : vector<32x128xf32>
    %cst_17 = arith.constant 0.000000e+00 : f32
    %22 = vector.broadcast %cst_17 : f32 to vector<32x128xf32>
    %23 = arith.maximumf %21, %22 : vector<32x128xf32>
    %24 = arith.truncf %23 : vector<32x128xf32> to vector<32x128xbf16>
    %c0_18 = arith.constant 0 : index
    %c0_19 = arith.constant 0 : index
    %25 = vector.load %arg8[%c0_18, %c0_19] : memref<128x512xbf16, #tpu.memory_space<vmem>>, vector<128x512xbf16>
    %cst_20 = arith.constant dense<0.000000e+00> : vector<32x512xf32>
    %26 = tpu.matmul %24, %25, %cst_20 {dimension_numbers = #tpu.dot_dimension_numbers<[1], [0], [0], [1], [0, 0, 1, 1], [], []>} : vector<32x128xbf16>, vector<128x512xbf16>, vector<32x512xf32> -> vector<32x512xf32>
    %c0_21 = arith.constant 0 : index
    %c0_22 = arith.constant 0 : index
    %27 = vector.load %arg9[%c0_21, %c0_22] : memref<1x512xf32, #tpu.memory_space<vmem>>, vector<1x512xf32>
    %28 = vector.broadcast %27 : vector<1x512xf32> to vector<32x512xf32>
    %29 = arith.addf %26, %28 : vector<32x512xf32>
    %cst_23 = arith.constant 0.000000e+00 : f32
    %30 = vector.broadcast %cst_23 : f32 to vector<32x512xf32>
    %31 = arith.maximumf %29, %30 : vector<32x512xf32>
    %32 = arith.truncf %31 : vector<32x512xf32> to vector<32x512xbf16>
    %c0_24 = arith.constant 0 : index
    %c0_25 = arith.constant 0 : index
    %33 = vector.load %arg10[%c0_24, %c0_25] : memref<512x1024xbf16, #tpu.memory_space<vmem>>, vector<512x1024xbf16>
    %cst_26 = arith.constant dense<0.000000e+00> : vector<32x1024xf32>
    %34 = tpu.matmul %32, %33, %cst_26 {dimension_numbers = #tpu.dot_dimension_numbers<[1], [0], [0], [1], [0, 0, 1, 1], [], []>} : vector<32x512xbf16>, vector<512x1024xbf16>, vector<32x1024xf32> -> vector<32x1024xf32>
    %c0_27 = arith.constant 0 : index
    %c0_28 = arith.constant 0 : index
    %35 = vector.load %arg11[%c0_27, %c0_28] : memref<1x1024xf32, #tpu.memory_space<vmem>>, vector<1x1024xf32>
    %36 = vector.broadcast %35 : vector<1x1024xf32> to vector<32x1024xf32>
    %37 = arith.addf %34, %36 : vector<32x1024xf32>
    %cst_29 = arith.constant 0.000000e+00 : f32
    %38 = vector.broadcast %cst_29 : f32 to vector<32x1024xf32>
    %39 = arith.subf %38, %37 : vector<32x1024xf32>
    %40 = math.exp %39 : vector<32x1024xf32>
    %cst_30 = arith.constant 1.000000e+00 : f32
    %41 = vector.broadcast %cst_30 : f32 to vector<32x1024xf32>
    %42 = arith.addf %41, %40 : vector<32x1024xf32>
    %43 = tpu.reciprocal %42 {approx = true} : vector<32x1024xf32> -> vector<32x1024xf32>
    %44 = arith.truncf %43 : vector<32x1024xf32> to vector<32x1024xbf16>
    %c0_31 = arith.constant 0 : index
    %c0_32 = arith.constant 0 : index
    %45 = vector.load %arg12[%c0_31, %c0_32] : memref<32x1024xbf16, #tpu.memory_space<vmem>>, vector<32x1024xbf16>
    tpu.vector_store %arg12[%c0_31, %c0_32], %44 {strides = array<i32>} : memref<32x1024xbf16, #tpu.memory_space<vmem>>, vector<32x1024xbf16>,
    return
  }
  func.func @transform_0(%arg0: i32) -> (i32, i32) {
    %c0_i32 = arith.constant 0 : i32
    %c0_i32_0 = arith.constant 0 : i32
    return %arg0, %c0_i32 : i32, i32
  }
  func.func @transform_1(%arg0: i32) -> (i32, i32) {
    %c0_i32 = arith.constant 0 : i32
    %c0_i32_0 = arith.constant 0 : i32
    %c0_i32_1 = arith.constant 0 : i32
    return %c0_i32, %c0_i32_0 : i32, i32
  }
  func.func @transform_2(%arg0: i32) -> (i32, i32) {
    %c0_i32 = arith.constant 0 : i32
    %c0_i32_0 = arith.constant 0 : i32
    %c0_i32_1 = arith.constant 0 : i32
    return %c0_i32, %c0_i32_0 : i32, i32
  }
  func.func @transform_3(%arg0: i32) -> (i32, i32) {
    %c0_i32 = arith.constant 0 : i32
    %c0_i32_0 = arith.constant 0 : i32
    %c0_i32_1 = arith.constant 0 : i32
    return %c0_i32, %c0_i32_0 : i32, i32
  }
  func.func @transform_4(%arg0: i32) -> (i32, i32) {
    %c0_i32 = arith.constant 0 : i32
    %c0_i32_0 = arith.constant 0 : i32
    %c0_i32_1 = arith.constant 0 : i32
    return %c0_i32, %c0_i32_0 : i32, i32
  }
  func.func @transform_5(%arg0: i32) -> (i32, i32) {
    %c0_i32 = arith.constant 0 : i32
    %c0_i32_0 = arith.constant 0 : i32
    %c0_i32_1 = arith.constant 0 : i32
    return %c0_i32, %c0_i32_0 : i32, i32
  }
  func.func @transform_6(%arg0: i32) -> (i32, i32) {
    %c0_i32 = arith.constant 0 : i32
    %c0_i32_0 = arith.constant 0 : i32
    %c0_i32_1 = arith.constant 0 : i32
    return %c0_i32, %c0_i32_0 : i32, i32
  }
  func.func @transform_7(%arg0: i32) -> (i32, i32) {
    %c0_i32 = arith.constant 0 : i32
    %c0_i32_0 = arith.constant 0 : i32
    %c0_i32_1 = arith.constant 0 : i32
    return %c0_i32, %c0_i32_0 : i32, i32
  }
  func.func @transform_8(%arg0: i32) -> (i32, i32) {
    %c0_i32 = arith.constant 0 : i32
    %c0_i32_0 = arith.constant 0 : i32
    %c0_i32_1 = arith.constant 0 : i32
    return %c0_i32, %c0_i32_0 : i32, i32
  }
  func.func @transform_9(%arg0: i32) -> (i32, i32) {
    %c0_i32 = arith.constant 0 : i32
    %c0_i32_0 = arith.constant 0 : i32
    %c0_i32_1 = arith.constant 0 : i32
    return %c0_i32, %c0_i32_0 : i32, i32
  }
  func.func @transform_10(%arg0: i32) -> (i32, i32) {
    %c0_i32 = arith.constant 0 : i32
    %c0_i32_0 = arith.constant 0 : i32
    %c0_i32_1 = arith.constant 0 : i32
    return %c0_i32, %c0_i32_0 : i32, i32
  }
  func.func @transform_11(%arg0: i32) -> (i32, i32) {
    %c0_i32 = arith.constant 0 : i32
    %c0_i32_0 = arith.constant 0 : i32
    return %arg0, %c0_i32 : i32, i32
  }
}

</mosaic_0001>

<llo_original>
// kernel: autoencoder_forward.1
$region0: #{autoencoder_forward.1}
  #allocation0 [shape = 'u32[]', space=smem, size = 0x4, offset = 0x4, fixed_abs, tag = 'smem constant byte address 0x4 - core index']
  #allocation1 [shape = 'u32[144,128]{1,0:T(1,128)}', space=vmem, size = 0x12000, scoped, tag = 'internal scratch']
  %s0 = inlined_call_operand.hbm [shape: bf16[37,1024], index: 0, kind: input, shape index: {}]
  %s1 = inlined_call_operand.hbm [shape: bf16[1024,512], index: 1, kind: input, shape index: {}]
  %s2 = inlined_call_operand.hbm [shape: f32[1,512], index: 2, kind: input, shape index: {}]
  %s3 = inlined_call_operand.hbm [shape: bf16[512,128], index: 3, kind: input, shape index: {}]
  %s4 = inlined_call_operand.vmem [shape: f32[1,128], index: 4, kind: input, shape index: {}]
  %s5 = inlined_call_operand.hbm [shape: bf16[128,128], index: 5, kind: input, shape index: {}]
  %s6 = inlined_call_operand.vmem [shape: f32[1,128], index: 6, kind: input, shape index: {}]
  %s7 = inlined_call_operand.hbm [shape: bf16[128,512], index: 7, kind: input, shape index: {}]
  %s8 = inlined_call_operand.vmem [shape: f32[1,512], index: 8, kind: input, shape index: {}]
  %s9 = inlined_call_operand.hbm [shape: bf16[512,1024], index: 9, kind: input, shape index: {}]
  %s10 = inlined_call_operand.vmem [shape: f32[1,1024], index: 10, kind: input, shape index: {}]
  %s11 = inlined_call_operand.hbm [shape: bf16[37,1024], index: 11, kind: output, shape index: {}]
  %s12 = sld [smem:[#allocation0]]
  $region105: #{autoencoder_forward.1} parent=0
    _
  %s14 = ssub.s32 1, %s12
  %s15 = scalar_select 0, %s14, %s12
  $region1: #{autoencoder_forward.1} parent=0
    #allocation2 [shape = 'u8[131072]{0}', space=vmem, size = 0x20000, scoped, tag = 'input window, operand 0']
    #allocation3 [shape = 's32[2]{0}', space=sflag, size = 0x8, scoped, tag = 'scoped memory for autoencoder_forward.1']
    #allocation4 [shape = 's32[2]{0}', space=sflag, size = 0x8, scoped, tag = 'scoped memory for autoencoder_forward.1']
    #allocation5 [shape = 'u8[1048576]{0}', space=vmem, size = 0x100000, scoped, tag = 'input window, operand 1, single buffered']
    #allocation6 [shape = 's32[1]{0}', space=sflag, size = 0x4, scoped, tag = 'scoped memory for autoencoder_forward.1']
    #allocation7 [shape = 'u8[2048]{0}', space=vmem, size = 0x800, scoped, tag = 'input window, operand 2, single buffered']
    #allocation8 [shape = 'u8[131072]{0}', space=vmem, size = 0x20000, scoped, tag = 'input window, operand 3, single buffered']
    #allocation9 [shape = 's32[1]{0}', space=sflag, size = 0x4, scoped, tag = 'scoped memory for autoencoder_forward.1']
    #allocation10 [shape = 'u8[32768]{0}', space=vmem, size = 0x8000, scoped, tag = 'input window, operand 5, single buffered']
    #allocation11 [shape = 'u8[131072]{0}', space=vmem, size = 0x20000, scoped, tag = 'input window, operand 7, single buffered']
    #allocation12 [shape = 's32[1]{0}', space=sflag, size = 0x4, scoped, tag = 'scoped memory for autoencoder_forward.1']
    #allocation13 [shape = 'u8[1048576]{0}', space=vmem, size = 0x100000, scoped, tag = 'input window, operand 9, single buffered']
    #allocation14 [shape = 'u8[131072]{0}', space=vmem, size = 0x20000, scoped, tag = 'output window, operand 0']
    %16 = vsyncpa [#allocation3], 0
    %s17 = scalar_lea.sflag [#allocation3], 1
    %18 = vsyncpa %s17, 0
    %19 = vsyncpa [#allocation6], 0
    %20 = vsyncpa [#allocation9], 0
    %21 = vsyncpa [#allocation12], 0
    %22 = vsyncpa [#allocation4], 0
    %s23 = scalar_lea.sflag [#allocation4], 1
    %24 = vsyncpa %s23, 0
    loop: start=0, step=1, limit=4
    $region2: #{autoencoder_forward.1} parent=1 // loop_pre_header
      _
    $region3: #{autoencoder_forward.1} parent=1 // loop_header
      %s26 = sphi 0, %s30
      %p27 = scmp.ge.s32.totalorder %s26, 4
      %s36 = sphi 0, %s38
      %s39 = sphi 0, %s36
      %s40 = sphi 0, %s39
      %s56 = sphi 0, %s40
      %s60 = sphi 0, %s60
      %s62 = sphi 0, %s60
      %s63 = sphi 0, %s62
      %s77 = sphi 0, %s63
      %s81 = sphi 0, %s81
      %s83 = sphi 0, %s81
      %s84 = sphi 0, %s83
      %s98 = sphi 0, %s84
      %s102 = sphi 0, %s102
      %s104 = sphi 0, %s102
      %s105 = sphi 0, %s104
      %s119 = sphi 0, %s105
      %s123 = sphi 0, %s123
      %s125 = sphi 0, %s123
      %s126 = sphi 0, %s125
      %s140 = sphi 0, %s126
      %s144 = sphi 0, %s144
      %s146 = sphi 0, %s144
      %s147 = sphi 0, %s146
      %s161 = sphi 0, %s147
      %s165 = sphi 0, %s165
      %s167 = sphi 0, %s165
      %s168 = sphi 0, %s167
      %s182 = sphi 0, %s168
      %s186 = sphi 0, %s186
      %s188 = sphi 0, %s186
      %s189 = sphi 0, %s188
      %s203 = sphi 0, %s189
      %s207 = sphi 0, %s207
      %s209 = sphi 0, %s207
      %s210 = sphi 0, %s209
      %s224 = sphi 0, %s210
      %s228 = sphi 0, %s228
      %s230 = sphi 0, %s228
      %s231 = sphi 0, %s230
      %s245 = sphi 0, %s231
      %s249 = sphi 0, %s249
      %s251 = sphi 0, %s249
      %s252 = sphi 0, %s251
      %s266 = sphi 0, %s252
      %s272 = sphi 0, %s274
      %s275 = sphi 0, %s272
      %s276 = sphi 0, %s275
      %s292 = sphi 0, %s276
    $region4: #{autoencoder_forward.1} parent=1 // loop_header_branch
      %29 = sbr.rel (%p27) target = $region8
    $region5: #{autoencoder_forward.1} parent=1 // loop_body
      %s31 = ssub.s32 %s26, 1
      %s32 = ssub.s32 %s26, 2
      %s33 = sadd.s32 %s26, 1
      %s34 = ssub.s32 %s26, %s33
      %p35 = scmp.eq.s32.totalorder %s34, 0
      %s37 = sadd.s32 %s36, 1
      %s38 = scalar_select %p35, %s36, %s37
      %p41 = pneg %p35
      %p42 = scmp.eq.s32.totalorder %s26, 1
      %p43 = por %p41, %p42
      %p44 = scmp.ne.s32.totalorder %s36, %s39
      %p45 = scmp.eq.s32.totalorder %s26, 0
      %p46 = por %p44, %p45
      %p47 = scmp.ne.s32.totalorder %s36, %s39
      %p48 = scmp.eq.s32.totalorder %s31, 1
      %p49 = por %p47, %p48
      %p50 = scmp.ne.s32.totalorder %s39, %s40
      %p51 = scmp.eq.s32.totalorder %s31, 0
      %p52 = por %p50, %p51
      %p53 = scmp.ne.s32.totalorder %s39, %s40
      %p54 = scmp.eq.s32.totalorder %s32, 1
      %p55 = por %p53, %p54
      %p57 = scmp.ne.s32.totalorder %s40, %s56
      %p58 = scmp.eq.s32.totalorder %s32, 0
      %p59 = por %p57, %p58
      %s61 = sadd.s32 %s60, 1
      %p64 = scmp.eq.s32.totalorder %s26, 1
      %p65 = scmp.ne.s32.totalorder %s60, %s62
      %p66 = scmp.eq.s32.totalorder %s26, 0
      %p67 = por %p65, %p66
      %p68 = scmp.ne.s32.totalorder %s60, %s62
      %p69 = scmp.eq.s32.totalorder %s31, 1
      %p70 = por %p68, %p69
      %p71 = scmp.ne.s32.totalorder %s62, %s63
      %p72 = scmp.eq.s32.totalorder %s31, 0
      %p73 = por %p71, %p72
      %p74 = scmp.ne.s32.totalorder %s62, %s63
      %p75 = scmp.eq.s32.totalorder %s32, 1
      %p76 = por %p74, %p75
      %p78 = scmp.ne.s32.totalorder %s63, %s77
      %p79 = scmp.eq.s32.totalorder %s32, 0
      %p80 = por %p78, %p79
      %s82 = sadd.s32 %s81, 1
      %p85 = scmp.eq.s32.totalorder %s26, 1
      %p86 = scmp.ne.s32.totalorder %s81, %s83
      %p87 = scmp.eq.s32.totalorder %s26, 0
      %p88 = por %p86, %p87
      %p89 = scmp.ne.s32.totalorder %s81, %s83
      %p90 = scmp.eq.s32.totalorder %s31, 1
      %p91 = por %p89, %p90
      %p92 = scmp.ne.s32.totalorder %s83, %s84
      %p93 = scmp.eq.s32.totalorder %s31, 0
      %p94 = por %p92, %p93
      %p95 = scmp.ne.s32.totalorder %s83, %s84
      %p96 = scmp.eq.s32.totalorder %s32, 1
      %p97 = por %p95, %p96
      %p99 = scmp.ne.s32.totalorder %s84, %s98
      %p100 = scmp.eq.s32.totalorder %s32, 0
      %p101 = por %p99, %p100
      %s103 = sadd.s32 %s102, 1
      %p106 = scmp.eq.s32.totalorder %s26, 1
      %p107 = scmp.ne.s32.totalorder %s102, %s104
      %p108 = scmp.eq.s32.totalorder %s26, 0
      %p109 = por %p107, %p108
      %p110 = scmp.ne.s32.totalorder %s102, %s104
      %p111 = scmp.eq.s32.totalorder %s31, 1
      %p112 = por %p110, %p111
      %p113 = scmp.ne.s32.totalorder %s104, %s105
      %p114 = scmp.eq.s32.totalorder %s31, 0
      %p115 = por %p113, %p114
      %p116 = scmp.ne.s32.totalorder %s104, %s105
      %p117 = scmp.eq.s32.totalorder %s32, 1
      %p118 = por %p116, %p117
      %p120 = scmp.ne.s32.totalorder %s105, %s119
      %p121 = scmp.eq.s32.totalorder %s32, 0
      %p122 = por %p120, %p121
      %s124 = sadd.s32 %s123, 1
      %p127 = scmp.eq.s32.totalorder %s26, 1
      %p128 = scmp.ne.s32.totalorder %s123, %s125
      %p129 = scmp.eq.s32.totalorder %s26, 0
      %p130 = por %p128, %p129
      %p131 = scmp.ne.s32.totalorder %s123, %s125
      %p132 = scmp.eq.s32.totalorder %s31, 1
      %p133 = por %p131, %p132
      %p134 = scmp.ne.s32.totalorder %s125, %s126
      %p135 = scmp.eq.s32.totalorder %s31, 0
      %p136 = por %p134, %p135
      %p137 = scmp.ne.s32.totalorder %s125, %s126
      %p138 = scmp.eq.s32.totalorder %s32, 1
      %p139 = por %p137, %p138
      %p141 = scmp.ne.s32.totalorder %s126, %s140
      %p142 = scmp.eq.s32.totalorder %s32, 0
      %p143 = por %p141, %p142
      %s145 = sadd.s32 %s144, 1
      %p148 = scmp.eq.s32.totalorder %s26, 1
      %p149 = scmp.ne.s32.totalorder %s144, %s146
      %p150 = scmp.eq.s32.totalorder %s26, 0
      %p151 = por %p149, %p150
      %p152 = scmp.ne.s32.totalorder %s144, %s146
      %p153 = scmp.eq.s32.totalorder %s31, 1
      %p154 = por %p152, %p153
      %p155 = scmp.ne.s32.totalorder %s146, %s147
      %p156 = scmp.eq.s32.totalorder %s31, 0
      %p157 = por %p155, %p156
      %p158 = scmp.ne.s32.totalorder %s146, %s147
      %p159 = scmp.eq.s32.totalorder %s32, 1
      %p160 = por %p158, %p159
      %p162 = scmp.ne.s32.totalorder %s147, %s161
      %p163 = scmp.eq.s32.totalorder %s32, 0
      %p164 = por %p162, %p163
      %s166 = sadd.s32 %s165, 1
      %p169 = scmp.eq.s32.totalorder %s26, 1
      %p170 = scmp.ne.s32.totalorder %s165, %s167
      %p171 = scmp.eq.s32.totalorder %s26, 0
      %p172 = por %p170, %p171
      %p173 = scmp.ne.s32.totalorder %s165, %s167
      %p174 = scmp.eq.s32.totalorder %s31, 1
      %p175 = por %p173, %p174
      %p176 = scmp.ne.s32.totalorder %s167, %s168
      %p177 = scmp.eq.s32.totalorder %s31, 0
      %p178 = por %p176, %p177
      %p179 = scmp.ne.s32.totalorder %s167, %s168
      %p180 = scmp.eq.s32.totalorder %s32, 1
      %p181 = por %p179, %p180
      %p183 = scmp.ne.s32.totalorder %s168, %s182
      %p184 = scmp.eq.s32.totalorder %s32, 0
      %p185 = por %p183, %p184
      %s187 = sadd.s32 %s186, 1
      %p190 = scmp.eq.s32.totalorder %s26, 1
      %p191 = scmp.ne.s32.totalorder %s186, %s188
      %p192 = scmp.eq.s32.totalorder %s26, 0
      %p193 = por %p191, %p192
      %p194 = scmp.ne.s32.totalorder %s186, %s188
      %p195 = scmp.eq.s32.totalorder %s31, 1
      %p196 = por %p194, %p195
      %p197 = scmp.ne.s32.totalorder %s188, %s189
      %p198 = scmp.eq.s32.totalorder %s31, 0
      %p199 = por %p197, %p198
      %p200 = scmp.ne.s32.totalorder %s188, %s189
      %p201 = scmp.eq.s32.totalorder %s32, 1
      %p202 = por %p200, %p201
      %p204 = scmp.ne.s32.totalorder %s189, %s203
      %p205 = scmp.eq.s32.totalorder %s32, 0
      %p206 = por %p204, %p205
      %s208 = sadd.s32 %s207, 1
      %p211 = scmp.eq.s32.totalorder %s26, 1
      %p212 = scmp.ne.s32.totalorder %s207, %s209
      %p213 = scmp.eq.s32.totalorder %s26, 0
      %p214 = por %p212, %p213
      %p215 = scmp.ne.s32.totalorder %s207, %s209
      %p216 = scmp.eq.s32.totalorder %s31, 1
      %p217 = por %p215, %p216
      %p218 = scmp.ne.s32.totalorder %s209, %s210
      %p219 = scmp.eq.s32.totalorder %s31, 0
      %p220 = por %p218, %p219
      %p221 = scmp.ne.s32.totalorder %s209, %s210
      %p222 = scmp.eq.s32.totalorder %s32, 1
      %p223 = por %p221, %p222
      %p225 = scmp.ne.s32.totalorder %s210, %s224
      %p226 = scmp.eq.s32.totalorder %s32, 0
      %p227 = por %p225, %p226
      %s229 = sadd.s32 %s228, 1
      %p232 = scmp.eq.s32.totalorder %s26, 1
      %p233 = scmp.ne.s32.totalorder %s228, %s230
      %p234 = scmp.eq.s32.totalorder %s26, 0
      %p235 = por %p233, %p234
      %p236 = scmp.ne.s32.totalorder %s228, %s230
      %p237 = scmp.eq.s32.totalorder %s31, 1
      %p238 = por %p236, %p237
      %p239 = scmp.ne.s32.totalorder %s230, %s231
      %p240 = scmp.eq.s32.totalorder %s31, 0
      %p241 = por %p239, %p240
      %p242 = scmp.ne.s32.totalorder %s230, %s231
      %p243 = scmp.eq.s32.totalorder %s32, 1
      %p244 = por %p242, %p243
      %p246 = scmp.ne.s32.totalorder %s231, %s245
      %p247 = scmp.eq.s32.totalorder %s32, 0
      %p248 = por %p246, %p247
      %s250 = sadd.s32 %s249, 1
      %p253 = scmp.eq.s32.totalorder %s26, 1
      %p254 = scmp.ne.s32.totalorder %s249, %s251
      %p255 = scmp.eq.s32.totalorder %s26, 0
      %p256 = por %p254, %p255
      %p257 = scmp.ne.s32.totalorder %s249, %s251
      %p258 = scmp.eq.s32.totalorder %s31, 1
      %p259 = por %p257, %p258
      %p260 = scmp.ne.s32.totalorder %s251, %s252
      %p261 = scmp.eq.s32.totalorder %s31, 0
      %p262 = por %p260, %p261
      %p263 = scmp.ne.s32.totalorder %s251, %s252
      %p264 = scmp.eq.s32.totalorder %s32, 1
      %p265 = por %p263, %p264
      %p267 = scmp.ne.s32.totalorder %s252, %s266
      %p268 = scmp.eq.s32.totalorder %s32, 0
      %p269 = por %p267, %p268
      %s270 = ssub.s32 %s26, %s33
      %p271 = scmp.eq.s32.totalorder %s270, 0
      %s273 = sadd.s32 %s272, 1
      %s274 = scalar_select %p271, %s272, %s273
      %p277 = pneg %p271
      %p278 = scmp.eq.s32.totalorder %s26, 1
      %p279 = por %p277, %p278
      %p280 = scmp.ne.s32.totalorder %s272, %s275
      %p281 = scmp.eq.s32.totalorder %s26, 0
      %p282 = por %p280, %p281
      %p283 = scmp.ne.s32.totalorder %s272, %s275
      %p284 = scmp.eq.s32.totalorder %s31, 1
      %p285 = por %p283, %p284
      %p286 = scmp.ne.s32.totalorder %s275, %s276
      %p287 = scmp.eq.s32.totalorder %s31, 0
      %p288 = por %p286, %p287
      %p289 = scmp.ne.s32.totalorder %s275, %s276
      %p290 = scmp.eq.s32.totalorder %s32, 1
      %p291 = por %p289, %p290
      %p293 = scmp.ne.s32.totalorder %s276, %s292
      %p294 = scmp.eq.s32.totalorder %s32, 0
      %p295 = por %p293, %p294
      %p296 = scmp.le.s32.totalorder 1, %s26
      %p297 = scmp.lt.s32.totalorder %s26, 3
      %p298 = pnand %p296, %p297
      %p299 = pneg %p298
      // Predicated region
      $region9: #{autoencoder_forward.1} parent=5 // pred_check
        _
      $region10: #{autoencoder_forward.1} parent=5 // pred_check_branch
        %301 = sbr.rel (%p298) target = $region12
      $region11: #{autoencoder_forward.1} parent=5 // pred_region
        %s302 = ssub.s32 %s26, 1
        // Predicated region
        $region13: #{autoencoder_forward.1} parent=11 // pred_check
          %p303 = pneg %p73
        $region14: #{autoencoder_forward.1} parent=11 // pred_check_branch
          %305 = sbr.rel (%p303) target = $region16
        $region15: #{autoencoder_forward.1} parent=11 // pred_region
          %s307 = ssub.s32 32768, 32768
          %308 = vsyncadd [#allocation6], %s307
          %s309 = sshll.u32 [#allocation5], 4
          %s310 = int_to_ptr.vmem [resolvable:$true] %s309
          %315 = dma.hbm_to_vmem [thread:$0]  %s1, 32768, %s310, [#allocation6], 256, 256, 16
        $region16: #{autoencoder_forward.1} parent=11 // pred_fallthru
          _
        // Predicated region
        $region17: #{autoencoder_forward.1} parent=11 // pred_check
          %p316 = pneg %p94
        $region18: #{autoencoder_forward.1} parent=11 // pred_check_branch
          %318 = sbr.rel (%p316) target = $region20
        $region19: #{autoencoder_forward.1} parent=11 // pred_region
          %s320 = ssub.s32 64, 64
          %321 = vsyncadd [#allocation6], %s320
          %s323 = sshll.u32 [#allocation7], 4
          %s324 = int_to_ptr.vmem [resolvable:$true] %s323
          %326 = dma.hbm_to_vmem [thread:$0]  %s2, 64, %s324, [#allocation6]
        $region20: #{autoencoder_forward.1} parent=11 // pred_fallthru
          _
        // Predicated region
        $region21: #{autoencoder_forward.1} parent=11 // pred_check
          %p327 = pneg %p115
        $region22: #{autoencoder_forward.1} parent=11 // pred_check_branch
          %329 = sbr.rel (%p327) target = $region24
        $region23: #{autoencoder_forward.1} parent=11 // pred_region
          %s331 = ssub.s32 4096, 4096
          %332 = vsyncadd [#allocation9], %s331
          %s333 = sshll.u32 [#allocation8], 4
          %s334 = int_to_ptr.vmem [resolvable:$true] %s333
          %339 = dma.hbm_to_vmem [thread:$0]  %s3, 4096, %s334, [#allocation9], 64, 64, 4
        $region24: #{autoencoder_forward.1} parent=11 // pred_fallthru
          _
        // Predicated region
        $region25: #{autoencoder_forward.1} parent=11 // pred_check
          %p340 = pneg %p136
        $region26: #{autoencoder_forward.1} parent=11 // pred_check_branch
          %342 = sbr.rel (%p340) target = $region28
        $region27: #{autoencoder_forward.1} parent=11 // pred_region
          _
        $region28: #{autoencoder_forward.1} parent=11 // pred_fallthru
          _
        // Predicated region
        $region29: #{autoencoder_forward.1} parent=11 // pred_check
          %p343 = pneg %p157
        $region30: #{autoencoder_forward.1} parent=11 // pred_check_branch
          %345 = sbr.rel (%p343) target = $region32
        $region31: #{autoencoder_forward.1} parent=11 // pred_region
          %s347 = ssub.s32 1024, 1024
          %348 = vsyncadd [#allocation9], %s347
          %s349 = sshll.u32 [#allocation10], 4
          %s350 = int_to_ptr.vmem [resolvable:$true] %s349
          %355 = dma.hbm_to_vmem [thread:$0]  %s5, 1024, %s350, [#allocation9], 64, 64, 4
        $region32: #{autoencoder_forward.1} parent=11 // pred_fallthru
          _
        // Predicated region
        $region33: #{autoencoder_forward.1} parent=11 // pred_check
          %p356 = pneg %p178
        $region34: #{autoencoder_forward.1} parent=11 // pred_check_branch
          %358 = sbr.rel (%p356) target = $region36
        $region35: #{autoencoder_forward.1} parent=11 // pred_region
          _
        $region36: #{autoencoder_forward.1} parent=11 // pred_fallthru
          _
        // Predicated region
        $region37: #{autoencoder_forward.1} parent=11 // pred_check
          %p359 = pneg %p199
        $region38: #{autoencoder_forward.1} parent=11 // pred_check_branch
          %361 = sbr.rel (%p359) target = $region40
        $region39: #{autoencoder_forward.1} parent=11 // pred_region
          %s363 = ssub.s32 4096, 4096
          %364 = vsyncadd [#allocation12], %s363
          %s365 = sshll.u32 [#allocation11], 4
          %s366 = int_to_ptr.vmem [resolvable:$true] %s365
          %371 = dma.hbm_to_vmem [thread:$0]  %s7, 4096, %s366, [#allocation12], 256, 256, 16
        $region40: #{autoencoder_forward.1} parent=11 // pred_fallthru
          _
        // Predicated region
        $region41: #{autoencoder_forward.1} parent=11 // pred_check
          %p372 = pneg %p220
        $region42: #{autoencoder_forward.1} parent=11 // pred_check_branch
          %374 = sbr.rel (%p372) target = $region44
        $region43: #{autoencoder_forward.1} parent=11 // pred_region
          _
        $region44: #{autoencoder_forward.1} parent=11 // pred_fallthru
          _
        // Predicated region
        $region45: #{autoencoder_forward.1} parent=11 // pred_check
          %p375 = pneg %p241
        $region46: #{autoencoder_forward.1} parent=11 // pred_check_branch
          %377 = sbr.rel (%p375) target = $region48
        $region47: #{autoencoder_forward.1} parent=11 // pred_region
          %s379 = ssub.s32 32768, 32768
          %380 = vsyncadd [#allocation12], %s379
          %s381 = sshll.u32 [#allocation13], 4
          %s382 = int_to_ptr.vmem [resolvable:$true] %s381
          %387 = dma.hbm_to_vmem [thread:$0]  %s9, 32768, %s382, [#allocation12], 512, 512, 32
        $region48: #{autoencoder_forward.1} parent=11 // pred_fallthru
          _
        // Predicated region
        $region49: #{autoencoder_forward.1} parent=11 // pred_check
          %p388 = pneg %p262
        $region50: #{autoencoder_forward.1} parent=11 // pred_check_branch
          %390 = sbr.rel (%p388) target = $region52
        $region51: #{autoencoder_forward.1} parent=11 // pred_region
          _
        $region52: #{autoencoder_forward.1} parent=11 // pred_fallthru
          _
      $region12: #{autoencoder_forward.1} parent=5 // pred_fallthru
        _
      %p391 = scmp.lt.s32.totalorder %s26, 2
      // Predicated region
      $region53: #{autoencoder_forward.1} parent=5 // pred_check
        %p392 = pneg %p391
      $region54: #{autoencoder_forward.1} parent=5 // pred_check_branch
        %394 = sbr.rel (%p392) target = $region56
      $region55: #{autoencoder_forward.1} parent=5 // pred_region
        // Predicated region
        $region57: #{autoencoder_forward.1} parent=55 // pred_check
          %p395 = pneg %p46
        $region58: #{autoencoder_forward.1} parent=55 // pred_check_branch
          %397 = sbr.rel (%p395) target = $region60
        $region59: #{autoencoder_forward.1} parent=55 // pred_region
          %s398 = sand.u32 %s36, 1
          %s399 = scalar_lea.sflag [#allocation3], %s398
          %s400 = sand.u32 %s36, 1
          %s401 = smul.addr %s400, 128
          %s402 = scalar_lea.vmem [#allocation2], %s401
          %s403 = smul.u32 4, %s26
          %s404 = ssub.s32 5, %s403
          %p405 = scmp.lt.s32.totalorder %s404, 4
          %s406 = scalar_select %p405, %s404, 4
          %s407 = smul.u32 64, %s406
          %s408 = smul.u32 %s407, 8
          %s410 = ssub.s32 2048, %s408
          %411 = vsyncadd %s399, %s410
          %p412 = scmp.ne.s32.totalorder 0, %s408
          %s413 = smul.addr %s403, 8
          %s414 = smul.addr %s413, 64
          %s415 = scalar_lea.hbm %s0, %s414
          %s416 = smul.u32 32, %s406
          %s417 = sshll.u32 %s402, 4
          %s418 = int_to_ptr.vmem [resolvable:$true] %s417
          %s419 = sshll.u32 %s416, 4
          %423 = dma.hbm_to_vmem [thread:$0]  (%p412), %s415, %s419, %s418, %s399, 512, 512, 32
        $region60: #{autoencoder_forward.1} parent=55 // pred_fallthru
          _
      $region56: #{autoencoder_forward.1} parent=5 // pred_fallthru
        _
      %p424 = scmp.le.s32.totalorder 1, %s26
      %p425 = scmp.lt.s32.totalorder %s26, 3
      %p426 = pnand %p424, %p425
      %p427 = pneg %p426
      // Predicated region
      $region61: #{autoencoder_forward.1} parent=5 // pred_check
        _
      $region62: #{autoencoder_forward.1} parent=5 // pred_check_branch
        %429 = sbr.rel (%p426) target = $region64
      $region63: #{autoencoder_forward.1} parent=5 // pred_region
        %s430 = ssub.s32 %s26, 1
        %s431 = sand.u32 %s39, 1
        %s432 = scalar_lea.sflag [#allocation3], %s431
        %s433 = sand.u32 %s39, 1
        %s434 = smul.addr %s433, 128
        %s435 = scalar_lea.vmem [#allocation2], %s434
        // Predicated region
        $region65: #{autoencoder_forward.1} parent=63 // pred_check
          %p436 = pneg %p52
        $region66: #{autoencoder_forward.1} parent=63 // pred_check_branch
          %438 = sbr.rel (%p436) target = $region68
        $region67: #{autoencoder_forward.1} parent=63 // pred_region
          %439 = dma.done %s432, 2048
        $region68: #{autoencoder_forward.1} parent=63 // pred_fallthru
          _
        // Predicated region
        $region69: #{autoencoder_forward.1} parent=63 // pred_check
          %p440 = pneg %p73
        $region70: #{autoencoder_forward.1} parent=63 // pred_check_branch
          %442 = sbr.rel (%p440) target = $region72
        $region71: #{autoencoder_forward.1} parent=63 // pred_region
          %443 = dma.done [#allocation6], 32768
        $region72: #{autoencoder_forward.1} parent=63 // pred_fallthru
          _
        // Predicated region
        $region73: #{autoencoder_forward.1} parent=63 // pred_check
          %p444 = pneg %p94
        $region74: #{autoencoder_forward.1} parent=63 // pred_check_branch
          %446 = sbr.rel (%p444) target = $region76
        $region75: #{autoencoder_forward.1} parent=63 // pred_region
          %447 = dma.done [#allocation6], 64
        $region76: #{autoencoder_forward.1} parent=63 // pred_fallthru
          _
        // Predicated region
        $region77: #{autoencoder_forward.1} parent=63 // pred_check
          %p448 = pneg %p115
        $region78: #{autoencoder_forward.1} parent=63 // pred_check_branch
          %450 = sbr.rel (%p448) target = $region80
        $region79: #{autoencoder_forward.1} parent=63 // pred_region
          %451 = dma.done [#allocation9], 4096
        $region80: #{autoencoder_forward.1} parent=63 // pred_fallthru
          _
        // Predicated region
        $region81: #{autoencoder_forward.1} parent=63 // pred_check
          %p452 = pneg %p157
        $region82: #{autoencoder_forward.1} parent=63 // pred_check_branch
          %454 = sbr.rel (%p452) target = $region84
        $region83: #{autoencoder_forward.1} parent=63 // pred_region
          %455 = dma.done [#allocation9], 1024
        $region84: #{autoencoder_forward.1} parent=63 // pred_fallthru
          _
        // Predicated region
        $region85: #{autoencoder_forward.1} parent=63 // pred_check
          %p456 = pneg %p199
        $region86: #{autoencoder_forward.1} parent=63 // pred_check_branch
          %458 = sbr.rel (%p456) target = $region88
        $region87: #{autoencoder_forward.1} parent=63 // pred_region
          %459 = dma.done [#allocation12], 4096
        $region88: #{autoencoder_forward.1} parent=63 // pred_fallthru
          _
        // Predicated region
        $region89: #{autoencoder_forward.1} parent=63 // pred_check
          %p460 = pneg %p241
        $region90: #{autoencoder_forward.1} parent=63 // pred_check_branch
          %462 = sbr.rel (%p460) target = $region92
        $region91: #{autoencoder_forward.1} parent=63 // pred_region
          %463 = dma.done [#allocation12], 32768
        $region92: #{autoencoder_forward.1} parent=63 // pred_fallthru
          _
        %s464 = sand.u32 %s39, 1
        %s465 = scalar_lea.sflag [#allocation3], %s464
        %s466 = sand.u32 %s39, 1
        %s467 = smul.addr %s466, 128
        %s468 = scalar_lea.vmem [#allocation2], %s467
        %p469 = pneg %p52
        %p470 = pneg %p49
        %p471 = pneg %p73
        %p472 = pneg %p70
        %p473 = pneg %p94
        %p474 = pneg %p91
        %p475 = pneg %p115
        %p476 = pneg %p112
        %p477 = pneg %p136
        %p478 = pneg %p133
        %p479 = pneg %p157
        %p480 = pneg %p154
        %p481 = pneg %p178
        %p482 = pneg %p175
        %p483 = pneg %p199
        %p484 = pneg %p196
        %p485 = pneg %p220
        %p486 = pneg %p217
        %p487 = pneg %p241
        %p488 = pneg %p238
        %p489 = pneg %p262
        %p490 = pneg %p259
        %p491 = pneg %p288
        %p492 = pneg %p285
        %s493 = sand.u32 %s275, 1
        %s494 = scalar_lea.sflag [#allocation4], %s493
        %s495 = sand.u32 %s275, 1
        %s496 = smul.addr %s495, 128
        %s497 = scalar_lea.vmem [#allocation14], %s496
        %s498 = smul.u32 4, %s31
        %s499 = ssub.s32 5, %s498
        %p500 = scmp.lt.s32.totalorder %s499, 4
        %s501 = scalar_select %p500, %s499, 4
        %s502 = smul.u32 64, %s501
        %s503 = smul.u32 %s502, 8
        %s504 = smul.u32 4, %s31
        %s505 = ssub.s32 5, %s504
        %p506 = scmp.lt.s32.totalorder %s505, 4
        %s507 = scalar_select %p506, %s505, 4
        %s508 = smul.u32 64, %s507
        %s509 = smul.u32 %s508, 8
        %v511 = vld [vmem:[%s435] sm:$0xff]
        %v512 = vld [vmem:[%s435 + $0x8] sm:$0xff]
        %v513 = vld [vmem:[%s435 + $0x10] sm:$0xff]
        %v514 = vld [vmem:[%s435 + $0x18] sm:$0xff]
        %v515 = vld [vmem:[%s435 + $0x20] sm:$0xff]
        %v516 = vld [vmem:[%s435 + $0x28] sm:$0xff]
        %v517 = vld [vmem:[%s435 + $0x30] sm:$0xff]
        %v518 = vld [vmem:[%s435 + $0x38] sm:$0xff]
        %v519 = vld [vmem:[%s435 + $0x40] sm:$0xff]
        %v520 = vld [vmem:[%s435 + $0x48] sm:$0xff]
        %v521 = vld [vmem:[%s435 + $0x50] sm:$0xff]
        %v522 = vld [vmem:[%s435 + $0x58] sm:$0xff]
        %v523 = vld [vmem:[%s435 + $0x60] sm:$0xff]
        %v524 = vld [vmem:[%s435 + $0x68] sm:$0xff]
        %v525 = vld [vmem:[%s435 + $0x70] sm:$0xff]
        %v526 = vld [vmem:[%s435 + $0x78] sm:$0xff]
        %v527 = vld [vmem:[#allocation5] sm:$0xff]
        %v528 = vld [vmem:[#allocation5 + $0x8] sm:$0xff]
        %v529 = vld [vmem:[#allocation5 + $0x10] sm:$0xff]
        %v530 = vld [vmem:[#allocation5 + $0x18] sm:$0xff]
        %v531 = vld [vmem:[#allocation5 + $0x20] sm:$0xff]
        %v532 = vld [vmem:[#allocation5 + $0x28] sm:$0xff]
        %v533 = vld [vmem:[#allocation5 + $0x30] sm:$0xff]
        %v534 = vld [vmem:[#allocation5 + $0x38] sm:$0xff]
        %v535 = vld [vmem:[#allocation5 + $0x40] sm:$0xff]
        %v536 = vld [vmem:[#allocation5 + $0x48] sm:$0xff]
        %v537 = vld [vmem:[#allocation5 + $0x50] sm:$0xff]
        %v538 = vld [vmem:[#allocation5 + $0x58] sm:$0xff]
        %v539 = vld [vmem:[#allocation5 + $0x60] sm:$0xff]
        %v540 = vld [vmem:[#allocation5 + $0x68] sm:$0xff]
        %v541 = vld [vmem:[#allocation5 + $0x70] sm:$0xff]
        %v542 = vld [vmem:[#allocation5 + $0x78] sm:$0xff]
        %v543 = vld [vmem:[#allocation5 + $0x80] sm:$0xff]
        %v544 = vld [vmem:[#allocation5 + $0x88] sm:$0xff]
        %v545 = vld [vmem:[#allocation5 + $0x90] sm:$0xff]
        %v546 = vld [vmem:[#allocation5 + $0x98] sm:$0xff]
        %v547 = vld [vmem:[#allocation5 + $0xa0] sm:$0xff]
        %v548 = vld [vmem:[#allocation5 + $0xa8] sm:$0xff]
        %v549 = vld [vmem:[#allocation5 + $0xb0] sm:$0xff]
        %v550 = vld [vmem:[#allocation5 + $0xb8] sm:$0xff]
        %v551 = vld [vmem:[#allocation5 + $0xc0] sm:$0xff]
        %v552 = vld [vmem:[#allocation5 + $0xc8] sm:$0xff]
        %v553 = vld [vmem:[#allocation5 + $0xd0] sm:$0xff]
        %v554 = vld [vmem:[#allocation5 + $0xd8] sm:$0xff]
        %v555 = vld [vmem:[#allocation5 + $0xe0] sm:$0xff]
        %v556 = vld [vmem:[#allocation5 + $0xe8] sm:$0xff]
        %v557 = vld [vmem:[#allocation5 + $0xf0] sm:$0xff]
        %v558 = vld [vmem:[#allocation5 + $0xf8] sm:$0xff]
        %v559 = vld [vmem:[#allocation5 + $0x100] sm:$0xff]
        %v560 = vld [vmem:[#allocation5 + $0x108] sm:$0xff]
        %v561 = vld [vmem:[#allocation5 + $0x110] sm:$0xff]
        %v562 = vld [vmem:[#allocation5 + $0x118] sm:$0xff]
        %v563 = vld [vmem:[#allocation5 + $0x120] sm:$0xff]
        %v564 = vld [vmem:[#allocation5 + $0x128] sm:$0xff]
        %v565 = vld [vmem:[#allocation5 + $0x130] sm:$0xff]
        %v566 = vld [vmem:[#allocation5 + $0x138] sm:$0xff]
        %v567 = vld [vmem:[#allocation5 + $0x140] sm:$0xff]
        %v568 = vld [vmem:[#allocation5 + $0x148] sm:$0xff]
        %v569 = vld [vmem:[#allocation5 + $0x150] sm:$0xff]
        %v570 = vld [vmem:[#allocation5 + $0x158] sm:$0xff]
        %v571 = vld [vmem:[#allocation5 + $0x160] sm:$0xff]
        %v572 = vld [vmem:[#allocation5 + $0x168] sm:$0xff]
        %v573 = vld [vmem:[#allocation5 + $0x170] sm:$0xff]
        %v574 = vld [vmem:[#allocation5 + $0x178] sm:$0xff]
        %v575 = vld [vmem:[#allocation5 + $0x180] sm:$0xff]
        %v576 = vld [vmem:[#allocation5 + $0x188] sm:$0xff]
        %v577 = vld [vmem:[#allocation5 + $0x190] sm:$0xff]
        %v578 = vld [vmem:[#allocation5 + $0x198] sm:$0xff]
        %v579 = vld [vmem:[#allocation5 + $0x1a0] sm:$0xff]
        %v580 = vld [vmem:[#allocation5 + $0x1a8] sm:$0xff]
        %v581 = vld [vmem:[#allocation5 + $0x1b0] sm:$0xff]
        %v582 = vld [vmem:[#allocation5 + $0x1b8] sm:$0xff]
        %v583 = vld [vmem:[#allocation5 + $0x1c0] sm:$0xff]
        %v584 = vld [vmem:[#allocation5 + $0x1c8] sm:$0xff]
        %v585 = vld [vmem:[#allocation5 + $0x1d0] sm:$0xff]
        %v586 = vld [vmem:[#allocation5 + $0x1d8] sm:$0xff]
        %v587 = vld [vmem:[#allocation5 + $0x1e0] sm:$0xff]
        %v588 = vld [vmem:[#allocation5 + $0x1e8] sm:$0xff]
        %v589 = vld [vmem:[#allocation5 + $0x1f0] sm:$0xff]
        %v590 = vld [vmem:[#allocation5 + $0x1f8] sm:$0xff]
        %v591 = vld [vmem:[#allocation5 + $0x200] sm:$0xff]
        %v592 = vld [vmem:[#allocation5 + $0x208] sm:$0xff]
        %v593 = vld [vmem:[#allocation5 + $0x210] sm:$0xff]
        %v594 = vld [vmem:[#allocation5 + $0x218] sm:$0xff]
        %v595 = vld [vmem:[#allocation5 + $0x220] sm:$0xff]
        %v596 = vld [vmem:[#allocation5 + $0x228] sm:$0xff]
        %v597 = vld [vmem:[#allocation5 + $0x230] sm:$0xff]
        %v598 = vld [vmem:[#allocation5 + $0x238] sm:$0xff]
        %v599 = vld [vmem:[#allocation5 + $0x240] sm:$0xff]
        %v600 = vld [vmem:[#allocation5 + $0x248] sm:$0xff]
        %v601 = vld [vmem:[#allocation5 + $0x250] sm:$0xff]
        %v602 = vld [vmem:[#allocation5 + $0x258] sm:$0xff]
        %v603 = vld [vmem:[#allocation5 + $0x260] sm:$0xff]
        %v604 = vld [vmem:[#allocation5 + $0x268] sm:$0xff]
        %v605 = vld [vmem:[#allocation5 + $0x270] sm:$0xff]
        %v606 = vld [vmem:[#allocation5 + $0x278] sm:$0xff]
        %v607 = vld [vmem:[#allocation5 + $0x280] sm:$0xff]
        %v608 = vld [vmem:[#allocation5 + $0x288] sm:$0xff]
        %v609 = vld [vmem:[#allocation5 + $0x290] sm:$0xff]
        %v610 = vld [vmem:[#allocation5 + $0x298] sm:$0xff]
        %v611 = vld [vmem:[#allocation5 + $0x2a0] sm:$0xff]
        %v612 = vld [vmem:[#allocation5 + $0x2a8] sm:$0xff]
        %v613 = vld [vmem:[#allocation5 + $0x2b0] sm:$0xff]
        %v614 = vld [vmem:[#allocation5 + $0x2b8] sm:$0xff]
        %v615 = vld [vmem:[#allocation5 + $0x2c0] sm:$0xff]
        %v616 = vld [vmem:[#allocation5 + $0x2c8] sm:$0xff]
        %v617 = vld [vmem:[#allocation5 + $0x2d0] sm:$0xff]
        %v618 = vld [vmem:[#allocation5 + $0x2d8] sm:$0xff]
        %v619 = vld [vmem:[#allocation5 + $0x2e0] sm:$0xff]
        %v620 = vld [vmem:[#allocation5 + $0x2e8] sm:$0xff]
        %v621 = vld [vmem:[#allocation5 + $0x2f0] sm:$0xff]
        %v622 = vld [vmem:[#allocation5 + $0x2f8] sm:$0xff]
        %v623 = vld [vmem:[#allocation5 + $0x300] sm:$0xff]
        %v624 = vld [vmem:[#allocation5 + $0x308] sm:$0xff]
        %v625 = vld [vmem:[#allocation5 + $0x310] sm:$0xff]
        %v626 = vld [vmem:[#allocation5 + $0x318] sm:$0xff]
        %v627 = vld [vmem:[#allocation5 + $0x320] sm:$0xff]
        %v628 = vld [vmem:[#allocation5 + $0x328] sm:$0xff]
        %v629 = vld [vmem:[#allocation5 + $0x330] sm:$0xff]
        %v630 = vld [vmem:[#allocation5 + $0x338] sm:$0xff]
        %v631 = vld [vmem:[#allocation5 + $0x340] sm:$0xff]
        %v632 = vld [vmem:[#allocation5 + $0x348] sm:$0xff]
        %v633 = vld [vmem:[#allocation5 + $0x350] sm:$0xff]
        %v634 = vld [vmem:[#allocation5 + $0x358] sm:$0xff]
        %v635 = vld [vmem:[#allocation5 + $0x360] sm:$0xff]
        %v636 = vld [vmem:[#allocation5 + $0x368] sm:$0xff]
        %v637 = vld [vmem:[#allocation5 + $0x370] sm:$0xff]
        %v638 = vld [vmem:[#allocation5 + $0x378] sm:$0xff]
        %v639 = vld [vmem:[#allocation5 + $0x380] sm:$0xff]
        %v640 = vld [vmem:[#allocation5 + $0x388] sm:$0xff]
        %v641 = vld [vmem:[#allocation5 + $0x390] sm:$0xff]
        %v642 = vld [vmem:[#allocation5 + $0x398] sm:$0xff]
        %v643 = vld [vmem:[#allocation5 + $0x3a0] sm:$0xff]
        %v644 = vld [vmem:[#allocation5 + $0x3a8] sm:$0xff]
        %v645 = vld [vmem:[#allocation5 + $0x3b0] sm:$0xff]
        %v646 = vld [vmem:[#allocation5 + $0x3b8] sm:$0xff]
        %v647 = vld [vmem:[#allocation5 + $0x3c0] sm:$0xff]
        %v648 = vld [vmem:[#allocation5 + $0x3c8] sm:$0xff]
        %v649 = vld [vmem:[#allocation5 + $0x3d0] sm:$0xff]
        %v650 = vld [vmem:[#allocation5 + $0x3d8] sm:$0xff]
        %v651 = vld [vmem:[#allocation5 + $0x3e0] sm:$0xff]
        %v652 = vld [vmem:[#allocation5 + $0x3e8] sm:$0xff]
        %v653 = vld [vmem:[#allocation5 + $0x3f0] sm:$0xff]
        %v654 = vld [vmem:[#allocation5 + $0x3f8] sm:$0xff]
        %v655 = vld [vmem:[#allocation5 + $0x400] sm:$0xff]
        %v656 = vld [vmem:[#allocation5 + $0x408] sm:$0xff]
        %v657 = vld [vmem:[#allocation5 + $0x410] sm:$0xff]
        %v658 = vld [vmem:[#allocation5 + $0x418] sm:$0xff]
        %v659 = vld [vmem:[#allocation5 + $0x420] sm:$0xff]
        %v660 = vld [vmem:[#allocation5 + $0x428] sm:$0xff]
        %v661 = vld [vmem:[#allocation5 + $0x430] sm:$0xff]
        %v662 = vld [vmem:[#allocation5 + $0x438] sm:$0xff]
        %v663 = vld [vmem:[#allocation5 + $0x440] sm:$0xff]
        %v664 = vld [vmem:[#allocation5 + $0x448] sm:$0xff]
        %v665 = vld [vmem:[#allocation5 + $0x450] sm:$0xff]
        %v666 = vld [vmem:[#allocation5 + $0x458] sm:$0xff]
        %v667 = vld [vmem:[#allocation5 + $0x460] sm:$0xff]
        %v668 = vld [vmem:[#allocation5 + $0x468] sm:$0xff]
        %v669 = vld [vmem:[#allocation5 + $0x470] sm:$0xff]
        %v670 = vld [vmem:[#allocation5 + $0x478] sm:$0xff]
        %v671 = vld [vmem:[#allocation5 + $0x480] sm:$0xff]
        %v672 = vld [vmem:[#allocation5 + $0x488] sm:$0xff]
        %v673 = vld [vmem:[#allocation5 + $0x490] sm:$0xff]
        %v674 = vld [vmem:[#allocation5 + $0x498] sm:$0xff]
        %v675 = vld [vmem:[#allocation5 + $0x4a0] sm:$0xff]
        %v676 = vld [vmem:[#allocation5 + $0x4a8] sm:$0xff]
        %v677 = vld [vmem:[#allocation5 + $0x4b0] sm:$0xff]
        %v678 = vld [vmem:[#allocation5 + $0x4b8] sm:$0xff]
        %v679 = vld [vmem:[#allocation5 + $0x4c0] sm:$0xff]
        %v680 = vld [vmem:[#allocation5 + $0x4c8] sm:$0xff]
        %v681 = vld [vmem:[#allocation5 + $0x4d0] sm:$0xff]
        %v682 = vld [vmem:[#allocation5 + $0x4d8] sm:$0xff]
        %v683 = vld [vmem:[#allocation5 + $0x4e0] sm:$0xff]
        %v684 = vld [vmem:[#allocation5 + $0x4e8] sm:$0xff]
        %v685 = vld [vmem:[#allocation5 + $0x4f0] sm:$0xff]
        %v686 = vld [vmem:[#allocation5 + $0x4f8] sm:$0xff]
        %v687 = vld [vmem:[#allocation5 + $0x500] sm:$0xff]
        %v688 = vld [vmem:[#allocation5 + $0x508] sm:$0xff]
        %v689 = vld [vmem:[#allocation5 + $0x510] sm:$0xff]
        %v690 = vld [vmem:[#allocation5 + $0x518] sm:$0xff]
        %v691 = vld [vmem:[#allocation5 + $0x520] sm:$0xff]
        %v692 = vld [vmem:[#allocation5 + $0x528] sm:$0xff]
        %v693 = vld [vmem:[#allocation5 + $0x530] sm:$0xff]
        %v694 = vld [vmem:[#allocation5 + $0x538] sm:$0xff]
        %v695 = vld [vmem:[#allocation5 + $0x540] sm:$0xff]
        %v696 = vld [vmem:[#allocation5 + $0x548] sm:$0xff]
        %v697 = vld [vmem:[#allocation5 + $0x550] sm:$0xff]
        %v698 = vld [vmem:[#allocation5 + $0x558] sm:$0xff]
        %v699 = vld [vmem:[#allocation5 + $0x560] sm:$0xff]
        %v700 = vld [vmem:[#allocation5 + $0x568] sm:$0xff]
        %v701 = vld [vmem:[#allocation5 + $0x570] sm:$0xff]
        %v702 = vld [vmem:[#allocation5 + $0x578] sm:$0xff]
        %v703 = vld [vmem:[#allocation5 + $0x580] sm:$0xff]
        %v704 = vld [vmem:[#allocation5 + $0x588] sm:$0xff]
        %v705 = vld [vmem:[#allocation5 + $0x590] sm:$0xff]
        %v706 = vld [vmem:[#allocation5 + $0x598] sm:$0xff]
        %v707 = vld [vmem:[#allocation5 + $0x5a0] sm:$0xff]
        %v708 = vld [vmem:[#allocation5 + $0x5a8] sm:$0xff]
        %v709 = vld [vmem:[#allocation5 + $0x5b0] sm:$0xff]
        %v710 = vld [vmem:[#allocation5 + $0x5b8] sm:$0xff]
        %v711 = vld [vmem:[#allocation5 + $0x5c0] sm:$0xff]
        %v712 = vld [vmem:[#allocation5 + $0x5c8] sm:$0xff]
        %v713 = vld [vmem:[#allocation5 + $0x5d0] sm:$0xff]
        %v714 = vld [vmem:[#allocation5 + $0x5d8] sm:$0xff]
        %v715 = vld [vmem:[#allocation5 + $0x5e0] sm:$0xff]
        %v716 = vld [vmem:[#allocation5 + $0x5e8] sm:$0xff]
        %v717 = vld [vmem:[#allocation5 + $0x5f0] sm:$0xff]
        %v718 = vld [vmem:[#allocation5 + $0x5f8] sm:$0xff]
        %v719 = vld [vmem:[#allocation5 + $0x600] sm:$0xff]
        %v720 = vld [vmem:[#allocation5 + $0x608] sm:$0xff]
        %v721 = vld [vmem:[#allocation5 + $0x610] sm:$0xff]
        %v722 = vld [vmem:[#allocation5 + $0x618] sm:$0xff]
        %v723 = vld [vmem:[#allocation5 + $0x620] sm:$0xff]
        %v724 = vld [vmem:[#allocation5 + $0x628] sm:$0xff]
        %v725 = vld [vmem:[#allocation5 + $0x630] sm:$0xff]
        %v726 = vld [vmem:[#allocation5 + $0x638] sm:$0xff]
        %v727 = vld [vmem:[#allocation5 + $0x640] sm:$0xff]
        %v728 = vld [vmem:[#allocation5 + $0x648] sm:$0xff]
        %v729 = vld [vmem:[#allocation5 + $0x650] sm:$0xff]
        %v730 = vld [vmem:[#allocation5 + $0x658] sm:$0xff]
        %v731 = vld [vmem:[#allocation5 + $0x660] sm:$0xff]
        %v732 = vld [vmem:[#allocation5 + $0x668] sm:$0xff]
        %v733 = vld [vmem:[#allocation5 + $0x670] sm:$0xff]
        %v734 = vld [vmem:[#allocation5 + $0x678] sm:$0xff]
        %v735 = vld [vmem:[#allocation5 + $0x680] sm:$0xff]
        %v736 = vld [vmem:[#allocation5 + $0x688] sm:$0xff]
        %v737 = vld [vmem:[#allocation5 + $0x690] sm:$0xff]
        %v738 = vld [vmem:[#allocation5 + $0x698] sm:$0xff]
        %v739 = vld [vmem:[#allocation5 + $0x6a0] sm:$0xff]
        %v740 = vld [vmem:[#allocation5 + $0x6a8] sm:$0xff]
        %v741 = vld [vmem:[#allocation5 + $0x6b0] sm:$0xff]
        %v742 = vld [vmem:[#allocation5 + $0x6b8] sm:$0xff]
        %v743 = vld [vmem:[#allocation5 + $0x6c0] sm:$0xff]
        %v744 = vld [vmem:[#allocation5 + $0x6c8] sm:$0xff]
        %v745 = vld [vmem:[#allocation5 + $0x6d0] sm:$0xff]
        %v746 = vld [vmem:[#allocation5 + $0x6d8] sm:$0xff]
        %v747 = vld [vmem:[#allocation5 + $0x6e0] sm:$0xff]
        %v748 = vld [vmem:[#allocation5 + $0x6e8] sm:$0xff]
        %v749 = vld [vmem:[#allocation5 + $0x6f0] sm:$0xff]
        %v750 = vld [vmem:[#allocation5 + $0x6f8] sm:$0xff]
        %v751 = vld [vmem:[#allocation5 + $0x700] sm:$0xff]
        %v752 = vld [vmem:[#allocation5 + $0x708] sm:$0xff]
        %v753 = vld [vmem:[#allocation5 + $0x710] sm:$0xff]
        %v754 = vld [vmem:[#allocation5 + $0x718] sm:$0xff]
        %v755 = vld [vmem:[#allocation5 + $0x720] sm:$0xff]
        %v756 = vld [vmem:[#allocation5 + $0x728] sm:$0xff]
        %v757 = vld [vmem:[#allocation5 + $0x730] sm:$0xff]
        %v758 = vld [vmem:[#allocation5 + $0x738] sm:$0xff]
        %v759 = vld [vmem:[#allocation5 + $0x740] sm:$0xff]
        %v760 = vld [vmem:[#allocation5 + $0x748] sm:$0xff]
        %v761 = vld [vmem:[#allocation5 + $0x750] sm:$0xff]
        %v762 = vld [vmem:[#allocation5 + $0x758] sm:$0xff]
        %v763 = vld [vmem:[#allocation5 + $0x760] sm:$0xff]
        %v764 = vld [vmem:[#allocation5 + $0x768] sm:$0xff]
        %v765 = vld [vmem:[#allocation5 + $0x770] sm:$0xff]
        %v766 = vld [vmem:[#allocation5 + $0x778] sm:$0xff]
        %v767 = vld [vmem:[#allocation5 + $0x780] sm:$0xff]
        %v768 = vld [vmem:[#allocation5 + $0x788] sm:$0xff]
        %v769 = vld [vmem:[#allocation5 + $0x790] sm:$0xff]
        %v770 = vld [vmem:[#allocation5 + $0x798] sm:$0xff]
        %v771 = vld [vmem:[#allocation5 + $0x7a0] sm:$0xff]
        %v772 = vld [vmem:[#allocation5 + $0x7a8] sm:$0xff]
        %v773 = vld [vmem:[#allocation5 + $0x7b0] sm:$0xff]
        %v774 = vld [vmem:[#allocation5 + $0x7b8] sm:$0xff]
        %v775 = vld [vmem:[#allocation5 + $0x7c0] sm:$0xff]
        %v776 = vld [vmem:[#allocation5 + $0x7c8] sm:$0xff]
        %v777 = vld [vmem:[#allocation5 + $0x7d0] sm:$0xff]
        %v778 = vld [vmem:[#allocation5 + $0x7d8] sm:$0xff]
        %v779 = vld [vmem:[#allocation5 + $0x7e0] sm:$0xff]
        %v780 = vld [vmem:[#allocation5 + $0x7e8] sm:$0xff]
        %v781 = vld [vmem:[#allocation5 + $0x7f0] sm:$0xff]
        %v782 = vld [vmem:[#allocation5 + $0x7f8] sm:$0xff]
        %v783 = vld [vmem:[#allocation7] sm:$0xf]
        %v785 = vlaneseq
        %v786 = vshrl.u32 %v785, 7
        %v787 = vsub.s32 0, %v786
        %v788 = vrot.slane %v783, %v787
        %v789 = vlaneseq
        %v790 = vshrl.u32 %v789, 7
        %v791 = vsub.s32 1, %v790
        %v792 = vrot.slane %v783, %v791
        %v793 = vlaneseq
        %v794 = vshrl.u32 %v793, 7
        %v795 = vsub.s32 2, %v794
        %v796 = vrot.slane %v783, %v795
        %v797 = vlaneseq
        %v798 = vshrl.u32 %v797, 7
        %v799 = vsub.s32 3, %v798
        %v800 = vrot.slane %v783, %v799
        %v821 = vunpack.c.l.b16 %v511
        %v822 = vunpack.c.h.b16 %v511
        %v823 = vunpack.c.l.b16 %v512
        %v824 = vunpack.c.h.b16 %v512
        %v825 = vunpack.c.l.b16 %v513
        %v826 = vunpack.c.h.b16 %v513
        %v827 = vunpack.c.l.b16 %v514
        %v828 = vunpack.c.h.b16 %v514
        %v829 = vunpack.c.l.b16 %v515
        %v830 = vunpack.c.h.b16 %v515
        %v831 = vunpack.c.l.b16 %v516
        %v832 = vunpack.c.h.b16 %v516
        %v833 = vunpack.c.l.b16 %v517
        %v834 = vunpack.c.h.b16 %v517
        %v835 = vunpack.c.l.b16 %v518
        %v836 = vunpack.c.h.b16 %v518
        %v837 = vunpack.c.l.b16 %v519
        %v838 = vunpack.c.h.b16 %v519
        %v839 = vunpack.c.l.b16 %v520
        %v840 = vunpack.c.h.b16 %v520
        %v841 = vunpack.c.l.b16 %v521
        %v842 = vunpack.c.h.b16 %v521
        %v843 = vunpack.c.l.b16 %v522
        %v844 = vunpack.c.h.b16 %v522
        %v845 = vunpack.c.l.b16 %v523
        %v846 = vunpack.c.h.b16 %v523
        %v847 = vunpack.c.l.b16 %v524
        %v848 = vunpack.c.h.b16 %v524
        %v849 = vunpack.c.l.b16 %v525
        %v850 = vunpack.c.h.b16 %v525
        %v851 = vunpack.c.l.b16 %v526
        %v852 = vunpack.c.h.b16 %v526
        %v853 = vpack.c.b16 %v829, %v821
        %v854 = vpack.c.b16 %v830, %v822
        %v855 = vpack.c.b16 %v831, %v823
        %v856 = vpack.c.b16 %v832, %v824
        %v857 = vpack.c.b16 %v833, %v825
        %v858 = vpack.c.b16 %v834, %v826
        %v859 = vpack.c.b16 %v835, %v827
        %v860 = vpack.c.b16 %v836, %v828
        %v861 = vpack.c.b16 %v845, %v837
        %v862 = vpack.c.b16 %v846, %v838
        %v863 = vpack.c.b16 %v847, %v839
        %v864 = vpack.c.b16 %v848, %v840
        %v865 = vpack.c.b16 %v849, %v841
        %v866 = vpack.c.b16 %v850, %v842
        %v867 = vpack.c.b16 %v851, %v843
        %v868 = vpack.c.b16 %v852, %v844
        %v1141 = vunpack.c.l.b16 %v527
        %v1142 = vunpack.c.h.b16 %v527
        %v1143 = vunpack.c.l.b16 %v528
        %v1144 = vunpack.c.h.b16 %v528
        %v1145 = vunpack.c.l.b16 %v529
        %v1146 = vunpack.c.h.b16 %v529
        %v1147 = vunpack.c.l.b16 %v530
        %v1148 = vunpack.c.h.b16 %v530
        %v1149 = vunpack.c.l.b16 %v531
        %v1150 = vunpack.c.h.b16 %v531
        %v1151 = vunpack.c.l.b16 %v532
        %v1152 = vunpack.c.h.b16 %v532
        %v1153 = vunpack.c.l.b16 %v533
        %v1154 = vunpack.c.h.b16 %v533
        %v1155 = vunpack.c.l.b16 %v534
        %v1156 = vunpack.c.h.b16 %v534
        %v1157 = vunpack.c.l.b16 %v535
        %v1158 = vunpack.c.h.b16 %v535
        %v1159 = vunpack.c.l.b16 %v536
        %v1160 = vunpack.c.h.b16 %v536
        %v1161 = vunpack.c.l.b16 %v537
        %v1162 = vunpack.c.h.b16 %v537
        %v1163 = vunpack.c.l.b16 %v538
        %v1164 = vunpack.c.h.b16 %v538
        %v1165 = vunpack.c.l.b16 %v539
        %v1166 = vunpack.c.h.b16 %v539
        %v1167 = vunpack.c.l.b16 %v540
        %v1168 = vunpack.c.h.b16 %v540
        %v1169 = vunpack.c.l.b16 %v541
        %v1170 = vunpack.c.h.b16 %v541
        %v1171 = vunpack.c.l.b16 %v542
        %v1172 = vunpack.c.h.b16 %v542
        %v1173 = vunpack.c.l.b16 %v543
        %v1174 = vunpack.c.h.b16 %v543
        %v1175 = vunpack.c.l.b16 %v544
        %v1176 = vunpack.c.h.b16 %v544
        %v1177 = vunpack.c.l.b16 %v545
        %v1178 = vunpack.c.h.b16 %v545
        %v1179 = vunpack.c.l.b16 %v546
        %v1180 = vunpack.c.h.b16 %v546
        %v1181 = vunpack.c.l.b16 %v547
        %v1182 = vunpack.c.h.b16 %v547
        %v1183 = vunpack.c.l.b16 %v548
        %v1184 = vunpack.c.h.b16 %v548
        %v1185 = vunpack.c.l.b16 %v549
        %v1186 = vunpack.c.h.b16 %v549
        %v1187 = vunpack.c.l.b16 %v550
        %v1188 = vunpack.c.h.b16 %v550
        %v1189 = vunpack.c.l.b16 %v551
        %v1190 = vunpack.c.h.b16 %v551
        %v1191 = vunpack.c.l.b16 %v552
        %v1192 = vunpack.c.h.b16 %v552
        %v1193 = vunpack.c.l.b16 %v553
        %v1194 = vunpack.c.h.b16 %v553
        %v1195 = vunpack.c.l.b16 %v554
        %v1196 = vunpack.c.h.b16 %v554
        %v1197 = vunpack.c.l.b16 %v555
        %v1198 = vunpack.c.h.b16 %v555
        %v1199 = vunpack.c.l.b16 %v556
        %v1200 = vunpack.c.h.b16 %v556
        %v1201 = vunpack.c.l.b16 %v557
        %v1202 = vunpack.c.h.b16 %v557
        %v1203 = vunpack.c.l.b16 %v558
        %v1204 = vunpack.c.h.b16 %v558
        %v1205 = vunpack.c.l.b16 %v559
        %v1206 = vunpack.c.h.b16 %v559
        %v1207 = vunpack.c.l.b16 %v560
        %v1208 = vunpack.c.h.b16 %v560
        %v1209 = vunpack.c.l.b16 %v561
        %v1210 = vunpack.c.h.b16 %v561
        %v1211 = vunpack.c.l.b16 %v562
        %v1212 = vunpack.c.h.b16 %v562
        %v1213 = vunpack.c.l.b16 %v563
        %v1214 = vunpack.c.h.b16 %v563
        %v1215 = vunpack.c.l.b16 %v564
        %v1216 = vunpack.c.h.b16 %v564
        %v1217 = vunpack.c.l.b16 %v565
        %v1218 = vunpack.c.h.b16 %v565
        %v1219 = vunpack.c.l.b16 %v566
        %v1220 = vunpack.c.h.b16 %v566
        %v1221 = vunpack.c.l.b16 %v567
        %v1222 = vunpack.c.h.b16 %v567
        %v1223 = vunpack.c.l.b16 %v568
        %v1224 = vunpack.c.h.b16 %v568
        %v1225 = vunpack.c.l.b16 %v569
        %v1226 = vunpack.c.h.b16 %v569
        %v1227 = vunpack.c.l.b16 %v570
        %v1228 = vunpack.c.h.b16 %v570
        %v1229 = vunpack.c.l.b16 %v571
        %v1230 = vunpack.c.h.b16 %v571
        %v1231 = vunpack.c.l.b16 %v572
        %v1232 = vunpack.c.h.b16 %v572
        %v1233 = vunpack.c.l.b16 %v573
        %v1234 = vunpack.c.h.b16 %v573
        %v1235 = vunpack.c.l.b16 %v574
        %v1236 = vunpack.c.h.b16 %v574
        %v1237 = vunpack.c.l.b16 %v575
        %v1238 = vunpack.c.h.b16 %v575
        %v1239 = vunpack.c.l.b16 %v576
        %v1240 = vunpack.c.h.b16 %v576
        %v1241 = vunpack.c.l.b16 %v577
        %v1242 = vunpack.c.h.b16 %v577
        %v1243 = vunpack.c.l.b16 %v578
        %v1244 = vunpack.c.h.b16 %v578
        %v1245 = vunpack.c.l.b16 %v579
        %v1246 = vunpack.c.h.b16 %v579
        %v1247 = vunpack.c.l.b16 %v580
        %v1248 = vunpack.c.h.b16 %v580
        %v1249 = vunpack.c.l.b16 %v581
        %v1250 = vunpack.c.h.b16 %v581
        %v1251 = vunpack.c.l.b16 %v582
        %v1252 = vunpack.c.h.b16 %v582
        %v1253 = vunpack.c.l.b16 %v583
        %v1254 = vunpack.c.h.b16 %v583
        %v1255 = vunpack.c.l.b16 %v584
        %v1256 = vunpack.c.h.b16 %v584
        %v1257 = vunpack.c.l.b16 %v585
        %v1258 = vunpack.c.h.b16 %v585
        %v1259 = vunpack.c.l.b16 %v586
        %v1260 = vunpack.c.h.b16 %v586
        %v1261 = vunpack.c.l.b16 %v587
        %v1262 = vunpack.c.h.b16 %v587
        %v1263 = vunpack.c.l.b16 %v588
        %v1264 = vunpack.c.h.b16 %v588
        %v1265 = vunpack.c.l.b16 %v589
        %v1266 = vunpack.c.h.b16 %v589
        %v1267 = vunpack.c.l.b16 %v590
        %v1268 = vunpack.c.h.b16 %v590
        %v1269 = vunpack.c.l.b16 %v591
        %v1270 = vunpack.c.h.b16 %v591
        %v1271 = vunpack.c.l.b16 %v592
        %v1272 = vunpack.c.h.b16 %v592
        %v1273 = vunpack.c.l.b16 %v593
        %v1274 = vunpack.c.h.b16 %v593
        %v1275 = vunpack.c.l.b16 %v594
        %v1276 = vunpack.c.h.b16 %v594
        %v1277 = vunpack.c.l.b16 %v595
        %v1278 = vunpack.c.h.b16 %v595
        %v1279 = vunpack.c.l.b16 %v596
        %v1280 = vunpack.c.h.b16 %v596
        %v1281 = vunpack.c.l.b16 %v597
        %v1282 = vunpack.c.h.b16 %v597
        %v1283 = vunpack.c.l.b16 %v598
        %v1284 = vunpack.c.h.b16 %v598
        %v1285 = vunpack.c.l.b16 %v599
        %v1286 = vunpack.c.h.b16 %v599
        %v1287 = vunpack.c.l.b16 %v600
        %v1288 = vunpack.c.h.b16 %v600
        %v1289 = vunpack.c.l.b16 %v601
        %v1290 = vunpack.c.h.b16 %v601
        %v1291 = vunpack.c.l.b16 %v602
        %v1292 = vunpack.c.h.b16 %v602
        %v1293 = vunpack.c.l.b16 %v603
        %v1294 = vunpack.c.h.b16 %v603
        %v1295 = vunpack.c.l.b16 %v604
        %v1296 = vunpack.c.h.b16 %v604
        %v1297 = vunpack.c.l.b16 %v605
        %v1298 = vunpack.c.h.b16 %v605
        %v1299 = vunpack.c.l.b16 %v606
        %v1300 = vunpack.c.h.b16 %v606
        %v1301 = vunpack.c.l.b16 %v607
        %v1302 = vunpack.c.h.b16 %v607
        %v1303 = vunpack.c.l.b16 %v608
        %v1304 = vunpack.c.h.b16 %v608
        %v1305 = vunpack.c.l.b16 %v609
        %v1306 = vunpack.c.h.b16 %v609
        %v1307 = vunpack.c.l.b16 %v610
        %v1308 = vunpack.c.h.b16 %v610
        %v1309 = vunpack.c.l.b16 %v611
        %v1310 = vunpack.c.h.b16 %v611
        %v1311 = vunpack.c.l.b16 %v612
        %v1312 = vunpack.c.h.b16 %v612
        %v1313 = vunpack.c.l.b16 %v613
        %v1314 = vunpack.c.h.b16 %v613
        %v1315 = vunpack.c.l.b16 %v614
        %v1316 = vunpack.c.h.b16 %v614
        %v1317 = vunpack.c.l.b16 %v615
        %v1318 = vunpack.c.h.b16 %v615
        %v1319 = vunpack.c.l.b16 %v616
        %v1320 = vunpack.c.h.b16 %v616
        %v1321 = vunpack.c.l.b16 %v617
        %v1322 = vunpack.c.h.b16 %v617
        %v1323 = vunpack.c.l.b16 %v618
        %v1324 = vunpack.c.h.b16 %v618
        %v1325 = vunpack.c.l.b16 %v619
        %v1326 = vunpack.c.h.b16 %v619
        %v1327 = vunpack.c.l.b16 %v620
        %v1328 = vunpack.c.h.b16 %v620
        %v1329 = vunpack.c.l.b16 %v621
        %v1330 = vunpack.c.h.b16 %v621
        %v1331 = vunpack.c.l.b16 %v622
        %v1332 = vunpack.c.h.b16 %v622
        %v1333 = vunpack.c.l.b16 %v623
        %v1334 = vunpack.c.h.b16 %v623
        %v1335 = vunpack.c.l.b16 %v624
        %v1336 = vunpack.c.h.b16 %v624
        %v1337 = vunpack.c.l.b16 %v625
        %v1338 = vunpack.c.h.b16 %v625
        %v1339 = vunpack.c.l.b16 %v626
        %v1340 = vunpack.c.h.b16 %v626
        %v1341 = vunpack.c.l.b16 %v627
        %v1342 = vunpack.c.h.b16 %v627
        %v1343 = vunpack.c.l.b16 %v628
        %v1344 = vunpack.c.h.b16 %v628
        %v1345 = vunpack.c.l.b16 %v629
        %v1346 = vunpack.c.h.b16 %v629
        %v1347 = vunpack.c.l.b16 %v630
        %v1348 = vunpack.c.h.b16 %v630
        %v1349 = vunpack.c.l.b16 %v631
        %v1350 = vunpack.c.h.b16 %v631
        %v1351 = vunpack.c.l.b16 %v632
        %v1352 = vunpack.c.h.b16 %v632
        %v1353 = vunpack.c.l.b16 %v633
        %v1354 = vunpack.c.h.b16 %v633
        %v1355 = vunpack.c.l.b16 %v634
        %v1356 = vunpack.c.h.b16 %v634
        %v1357 = vunpack.c.l.b16 %v635
        %v1358 = vunpack.c.h.b16 %v635
        %v1359 = vunpack.c.l.b16 %v636
        %v1360 = vunpack.c.h.b16 %v636
        %v1361 = vunpack.c.l.b16 %v637
        %v1362 = vunpack.c.h.b16 %v637
        %v1363 = vunpack.c.l.b16 %v638
        %v1364 = vunpack.c.h.b16 %v638
        %v1365 = vunpack.c.l.b16 %v639
        %v1366 = vunpack.c.h.b16 %v639
        %v1367 = vunpack.c.l.b16 %v640
        %v1368 = vunpack.c.h.b16 %v640
        %v1369 = vunpack.c.l.b16 %v641
        %v1370 = vunpack.c.h.b16 %v641
        %v1371 = vunpack.c.l.b16 %v642
        %v1372 = vunpack.c.h.b16 %v642
        %v1373 = vunpack.c.l.b16 %v643
        %v1374 = vunpack.c.h.b16 %v643
        %v1375 = vunpack.c.l.b16 %v644
        %v1376 = vunpack.c.h.b16 %v644
        %v1377 = vunpack.c.l.b16 %v645
        %v1378 = vunpack.c.h.b16 %v645
        %v1379 = vunpack.c.l.b16 %v646
        %v1380 = vunpack.c.h.b16 %v646
        %v1381 = vunpack.c.l.b16 %v647
        %v1382 = vunpack.c.h.b16 %v647
        %v1383 = vunpack.c.l.b16 %v648
        %v1384 = vunpack.c.h.b16 %v648
        %v1385 = vunpack.c.l.b16 %v649
        %v1386 = vunpack.c.h.b16 %v649
        %v1387 = vunpack.c.l.b16 %v650
        %v1388 = vunpack.c.h.b16 %v650
        %v1389 = vunpack.c.l.b16 %v651
        %v1390 = vunpack.c.h.b16 %v651
        %v1391 = vunpack.c.l.b16 %v652
        %v1392 = vunpack.c.h.b16 %v652
        %v1393 = vunpack.c.l.b16 %v653
        %v1394 = vunpack.c.h.b16 %v653
        %v1395 = vunpack.c.l.b16 %v654
        %v1396 = vunpack.c.h.b16 %v654
        %v1397 = vunpack.c.l.b16 %v655
        %v1398 = vunpack.c.h.b16 %v655
        %v1399 = vunpack.c.l.b16 %v656
        %v1400 = vunpack.c.h.b16 %v656
        %v1401 = vunpack.c.l.b16 %v657
        %v1402 = vunpack.c.h.b16 %v657
        %v1403 = vunpack.c.l.b16 %v658
        %v1404 = vunpack.c.h.b16 %v658
        %v1405 = vunpack.c.l.b16 %v659
        %v1406 = vunpack.c.h.b16 %v659
        %v1407 = vunpack.c.l.b16 %v660
        %v1408 = vunpack.c.h.b16 %v660
        %v1409 = vunpack.c.l.b16 %v661
        %v1410 = vunpack.c.h.b16 %v661
        %v1411 = vunpack.c.l.b16 %v662
        %v1412 = vunpack.c.h.b16 %v662
        %v1413 = vunpack.c.l.b16 %v663
        %v1414 = vunpack.c.h.b16 %v663
        %v1415 = vunpack.c.l.b16 %v664
        %v1416 = vunpack.c.h.b16 %v664
        %v1417 = vunpack.c.l.b16 %v665
        %v1418 = vunpack.c.h.b16 %v665
        %v1419 = vunpack.c.l.b16 %v666
        %v1420 = vunpack.c.h.b16 %v666
        %v1421 = vunpack.c.l.b16 %v667
        %v1422 = vunpack.c.h.b16 %v667
        %v1423 = vunpack.c.l.b16 %v668
        %v1424 = vunpack.c.h.b16 %v668
        %v1425 = vunpack.c.l.b16 %v669
        %v1426 = vunpack.c.h.b16 %v669
        %v1427 = vunpack.c.l.b16 %v670
        %v1428 = vunpack.c.h.b16 %v670
        %v1429 = vunpack.c.l.b16 %v671
        %v1430 = vunpack.c.h.b16 %v671
        %v1431 = vunpack.c.l.b16 %v672
        %v1432 = vunpack.c.h.b16 %v672
        %v1433 = vunpack.c.l.b16 %v673
        %v1434 = vunpack.c.h.b16 %v673
        %v1435 = vunpack.c.l.b16 %v674
        %v1436 = vunpack.c.h.b16 %v674
        %v1437 = vunpack.c.l.b16 %v675
        %v1438 = vunpack.c.h.b16 %v675
        %v1439 = vunpack.c.l.b16 %v676
        %v1440 = vunpack.c.h.b16 %v676
        %v1441 = vunpack.c.l.b16 %v677
        %v1442 = vunpack.c.h.b16 %v677
        %v1443 = vunpack.c.l.b16 %v678
        %v1444 = vunpack.c.h.b16 %v678
        %v1445 = vunpack.c.l.b16 %v679
        %v1446 = vunpack.c.h.b16 %v679
        %v1447 = vunpack.c.l.b16 %v680
        %v1448 = vunpack.c.h.b16 %v680
        %v1449 = vunpack.c.l.b16 %v681
        %v1450 = vunpack.c.h.b16 %v681
        %v1451 = vunpack.c.l.b16 %v682
        %v1452 = vunpack.c.h.b16 %v682
        %v1453 = vunpack.c.l.b16 %v683
        %v1454 = vunpack.c.h.b16 %v683
        %v1455 = vunpack.c.l.b16 %v684
        %v1456 = vunpack.c.h.b16 %v684
        %v1457 = vunpack.c.l.b16 %v685
        %v1458 = vunpack.c.h.b16 %v685
        %v1459 = vunpack.c.l.b16 %v686
        %v1460 = vunpack.c.h.b16 %v686
        %v1461 = vunpack.c.l.b16 %v687
        %v1462 = vunpack.c.h.b16 %v687
        %v1463 = vunpack.c.l.b16 %v688
        %v1464 = vunpack.c.h.b16 %v688
        %v1465 = vunpack.c.l.b16 %v689
        %v1466 = vunpack.c.h.b16 %v689
        %v1467 = vunpack.c.l.b16 %v690
        %v1468 = vunpack.c.h.b16 %v690
        %v1469 = vunpack.c.l.b16 %v691
        %v1470 = vunpack.c.h.b16 %v691
        %v1471 = vunpack.c.l.b16 %v692
        %v1472 = vunpack.c.h.b16 %v692
        %v1473 = vunpack.c.l.b16 %v693
        %v1474 = vunpack.c.h.b16 %v693
        %v1475 = vunpack.c.l.b16 %v694
        %v1476 = vunpack.c.h.b16 %v694
        %v1477 = vunpack.c.l.b16 %v695
        %v1478 = vunpack.c.h.b16 %v695
        %v1479 = vunpack.c.l.b16 %v696
        %v1480 = vunpack.c.h.b16 %v696
        %v1481 = vunpack.c.l.b16 %v697
        %v1482 = vunpack.c.h.b16 %v697
        %v1483 = vunpack.c.l.b16 %v698
        %v1484 = vunpack.c.h.b16 %v698
        %v1485 = vunpack.c.l.b16 %v699
        %v1486 = vunpack.c.h.b16 %v699
        %v1487 = vunpack.c.l.b16 %v700
        %v1488 = vunpack.c.h.b16 %v700
        %v1489 = vunpack.c.l.b16 %v701
        %v1490 = vunpack.c.h.b16 %v701
        %v1491 = vunpack.c.l.b16 %v702
        %v1492 = vunpack.c.h.b16 %v702
        %v1493 = vunpack.c.l.b16 %v703
        %v1494 = vunpack.c.h.b16 %v703
        %v1495 = vunpack.c.l.b16 %v704
        %v1496 = vunpack.c.h.b16 %v704
        %v1497 = vunpack.c.l.b16 %v705
        %v1498 = vunpack.c.h.b16 %v705
        %v1499 = vunpack.c.l.b16 %v706
        %v1500 = vunpack.c.h.b16 %v706
        %v1501 = vunpack.c.l.b16 %v707
        %v1502 = vunpack.c.h.b16 %v707
        %v1503 = vunpack.c.l.b16 %v708
        %v1504 = vunpack.c.h.b16 %v708
        %v1505 = vunpack.c.l.b16 %v709
        %v1506 = vunpack.c.h.b16 %v709
        %v1507 = vunpack.c.l.b16 %v710
        %v1508 = vunpack.c.h.b16 %v710
        %v1509 = vunpack.c.l.b16 %v711
        %v1510 = vunpack.c.h.b16 %v711
        %v1511 = vunpack.c.l.b16 %v712
        %v1512 = vunpack.c.h.b16 %v712
        %v1513 = vunpack.c.l.b16 %v713
        %v1514 = vunpack.c.h.b16 %v713
        %v1515 = vunpack.c.l.b16 %v714
        %v1516 = vunpack.c.h.b16 %v714
        %v1517 = vunpack.c.l.b16 %v715
        %v1518 = vunpack.c.h.b16 %v715
        %v1519 = vunpack.c.l.b16 %v716
        %v1520 = vunpack.c.h.b16 %v716
        %v1521 = vunpack.c.l.b16 %v717
        %v1522 = vunpack.c.h.b16 %v717
        %v1523 = vunpack.c.l.b16 %v718
        %v1524 = vunpack.c.h.b16 %v718
        %v1525 = vunpack.c.l.b16 %v719
        %v1526 = vunpack.c.h.b16 %v719
        %v1527 = vunpack.c.l.b16 %v720
        %v1528 = vunpack.c.h.b16 %v720
        %v1529 = vunpack.c.l.b16 %v721
        %v1530 = vunpack.c.h.b16 %v721
        %v1531 = vunpack.c.l.b16 %v722
        %v1532 = vunpack.c.h.b16 %v722
        %v1533 = vunpack.c.l.b16 %v723
        %v1534 = vunpack.c.h.b16 %v723
        %v1535 = vunpack.c.l.b16 %v724
        %v1536 = vunpack.c.h.b16 %v724
        %v1537 = vunpack.c.l.b16 %v725
        %v1538 = vunpack.c.h.b16 %v725
        %v1539 = vunpack.c.l.b16 %v726
        %v1540 = vunpack.c.h.b16 %v726
        %v1541 = vunpack.c.l.b16 %v727
        %v1542 = vunpack.c.h.b16 %v727
        %v1543 = vunpack.c.l.b16 %v728
        %v1544 = vunpack.c.h.b16 %v728
        %v1545 = vunpack.c.l.b16 %v729
        %v1546 = vunpack.c.h.b16 %v729
        %v1547 = vunpack.c.l.b16 %v730
        %v1548 = vunpack.c.h.b16 %v730
        %v1549 = vunpack.c.l.b16 %v731
        %v1550 = vunpack.c.h.b16 %v731
        %v1551 = vunpack.c.l.b16 %v732
        %v1552 = vunpack.c.h.b16 %v732
        %v1553 = vunpack.c.l.b16 %v733
        %v1554 = vunpack.c.h.b16 %v733
        %v1555 = vunpack.c.l.b16 %v734
        %v1556 = vunpack.c.h.b16 %v734
        %v1557 = vunpack.c.l.b16 %v735
        %v1558 = vunpack.c.h.b16 %v735
        %v1559 = vunpack.c.l.b16 %v736
        %v1560 = vunpack.c.h.b16 %v736
        %v1561 = vunpack.c.l.b16 %v737
        %v1562 = vunpack.c.h.b16 %v737
        %v1563 = vunpack.c.l.b16 %v738
        %v1564 = vunpack.c.h.b16 %v738
        %v1565 = vunpack.c.l.b16 %v739
        %v1566 = vunpack.c.h.b16 %v739
        %v1567 = vunpack.c.l.b16 %v740
        %v1568 = vunpack.c.h.b16 %v740
        %v1569 = vunpack.c.l.b16 %v741
        %v1570 = vunpack.c.h.b16 %v741
        %v1571 = vunpack.c.l.b16 %v742
        %v1572 = vunpack.c.h.b16 %v742
        %v1573 = vunpack.c.l.b16 %v743
        %v1574 = vunpack.c.h.b16 %v743
        %v1575 = vunpack.c.l.b16 %v744
        %v1576 = vunpack.c.h.b16 %v744
        %v1577 = vunpack.c.l.b16 %v745
        %v1578 = vunpack.c.h.b16 %v745
        %v1579 = vunpack.c.l.b16 %v746
        %v1580 = vunpack.c.h.b16 %v746
        %v1581 = vunpack.c.l.b16 %v747
        %v1582 = vunpack.c.h.b16 %v747
        %v1583 = vunpack.c.l.b16 %v748
        %v1584 = vunpack.c.h.b16 %v748
        %v1585 = vunpack.c.l.b16 %v749
        %v1586 = vunpack.c.h.b16 %v749
        %v1587 = vunpack.c.l.b16 %v750
        %v1588 = vunpack.c.h.b16 %v750
        %v1589 = vunpack.c.l.b16 %v751
        %v1590 = vunpack.c.h.b16 %v751
        %v1591 = vunpack.c.l.b16 %v752
        %v1592 = vunpack.c.h.b16 %v752
        %v1593 = vunpack.c.l.b16 %v753
        %v1594 = vunpack.c.h.b16 %v753
        %v1595 = vunpack.c.l.b16 %v754
        %v1596 = vunpack.c.h.b16 %v754
        %v1597 = vunpack.c.l.b16 %v755
        %v1598 = vunpack.c.h.b16 %v755
        %v1599 = vunpack.c.l.b16 %v756
        %v1600 = vunpack.c.h.b16 %v756
        %v1601 = vunpack.c.l.b16 %v757
        %v1602 = vunpack.c.h.b16 %v757
        %v1603 = vunpack.c.l.b16 %v758
        %v1604 = vunpack.c.h.b16 %v758
        %v1605 = vunpack.c.l.b16 %v759
        %v1606 = vunpack.c.h.b16 %v759
        %v1607 = vunpack.c.l.b16 %v760
        %v1608 = vunpack.c.h.b16 %v760
        %v1609 = vunpack.c.l.b16 %v761
        %v1610 = vunpack.c.h.b16 %v761
        %v1611 = vunpack.c.l.b16 %v762
        %v1612 = vunpack.c.h.b16 %v762
        %v1613 = vunpack.c.l.b16 %v763
        %v1614 = vunpack.c.h.b16 %v763
        %v1615 = vunpack.c.l.b16 %v764
        %v1616 = vunpack.c.h.b16 %v764
        %v1617 = vunpack.c.l.b16 %v765
        %v1618 = vunpack.c.h.b16 %v765
        %v1619 = vunpack.c.l.b16 %v766
        %v1620 = vunpack.c.h.b16 %v766
        %v1621 = vunpack.c.l.b16 %v767
        %v1622 = vunpack.c.h.b16 %v767
        %v1623 = vunpack.c.l.b16 %v768
        %v1624 = vunpack.c.h.b16 %v768
        %v1625 = vunpack.c.l.b16 %v769
        %v1626 = vunpack.c.h.b16 %v769
        %v1627 = vunpack.c.l.b16 %v770
        %v1628 = vunpack.c.h.b16 %v770
        %v1629 = vunpack.c.l.b16 %v771
        %v1630 = vunpack.c.h.b16 %v771
        %v1631 = vunpack.c.l.b16 %v772
        %v1632 = vunpack.c.h.b16 %v772
        %v1633 = vunpack.c.l.b16 %v773
        %v1634 = vunpack.c.h.b16 %v773
        %v1635 = vunpack.c.l.b16 %v774
        %v1636 = vunpack.c.h.b16 %v774
        %v1637 = vunpack.c.l.b16 %v775
        %v1638 = vunpack.c.h.b16 %v775
        %v1639 = vunpack.c.l.b16 %v776
        %v1640 = vunpack.c.h.b16 %v776
        %v1641 = vunpack.c.l.b16 %v777
        %v1642 = vunpack.c.h.b16 %v777
        %v1643 = vunpack.c.l.b16 %v778
        %v1644 = vunpack.c.h.b16 %v778
        %v1645 = vunpack.c.l.b16 %v779
        %v1646 = vunpack.c.h.b16 %v779
        %v1647 = vunpack.c.l.b16 %v780
        %v1648 = vunpack.c.h.b16 %v780
        %v1649 = vunpack.c.l.b16 %v781
        %v1650 = vunpack.c.h.b16 %v781
        %v1651 = vunpack.c.l.b16 %v782
        %v1652 = vunpack.c.h.b16 %v782
        %v1653 = vpack.c.b16 %v1145, %v1141
        %v1654 = vpack.c.b16 %v1146, %v1142
        %v1655 = vpack.c.b16 %v1147, %v1143
        %v1656 = vpack.c.b16 %v1148, %v1144
        %v1657 = vpack.c.b16 %v1153, %v1149
        %v1658 = vpack.c.b16 %v1154, %v1150
        %v1659 = vpack.c.b16 %v1155, %v1151
        %v1660 = vpack.c.b16 %v1156, %v1152
        %v1661 = vpack.c.b16 %v1161, %v1157
        %v1662 = vpack.c.b16 %v1162, %v1158
        %v1663 = vpack.c.b16 %v1163, %v1159
        %v1664 = vpack.c.b16 %v1164, %v1160
        %v1665 = vpack.c.b16 %v1169, %v1165
        %v1666 = vpack.c.b16 %v1170, %v1166
        %v1667 = vpack.c.b16 %v1171, %v1167
        %v1668 = vpack.c.b16 %v1172, %v1168
        %v1669 = vpack.c.b16 %v1177, %v1173
        %v1670 = vpack.c.b16 %v1178, %v1174
        %v1671 = vpack.c.b16 %v1179, %v1175
        %v1672 = vpack.c.b16 %v1180, %v1176
        %v1673 = vpack.c.b16 %v1185, %v1181
        %v1674 = vpack.c.b16 %v1186, %v1182
        %v1675 = vpack.c.b16 %v1187, %v1183
        %v1676 = vpack.c.b16 %v1188, %v1184
        %v1677 = vpack.c.b16 %v1193, %v1189
        %v1678 = vpack.c.b16 %v1194, %v1190
        %v1679 = vpack.c.b16 %v1195, %v1191
        %v1680 = vpack.c.b16 %v1196, %v1192
        %v1681 = vpack.c.b16 %v1201, %v1197
        %v1682 = vpack.c.b16 %v1202, %v1198
        %v1683 = vpack.c.b16 %v1203, %v1199
        %v1684 = vpack.c.b16 %v1204, %v1200
        %v1685 = vpack.c.b16 %v1209, %v1205
        %v1686 = vpack.c.b16 %v1210, %v1206
        %v1687 = vpack.c.b16 %v1211, %v1207
        %v1688 = vpack.c.b16 %v1212, %v1208
        %v1689 = vpack.c.b16 %v1217, %v1213
        %v1690 = vpack.c.b16 %v1218, %v1214
        %v1691 = vpack.c.b16 %v1219, %v1215
        %v1692 = vpack.c.b16 %v1220, %v1216
        %v1693 = vpack.c.b16 %v1225, %v1221
        %v1694 = vpack.c.b16 %v1226, %v1222
        %v1695 = vpack.c.b16 %v1227, %v1223
        %v1696 = vpack.c.b16 %v1228, %v1224
        %v1697 = vpack.c.b16 %v1233, %v1229
        %v1698 = vpack.c.b16 %v1234, %v1230
        %v1699 = vpack.c.b16 %v1235, %v1231
        %v1700 = vpack.c.b16 %v1236, %v1232
        %v1701 = vpack.c.b16 %v1241, %v1237
        %v1702 = vpack.c.b16 %v1242, %v1238
        %v1703 = vpack.c.b16 %v1243, %v1239
        %v1704 = vpack.c.b16 %v1244, %v1240
        %v1705 = vpack.c.b16 %v1249, %v1245
        %v1706 = vpack.c.b16 %v1250, %v1246
        %v1707 = vpack.c.b16 %v1251, %v1247
        %v1708 = vpack.c.b16 %v1252, %v1248
        %v1709 = vpack.c.b16 %v1257, %v1253
        %v1710 = vpack.c.b16 %v1258, %v1254
        %v1711 = vpack.c.b16 %v1259, %v1255
        %v1712 = vpack.c.b16 %v1260, %v1256
        %v1713 = vpack.c.b16 %v1265, %v1261
        %v1714 = vpack.c.b16 %v1266, %v1262
        %v1715 = vpack.c.b16 %v1267, %v1263
        %v1716 = vpack.c.b16 %v1268, %v1264
        %v1717 = vpack.c.b16 %v1273, %v1269
        %v1718 = vpack.c.b16 %v1274, %v1270
        %v1719 = vpack.c.b16 %v1275, %v1271
        %v1720 = vpack.c.b16 %v1276, %v1272
        %v1721 = vpack.c.b16 %v1281, %v1277
        %v1722 = vpack.c.b16 %v1282, %v1278
        %v1723 = vpack.c.b16 %v1283, %v1279
        %v1724 = vpack.c.b16 %v1284, %v1280
        %v1725 = vpack.c.b16 %v1289, %v1285
        %v1726 = vpack.c.b16 %v1290, %v1286
        %v1727 = vpack.c.b16 %v1291, %v1287
        %v1728 = vpack.c.b16 %v1292, %v1288
        %v1729 = vpack.c.b16 %v1297, %v1293
        %v1730 = vpack.c.b16 %v1298, %v1294
        %v1731 = vpack.c.b16 %v1299, %v1295
        %v1732 = vpack.c.b16 %v1300, %v1296
        %v1733 = vpack.c.b16 %v1305, %v1301
        %v1734 = vpack.c.b16 %v1306, %v1302
        %v1735 = vpack.c.b16 %v1307, %v1303
        %v1736 = vpack.c.b16 %v1308, %v1304
        %v1737 = vpack.c.b16 %v1313, %v1309
        %v1738 = vpack.c.b16 %v1314, %v1310
        %v1739 = vpack.c.b16 %v1315, %v1311
        %v1740 = vpack.c.b16 %v1316, %v1312
        %v1741 = vpack.c.b16 %v1321, %v1317
        %v1742 = vpack.c.b16 %v1322, %v1318
        %v1743 = vpack.c.b16 %v1323, %v1319
        %v1744 = vpack.c.b16 %v1324, %v1320
        %v1745 = vpack.c.b16 %v1329, %v1325
        %v1746 = vpack.c.b16 %v1330, %v1326
        %v1747 = vpack.c.b16 %v1331, %v1327
        %v1748 = vpack.c.b16 %v1332, %v1328
        %v1749 = vpack.c.b16 %v1337, %v1333
        %v1750 = vpack.c.b16 %v1338, %v1334
        %v1751 = vpack.c.b16 %v1339, %v1335
        %v1752 = vpack.c.b16 %v1340, %v1336
        %v1753 = vpack.c.b16 %v1345, %v1341
        %v1754 = vpack.c.b16 %v1346, %v1342
        %v1755 = vpack.c.b16 %v1347, %v1343
        %v1756 = vpack.c.b16 %v1348, %v1344
        %v1757 = vpack.c.b16 %v1353, %v1349
        %v1758 = vpack.c.b16 %v1354, %v1350
        %v1759 = vpack.c.b16 %v1355, %v1351
        %v1760 = vpack.c.b16 %v1356, %v1352
        %v1761 = vpack.c.b16 %v1361, %v1357
        %v1762 = vpack.c.b16 %v1362, %v1358
        %v1763 = vpack.c.b16 %v1363, %v1359
        %v1764 = vpack.c.b16 %v1364, %v1360
        %v1765 = vpack.c.b16 %v1369, %v1365
        %v1766 = vpack.c.b16 %v1370, %v1366
        %v1767 = vpack.c.b16 %v1371, %v1367
        %v1768 = vpack.c.b16 %v1372, %v1368
        %v1769 = vpack.c.b16 %v1377, %v1373
        %v1770 = vpack.c.b16 %v1378, %v1374
        %v1771 = vpack.c.b16 %v1379, %v1375
        %v1772 = vpack.c.b16 %v1380, %v1376
        %v1773 = vpack.c.b16 %v1385, %v1381
        %v1774 = vpack.c.b16 %v1386, %v1382
        %v1775 = vpack.c.b16 %v1387, %v1383
        %v1776 = vpack.c.b16 %v1388, %v1384
        %v1777 = vpack.c.b16 %v1393, %v1389
        %v1778 = vpack.c.b16 %v1394, %v1390
        %v1779 = vpack.c.b16 %v1395, %v1391
        %v1780 = vpack.c.b16 %v1396, %v1392
        %v1781 = vpack.c.b16 %v1401, %v1397
        %v1782 = vpack.c.b16 %v1402, %v1398
        %v1783 = vpack.c.b16 %v1403, %v1399
        %v1784 = vpack.c.b16 %v1404, %v1400
        %v1785 = vpack.c.b16 %v1409, %v1405
        %v1786 = vpack.c.b16 %v1410, %v1406
        %v1787 = vpack.c.b16 %v1411, %v1407
        %v1788 = vpack.c.b16 %v1412, %v1408
        %v1789 = vpack.c.b16 %v1417, %v1413
        %v1790 = vpack.c.b16 %v1418, %v1414
        %v1791 = vpack.c.b16 %v1419, %v1415
        %v1792 = vpack.c.b16 %v1420, %v1416
        %v1793 = vpack.c.b16 %v1425, %v1421
        %v1794 = vpack.c.b16 %v1426, %v1422
        %v1795 = vpack.c.b16 %v1427, %v1423
        %v1796 = vpack.c.b16 %v1428, %v1424
        %v1797 = vpack.c.b16 %v1433, %v1429
        %v1798 = vpack.c.b16 %v1434, %v1430
        %v1799 = vpack.c.b16 %v1435, %v1431
        %v1800 = vpack.c.b16 %v1436, %v1432
        %v1801 = vpack.c.b16 %v1441, %v1437
        %v1802 = vpack.c.b16 %v1442, %v1438
        %v1803 = vpack.c.b16 %v1443, %v1439
        %v1804 = vpack.c.b16 %v1444, %v1440
        %v1805 = vpack.c.b16 %v1449, %v1445
        %v1806 = vpack.c.b16 %v1450, %v1446
        %v1807 = vpack.c.b16 %v1451, %v1447
        %v1808 = vpack.c.b16 %v1452, %v1448
        %v1809 = vpack.c.b16 %v1457, %v1453
        %v1810 = vpack.c.b16 %v1458, %v1454
        %v1811 = vpack.c.b16 %v1459, %v1455
        %v1812 = vpack.c.b16 %v1460, %v1456
        %v1813 = vpack.c.b16 %v1465, %v1461
        %v1814 = vpack.c.b16 %v1466, %v1462
        %v1815 = vpack.c.b16 %v1467, %v1463
        %v1816 = vpack.c.b16 %v1468, %v1464
        %v1817 = vpack.c.b16 %v1473, %v1469
        %v1818 = vpack.c.b16 %v1474, %v1470
        %v1819 = vpack.c.b16 %v1475, %v1471
        %v1820 = vpack.c.b16 %v1476, %v1472
        %v1821 = vpack.c.b16 %v1481, %v1477
        %v1822 = vpack.c.b16 %v1482, %v1478
        %v1823 = vpack.c.b16 %v1483, %v1479
        %v1824 = vpack.c.b16 %v1484, %v1480
        %v1825 = vpack.c.b16 %v1489, %v1485
        %v1826 = vpack.c.b16 %v1490, %v1486
        %v1827 = vpack.c.b16 %v1491, %v1487
        %v1828 = vpack.c.b16 %v1492, %v1488
        %v1829 = vpack.c.b16 %v1497, %v1493
        %v1830 = vpack.c.b16 %v1498, %v1494
        %v1831 = vpack.c.b16 %v1499, %v1495
        %v1832 = vpack.c.b16 %v1500, %v1496
        %v1833 = vpack.c.b16 %v1505, %v1501
        %v1834 = vpack.c.b16 %v1506, %v1502
        %v1835 = vpack.c.b16 %v1507, %v1503
        %v1836 = vpack.c.b16 %v1508, %v1504
        %v1837 = vpack.c.b16 %v1513, %v1509
        %v1838 = vpack.c.b16 %v1514, %v1510
        %v1839 = vpack.c.b16 %v1515, %v1511
        %v1840 = vpack.c.b16 %v1516, %v1512
        %v1841 = vpack.c.b16 %v1521, %v1517
        %v1842 = vpack.c.b16 %v1522, %v1518
        %v1843 = vpack.c.b16 %v1523, %v1519
        %v1844 = vpack.c.b16 %v1524, %v1520
        %v1845 = vpack.c.b16 %v1529, %v1525
        %v1846 = vpack.c.b16 %v1530, %v1526
        %v1847 = vpack.c.b16 %v1531, %v1527
        %v1848 = vpack.c.b16 %v1532, %v1528
        %v1849 = vpack.c.b16 %v1537, %v1533
        %v1850 = vpack.c.b16 %v1538, %v1534
        %v1851 = vpack.c.b16 %v1539, %v1535
        %v1852 = vpack.c.b16 %v1540, %v1536
        %v1853 = vpack.c.b16 %v1545, %v1541
        %v1854 = vpack.c.b16 %v1546, %v1542
        %v1855 = vpack.c.b16 %v1547, %v1543
        %v1856 = vpack.c.b16 %v1548, %v1544
        %v1857 = vpack.c.b16 %v1553, %v1549
        %v1858 = vpack.c.b16 %v1554, %v1550
        %v1859 = vpack.c.b16 %v1555, %v1551
        %v1860 = vpack.c.b16 %v1556, %v1552
        %v1861 = vpack.c.b16 %v1561, %v1557
        %v1862 = vpack.c.b16 %v1562, %v1558
        %v1863 = vpack.c.b16 %v1563, %v1559
        %v1864 = vpack.c.b16 %v1564, %v1560
        %v1865 = vpack.c.b16 %v1569, %v1565
        %v1866 = vpack.c.b16 %v1570, %v1566
        %v1867 = vpack.c.b16 %v1571, %v1567
        %v1868 = vpack.c.b16 %v1572, %v1568
        %v1869 = vpack.c.b16 %v1577, %v1573
        %v1870 = vpack.c.b16 %v1578, %v1574
        %v1871 = vpack.c.b16 %v1579, %v1575
        %v1872 = vpack.c.b16 %v1580, %v1576
        %v1873 = vpack.c.b16 %v1585, %v1581
        %v1874 = vpack.c.b16 %v1586, %v1582
        %v1875 = vpack.c.b16 %v1587, %v1583
        %v1876 = vpack.c.b16 %v1588, %v1584
        %v1877 = vpack.c.b16 %v1593, %v1589
        %v1878 = vpack.c.b16 %v1594, %v1590
        %v1879 = vpack.c.b16 %v1595, %v1591
        %v1880 = vpack.c.b16 %v1596, %v1592
        %v1881 = vpack.c.b16 %v1601, %v1597
        %v1882 = vpack.c.b16 %v1602, %v1598
        %v1883 = vpack.c.b16 %v1603, %v1599
        %v1884 = vpack.c.b16 %v1604, %v1600
        %v1885 = vpack.c.b16 %v1609, %v1605
        %v1886 = vpack.c.b16 %v1610, %v1606
        %v1887 = vpack.c.b16 %v1611, %v1607
        %v1888 = vpack.c.b16 %v1612, %v1608
        %v1889 = vpack.c.b16 %v1617, %v1613
        %v1890 = vpack.c.b16 %v1618, %v1614
        %v1891 = vpack.c.b16 %v1619, %v1615
        %v1892 = vpack.c.b16 %v1620, %v1616
        %v1893 = vpack.c.b16 %v1625, %v1621
        %v1894 = vpack.c.b16 %v1626, %v1622
        %v1895 = vpack.c.b16 %v1627, %v1623
        %v1896 = vpack.c.b16 %v1628, %v1624
        %v1897 = vpack.c.b16 %v1633, %v1629
        %v1898 = vpack.c.b16 %v1634, %v1630
        %v1899 = vpack.c.b16 %v1635, %v1631
        %v1900 = vpack.c.b16 %v1636, %v1632
        %v1901 = vpack.c.b16 %v1641, %v1637
        %v1902 = vpack.c.b16 %v1642, %v1638
        %v1903 = vpack.c.b16 %v1643, %v1639
        %v1904 = vpack.c.b16 %v1644, %v1640
        %v1905 = vpack.c.b16 %v1649, %v1645
        %v1906 = vpack.c.b16 %v1650, %v1646
        %v1907 = vpack.c.b16 %v1651, %v1647
        %v1908 = vpack.c.b16 %v1652, %v1648
        %2165 = vmatprep.subr.bf16.mxu0 %v1682
        %2166 = vmatpush1.bf16.msra.mxu0 %v1681
        %2167 = vmatprep.subr.bf16.mxu0 %v1678
        %2168 = vmatpush1.bf16.msra.mxu0 %v1677
        %2169 = vmatprep.subr.bf16.mxu0 %v1674
        %2170 = vmatpush1.bf16.msra.mxu0 %v1673
        %2171 = vmatprep.subr.bf16.mxu0 %v1670
        %2172 = vmatpush1.bf16.msra.mxu0 %v1669
        %2173 = vmatprep.subr.bf16.mxu0 %v1666
        %2174 = vmatpush1.bf16.msra.mxu0 %v1665
        %2175 = vmatprep.subr.bf16.mxu0 %v1662
        %2176 = vmatpush1.bf16.msra.mxu0 %v1661
        %2177 = vmatprep.subr.bf16.mxu0 %v1658
        %2178 = vmatpush1.bf16.msra.mxu0 %v1657
        %2179 = vmatprep.subr.bf16.mxu0 %v1654
        %2180 = vmatpush1.bf16.msra.mxu0 %v1653
        %2181 = vmatprep.subr.bf16.mxu0 %v1714
        %2182 = vmatpush2.bf16.msra.mxu0 %v1713
        %2183 = vmatprep.subr.bf16.mxu0 %v1710
        %2184 = vmatpush2.bf16.msra.mxu0 %v1709
        %2185 = vmatprep.subr.bf16.mxu0 %v1706
        %2186 = vmatpush2.bf16.msra.mxu0 %v1705
        %2187 = vmatprep.subr.bf16.mxu0 %v1702
        %2188 = vmatpush2.bf16.msra.mxu0 %v1701
        %2189 = vmatprep.subr.bf16.mxu0 %v1698
        %2190 = vmatpush2.bf16.msra.mxu0 %v1697
        %2191 = vmatprep.subr.bf16.mxu0 %v1694
        %2192 = vmatpush2.bf16.msra.mxu0 %v1693
        %2193 = vmatprep.subr.bf16.mxu0 %v1690
        %2194 = vmatpush2.bf16.msra.mxu0 %v1689
        %2195 = vmatprep.subr.bf16.mxu0 %v1686
        %2196 = vmatpush2.bf16.msra.mxu0 %v1685
        %2197 = vmatprep.mubr.bf16.mxu0 %v854
        %2198 = vmatmul.mubr.bf16.gmra.mxu0 %v853
        %v2199 = vpop.f32.mrf.mxu0
        %v2200 = vadd.f32 %v788, %v2199
        %v2201 = vpop.f32.mrf.mxu0
        %v2202 = vadd.f32 %v792, %v2201
        %v2203 = vpop.f32.mrf.mxu0
        %v2204 = vadd.f32 %v788, %v2203
        %v2205 = vpop.f32.mrf.mxu0
        %v2206 = vadd.f32 %v792, %v2205
        %2207 = vmatprep.mubr.bf16.mxu0 %v862
        %2208 = vmatmul.mubr.bf16.gmra.mxu0 %v861
        %v2209 = vpop.f32.mrf.mxu0
        %v2210 = vadd.f32 %v788, %v2209
        %v2211 = vpop.f32.mrf.mxu0
        %v2212 = vadd.f32 %v792, %v2211
        %v2213 = vpop.f32.mrf.mxu0
        %v2214 = vadd.f32 %v788, %v2213
        %v2215 = vpop.f32.mrf.mxu0
        %v2216 = vadd.f32 %v792, %v2215
        %2217 = vdwg.mxu0
        %2218 = vmatprep.subr.bf16.mxu0 %v1746
        %2219 = vmatpush1.bf16.msra.mxu0 %v1745
        %2220 = vmatprep.subr.bf16.mxu0 %v1742
        %2221 = vmatpush1.bf16.msra.mxu0 %v1741
        %2222 = vmatprep.subr.bf16.mxu0 %v1738
        %2223 = vmatpush1.bf16.msra.mxu0 %v1737
        %2224 = vmatprep.subr.bf16.mxu0 %v1734
        %2225 = vmatpush1.bf16.msra.mxu0 %v1733
        %2226 = vmatprep.subr.bf16.mxu0 %v1730
        %2227 = vmatpush1.bf16.msra.mxu0 %v1729
        %2228 = vmatprep.subr.bf16.mxu0 %v1726
        %2229 = vmatpush1.bf16.msra.mxu0 %v1725
        %2230 = vmatprep.subr.bf16.mxu0 %v1722
        %2231 = vmatpush1.bf16.msra.mxu0 %v1721
        %2232 = vmatprep.subr.bf16.mxu0 %v1718
        %2233 = vmatpush1.bf16.msra.mxu0 %v1717
        %2234 = vmatprep.subr.bf16.mxu0 %v1778
        %2235 = vmatpush2.bf16.msra.mxu0 %v1777
        %2236 = vmatprep.subr.bf16.mxu0 %v1774
        %2237 = vmatpush2.bf16.msra.mxu0 %v1773
        %2238 = vmatprep.subr.bf16.mxu0 %v1770
        %2239 = vmatpush2.bf16.msra.mxu0 %v1769
        %2240 = vmatprep.subr.bf16.mxu0 %v1766
        %2241 = vmatpush2.bf16.msra.mxu0 %v1765
        %2242 = vmatprep.subr.bf16.mxu0 %v1762
        %2243 = vmatpush2.bf16.msra.mxu0 %v1761
        %2244 = vmatprep.subr.bf16.mxu0 %v1758
        %2245 = vmatpush2.bf16.msra.mxu0 %v1757
        %2246 = vmatprep.subr.bf16.mxu0 %v1754
        %2247 = vmatpush2.bf16.msra.mxu0 %v1753
        %2248 = vmatprep.subr.bf16.mxu0 %v1750
        %2249 = vmatpush2.bf16.msra.mxu0 %v1749
        %2250 = vmatprep.mubr.bf16.mxu0 %v856
        %2251 = vmatmul.mubr.bf16.gmra.mxu0 %v855
        %v2252 = vpop.f32.mrf.mxu0
        %v2253 = vadd.f32 %v2200, %v2252
        %v2254 = vpop.f32.mrf.mxu0
        %v2255 = vadd.f32 %v2202, %v2254
        %v2256 = vpop.f32.mrf.mxu0
        %v2257 = vadd.f32 %v2204, %v2256
        %v2258 = vpop.f32.mrf.mxu0
        %v2259 = vadd.f32 %v2206, %v2258
        %2260 = vmatprep.mubr.bf16.mxu0 %v864
        %2261 = vmatmul.mubr.bf16.gmra.mxu0 %v863
        %v2262 = vpop.f32.mrf.mxu0
        %v2263 = vadd.f32 %v2210, %v2262
        %v2264 = vpop.f32.mrf.mxu0
        %v2265 = vadd.f32 %v2212, %v2264
        %v2266 = vpop.f32.mrf.mxu0
        %v2267 = vadd.f32 %v2214, %v2266
        %v2268 = vpop.f32.mrf.mxu0
        %v2269 = vadd.f32 %v2216, %v2268
        %2270 = vdwg.mxu0
        %2271 = vmatprep.subr.bf16.mxu0 %v1810
        %2272 = vmatpush1.bf16.msra.mxu0 %v1809
        %2273 = vmatprep.subr.bf16.mxu0 %v1806
        %2274 = vmatpush1.bf16.msra.mxu0 %v1805
        %2275 = vmatprep.subr.bf16.mxu0 %v1802
        %2276 = vmatpush1.bf16.msra.mxu0 %v1801
        %2277 = vmatprep.subr.bf16.mxu0 %v1798
        %2278 = vmatpush1.bf16.msra.mxu0 %v1797
        %2279 = vmatprep.subr.bf16.mxu0 %v1794
        %2280 = vmatpush1.bf16.msra.mxu0 %v1793
        %2281 = vmatprep.subr.bf16.mxu0 %v1790
        %2282 = vmatpush1.bf16.msra.mxu0 %v1789
        %2283 = vmatprep.subr.bf16.mxu0 %v1786
        %2284 = vmatpush1.bf16.msra.mxu0 %v1785
        %2285 = vmatprep.subr.bf16.mxu0 %v1782
        %2286 = vmatpush1.bf16.msra.mxu0 %v1781
        %2287 = vmatprep.subr.bf16.mxu0 %v1842
        %2288 = vmatpush2.bf16.msra.mxu0 %v1841
        %2289 = vmatprep.subr.bf16.mxu0 %v1838
        %2290 = vmatpush2.bf16.msra.mxu0 %v1837
        %2291 = vmatprep.subr.bf16.mxu0 %v1834
        %2292 = vmatpush2.bf16.msra.mxu0 %v1833
        %2293 = vmatprep.subr.bf16.mxu0 %v1830
        %2294 = vmatpush2.bf16.msra.mxu0 %v1829
        %2295 = vmatprep.subr.bf16.mxu0 %v1826
        %2296 = vmatpush2.bf16.msra.mxu0 %v1825
        %2297 = vmatprep.subr.bf16.mxu0 %v1822
        %2298 = vmatpush2.bf16.msra.mxu0 %v1821
        %2299 = vmatprep.subr.bf16.mxu0 %v1818
        %2300 = vmatpush2.bf16.msra.mxu0 %v1817
        %2301 = vmatprep.subr.bf16.mxu0 %v1814
        %2302 = vmatpush2.bf16.msra.mxu0 %v1813
        %2303 = vmatprep.mubr.bf16.mxu0 %v858
        %2304 = vmatmul.mubr.bf16.gmra.mxu0 %v857
        %v2305 = vpop.f32.mrf.mxu0
        %v2306 = vadd.f32 %v2253, %v2305
        %v2307 = vpop.f32.mrf.mxu0
        %v2308 = vadd.f32 %v2255, %v2307
        %v2309 = vpop.f32.mrf.mxu0
        %v2310 = vadd.f32 %v2257, %v2309
        %v2311 = vpop.f32.mrf.mxu0
        %v2312 = vadd.f32 %v2259, %v2311
        %2313 = vmatprep.mubr.bf16.mxu0 %v866
        %2314 = vmatmul.mubr.bf16.gmra.mxu0 %v865
        %v2315 = vpop.f32.mrf.mxu0
        %v2316 = vadd.f32 %v2263, %v2315
        %v2317 = vpop.f32.mrf.mxu0
        %v2318 = vadd.f32 %v2265, %v2317
        %v2319 = vpop.f32.mrf.mxu0
        %v2320 = vadd.f32 %v2267, %v2319
        %v2321 = vpop.f32.mrf.mxu0
        %v2322 = vadd.f32 %v2269, %v2321
        %2323 = vdwg.mxu0
        %2324 = vmatprep.subr.bf16.mxu0 %v1874
        %2325 = vmatpush1.bf16.msra.mxu0 %v1873
        %2326 = vmatprep.subr.bf16.mxu0 %v1870
        %2327 = vmatpush1.bf16.msra.mxu0 %v1869
        %2328 = vmatprep.subr.bf16.mxu0 %v1866
        %2329 = vmatpush1.bf16.msra.mxu0 %v1865
        %2330 = vmatprep.subr.bf16.mxu0 %v1862
        %2331 = vmatpush1.bf16.msra.mxu0 %v1861
        %2332 = vmatprep.subr.bf16.mxu0 %v1858
        %2333 = vmatpush1.bf16.msra.mxu0 %v1857
        %2334 = vmatprep.subr.bf16.mxu0 %v1854
        %2335 = vmatpush1.bf16.msra.mxu0 %v1853
        %2336 = vmatprep.subr.bf16.mxu0 %v1850
        %2337 = vmatpush1.bf16.msra.mxu0 %v1849
        %2338 = vmatprep.subr.bf16.mxu0 %v1846
        %2339 = vmatpush1.bf16.msra.mxu0 %v1845
        %2340 = vmatprep.subr.bf16.mxu0 %v1906
        %2341 = vmatpush2.bf16.msra.mxu0 %v1905
        %2342 = vmatprep.subr.bf16.mxu0 %v1902
        %2343 = vmatpush2.bf16.msra.mxu0 %v1901
        %2344 = vmatprep.subr.bf16.mxu0 %v1898
        %2345 = vmatpush2.bf16.msra.mxu0 %v1897
        %2346 = vmatprep.subr.bf16.mxu0 %v1894
        %2347 = vmatpush2.bf16.msra.mxu0 %v1893
        %2348 = vmatprep.subr.bf16.mxu0 %v1890
        %2349 = vmatpush2.bf16.msra.mxu0 %v1889
        %2350 = vmatprep.subr.bf16.mxu0 %v1886
        %2351 = vmatpush2.bf16.msra.mxu0 %v1885
        %2352 = vmatprep.subr.bf16.mxu0 %v1882
        %2353 = vmatpush2.bf16.msra.mxu0 %v1881
        %2354 = vmatprep.subr.bf16.mxu0 %v1878
        %2355 = vmatpush2.bf16.msra.mxu0 %v1877
        %2356 = vmatprep.mubr.bf16.mxu0 %v860
        %2357 = vmatmul.mubr.bf16.gmra.mxu0 %v859
        %v2358 = vpop.f32.mrf.mxu0
        %v2359 = vadd.f32 %v2306, %v2358
        %v2360 = vpop.f32.mrf.mxu0
        %v2361 = vadd.f32 %v2308, %v2360
        %v2362 = vpop.f32.mrf.mxu0
        %v2363 = vadd.f32 %v2310, %v2362
        %v2364 = vpop.f32.mrf.mxu0
        %v2365 = vadd.f32 %v2312, %v2364
        %2366 = vmatprep.mubr.bf16.mxu0 %v868
        %2367 = vmatmul.mubr.bf16.gmra.mxu0 %v867
        %v2368 = vpop.f32.mrf.mxu0
        %v2369 = vadd.f32 %v2316, %v2368
        %v2370 = vpop.f32.mrf.mxu0
        %v2371 = vadd.f32 %v2318, %v2370
        %v2372 = vpop.f32.mrf.mxu0
        %v2373 = vadd.f32 %v2320, %v2372
        %v2374 = vpop.f32.mrf.mxu0
        %v2375 = vadd.f32 %v2322, %v2374
        %2376 = vdwg.mxu0
        %2377 = vmatprep.subr.bf16.mxu0 %v1684
        %2378 = vmatpush1.bf16.msra.mxu0 %v1683
        %2379 = vmatprep.subr.bf16.mxu0 %v1680
        %2380 = vmatpush1.bf16.msra.mxu0 %v1679
        %2381 = vmatprep.subr.bf16.mxu0 %v1676
        %2382 = vmatpush1.bf16.msra.mxu0 %v1675
        %2383 = vmatprep.subr.bf16.mxu0 %v1672
        %2384 = vmatpush1.bf16.msra.mxu0 %v1671
        %2385 = vmatprep.subr.bf16.mxu0 %v1668
        %2386 = vmatpush1.bf16.msra.mxu0 %v1667
        %2387 = vmatprep.subr.bf16.mxu0 %v1664
        %2388 = vmatpush1.bf16.msra.mxu0 %v1663
        %2389 = vmatprep.subr.bf16.mxu0 %v1660
        %2390 = vmatpush1.bf16.msra.mxu0 %v1659
        %2391 = vmatprep.subr.bf16.mxu0 %v1656
        %2392 = vmatpush1.bf16.msra.mxu0 %v1655
        %2393 = vmatprep.subr.bf16.mxu0 %v1716
        %2394 = vmatpush2.bf16.msra.mxu0 %v1715
        %2395 = vmatprep.subr.bf16.mxu0 %v1712
        %2396 = vmatpush2.bf16.msra.mxu0 %v1711
        %2397 = vmatprep.subr.bf16.mxu0 %v1708
        %2398 = vmatpush2.bf16.msra.mxu0 %v1707
        %2399 = vmatprep.subr.bf16.mxu0 %v1704
        %2400 = vmatpush2.bf16.msra.mxu0 %v1703
        %2401 = vmatprep.subr.bf16.mxu0 %v1700
        %2402 = vmatpush2.bf16.msra.mxu0 %v1699
        %2403 = vmatprep.subr.bf16.mxu0 %v1696
        %2404 = vmatpush2.bf16.msra.mxu0 %v1695
        %2405 = vmatprep.subr.bf16.mxu0 %v1692
        %2406 = vmatpush2.bf16.msra.mxu0 %v1691
        %2407 = vmatprep.subr.bf16.mxu0 %v1688
        %2408 = vmatpush2.bf16.msra.mxu0 %v1687
        %2409 = vmatprep.mubr.bf16.mxu0 %v854
        %2410 = vmatmul.mubr.bf16.gmra.mxu0 %v853
        %v2411 = vpop.f32.mrf.mxu0
        %v2412 = vadd.f32 %v796, %v2411
        %v2413 = vpop.f32.mrf.mxu0
        %v2414 = vadd.f32 %v800, %v2413
        %v2415 = vpop.f32.mrf.mxu0
        %v2416 = vadd.f32 %v796, %v2415
        %v2417 = vpop.f32.mrf.mxu0
        %v2418 = vadd.f32 %v800, %v2417
        %2419 = vmatprep.mubr.bf16.mxu0 %v862
        %2420 = vmatmul.mubr.bf16.gmra.mxu0 %v861
        %v2421 = vpop.f32.mrf.mxu0
        %v2422 = vadd.f32 %v796, %v2421
        %v2423 = vpop.f32.mrf.mxu0
        %v2424 = vadd.f32 %v800, %v2423
        %v2425 = vpop.f32.mrf.mxu0
        %v2426 = vadd.f32 %v796, %v2425
        %v2427 = vpop.f32.mrf.mxu0
        %v2428 = vadd.f32 %v800, %v2427
        %2429 = vdwg.mxu0
        %2430 = vmatprep.subr.bf16.mxu0 %v1748
        %2431 = vmatpush1.bf16.msra.mxu0 %v1747
        %2432 = vmatprep.subr.bf16.mxu0 %v1744
        %2433 = vmatpush1.bf16.msra.mxu0 %v1743
        %2434 = vmatprep.subr.bf16.mxu0 %v1740
        %2435 = vmatpush1.bf16.msra.mxu0 %v1739
        %2436 = vmatprep.subr.bf16.mxu0 %v1736
        %2437 = vmatpush1.bf16.msra.mxu0 %v1735
        %2438 = vmatprep.subr.bf16.mxu0 %v1732
        %2439 = vmatpush1.bf16.msra.mxu0 %v1731
        %2440 = vmatprep.subr.bf16.mxu0 %v1728
        %2441 = vmatpush1.bf16.msra.mxu0 %v1727
        %2442 = vmatprep.subr.bf16.mxu0 %v1724
        %2443 = vmatpush1.bf16.msra.mxu0 %v1723
        %2444 = vmatprep.subr.bf16.mxu0 %v1720
        %2445 = vmatpush1.bf16.msra.mxu0 %v1719
        %2446 = vmatprep.subr.bf16.mxu0 %v1780
        %2447 = vmatpush2.bf16.msra.mxu0 %v1779
        %2448 = vmatprep.subr.bf16.mxu0 %v1776
        %2449 = vmatpush2.bf16.msra.mxu0 %v1775
        %2450 = vmatprep.subr.bf16.mxu0 %v1772
        %2451 = vmatpush2.bf16.msra.mxu0 %v1771
        %2452 = vmatprep.subr.bf16.mxu0 %v1768
        %2453 = vmatpush2.bf16.msra.mxu0 %v1767
        %2454 = vmatprep.subr.bf16.mxu0 %v1764
        %2455 = vmatpush2.bf16.msra.mxu0 %v1763
        %2456 = vmatprep.subr.bf16.mxu0 %v1760
        %2457 = vmatpush2.bf16.msra.mxu0 %v1759
        %2458 = vmatprep.subr.bf16.mxu0 %v1756
        %2459 = vmatpush2.bf16.msra.mxu0 %v1755
        %2460 = vmatprep.subr.bf16.mxu0 %v1752
        %2461 = vmatpush2.bf16.msra.mxu0 %v1751
        %2462 = vmatprep.mubr.bf16.mxu0 %v856
        %2463 = vmatmul.mubr.bf16.gmra.mxu0 %v855
        %v2464 = vpop.f32.mrf.mxu0
        %v2465 = vadd.f32 %v2412, %v2464
        %v2466 = vpop.f32.mrf.mxu0
        %v2467 = vadd.f32 %v2414, %v2466
        %v2468 = vpop.f32.mrf.mxu0
        %v2469 = vadd.f32 %v2416, %v2468
        %v2470 = vpop.f32.mrf.mxu0
        %v2471 = vadd.f32 %v2418, %v2470
        %2472 = vmatprep.mubr.bf16.mxu0 %v864
        %2473 = vmatmul.mubr.bf16.gmra.mxu0 %v863
        %v2474 = vpop.f32.mrf.mxu0
        %v2475 = vadd.f32 %v2422, %v2474
        %v2476 = vpop.f32.mrf.mxu0
        %v2477 = vadd.f32 %v2424, %v2476
        %v2478 = vpop.f32.mrf.mxu0
        %v2479 = vadd.f32 %v2426, %v2478
        %v2480 = vpop.f32.mrf.mxu0
        %v2481 = vadd.f32 %v2428, %v2480
        %2482 = vdwg.mxu0
        %2483 = vmatprep.subr.bf16.mxu0 %v1812
        %2484 = vmatpush1.bf16.msra.mxu0 %v1811
        %2485 = vmatprep.subr.bf16.mxu0 %v1808
        %2486 = vmatpush1.bf16.msra.mxu0 %v1807
        %2487 = vmatprep.subr.bf16.mxu0 %v1804
        %2488 = vmatpush1.bf16.msra.mxu0 %v1803
        %2489 = vmatprep.subr.bf16.mxu0 %v1800
        %2490 = vmatpush1.bf16.msra.mxu0 %v1799
        %2491 = vmatprep.subr.bf16.mxu0 %v1796
        %2492 = vmatpush1.bf16.msra.mxu0 %v1795
        %2493 = vmatprep.subr.bf16.mxu0 %v1792
        %2494 = vmatpush1.bf16.msra.mxu0 %v1791
        %2495 = vmatprep.subr.bf16.mxu0 %v1788
        %2496 = vmatpush1.bf16.msra.mxu0 %v1787
        %2497 = vmatprep.subr.bf16.mxu0 %v1784
        %2498 = vmatpush1.bf16.msra.mxu0 %v1783
        %2499 = vmatprep.subr.bf16.mxu0 %v1844
        %2500 = vmatpush2.bf16.msra.mxu0 %v1843
        %2501 = vmatprep.subr.bf16.mxu0 %v1840
        %2502 = vmatpush2.bf16.msra.mxu0 %v1839
        %2503 = vmatprep.subr.bf16.mxu0 %v1836
        %2504 = vmatpush2.bf16.msra.mxu0 %v1835
        %2505 = vmatprep.subr.bf16.mxu0 %v1832
        %2506 = vmatpush2.bf16.msra.mxu0 %v1831
        %2507 = vmatprep.subr.bf16.mxu0 %v1828
        %2508 = vmatpush2.bf16.msra.mxu0 %v1827
        %2509 = vmatprep.subr.bf16.mxu0 %v1824
        %2510 = vmatpush2.bf16.msra.mxu0 %v1823
        %2511 = vmatprep.subr.bf16.mxu0 %v1820
        %2512 = vmatpush2.bf16.msra.mxu0 %v1819
        %2513 = vmatprep.subr.bf16.mxu0 %v1816
        %2514 = vmatpush2.bf16.msra.mxu0 %v1815
        %2515 = vmatprep.mubr.bf16.mxu0 %v858
        %2516 = vmatmul.mubr.bf16.gmra.mxu0 %v857
        %v2517 = vpop.f32.mrf.mxu0
        %v2518 = vadd.f32 %v2465, %v2517
        %v2519 = vpop.f32.mrf.mxu0
        %v2520 = vadd.f32 %v2467, %v2519
        %v2521 = vpop.f32.mrf.mxu0
        %v2522 = vadd.f32 %v2469, %v2521
        %v2523 = vpop.f32.mrf.mxu0
        %v2524 = vadd.f32 %v2471, %v2523
        %2525 = vmatprep.mubr.bf16.mxu0 %v866
        %2526 = vmatmul.mubr.bf16.gmra.mxu0 %v865
        %v2527 = vpop.f32.mrf.mxu0
        %v2528 = vadd.f32 %v2475, %v2527
        %v2529 = vpop.f32.mrf.mxu0
        %v2530 = vadd.f32 %v2477, %v2529
        %v2531 = vpop.f32.mrf.mxu0
        %v2532 = vadd.f32 %v2479, %v2531
        %v2533 = vpop.f32.mrf.mxu0
        %v2534 = vadd.f32 %v2481, %v2533
        %2535 = vdwg.mxu0
        %2536 = vmatprep.subr.bf16.mxu0 %v1876
        %2537 = vmatpush1.bf16.msra.mxu0 %v1875
        %2538 = vmatprep.subr.bf16.mxu0 %v1872
        %2539 = vmatpush1.bf16.msra.mxu0 %v1871
        %2540 = vmatprep.subr.bf16.mxu0 %v1868
        %2541 = vmatpush1.bf16.msra.mxu0 %v1867
        %2542 = vmatprep.subr.bf16.mxu0 %v1864
        %2543 = vmatpush1.bf16.msra.mxu0 %v1863
        %2544 = vmatprep.subr.bf16.mxu0 %v1860
        %2545 = vmatpush1.bf16.msra.mxu0 %v1859
        %2546 = vmatprep.subr.bf16.mxu0 %v1856
        %2547 = vmatpush1.bf16.msra.mxu0 %v1855
        %2548 = vmatprep.subr.bf16.mxu0 %v1852
        %2549 = vmatpush1.bf16.msra.mxu0 %v1851
        %2550 = vmatprep.subr.bf16.mxu0 %v1848
        %2551 = vmatpush1.bf16.msra.mxu0 %v1847
        %2552 = vmatprep.subr.bf16.mxu0 %v1908
        %2553 = vmatpush2.bf16.msra.mxu0 %v1907
        %2554 = vmatprep.subr.bf16.mxu0 %v1904
        %2555 = vmatpush2.bf16.msra.mxu0 %v1903
        %2556 = vmatprep.subr.bf16.mxu0 %v1900
        %2557 = vmatpush2.bf16.msra.mxu0 %v1899
        %2558 = vmatprep.subr.bf16.mxu0 %v1896
        %2559 = vmatpush2.bf16.msra.mxu0 %v1895
        %2560 = vmatprep.subr.bf16.mxu0 %v1892
        %2561 = vmatpush2.bf16.msra.mxu0 %v1891
        %2562 = vmatprep.subr.bf16.mxu0 %v1888
        %2563 = vmatpush2.bf16.msra.mxu0 %v1887
        %2564 = vmatprep.subr.bf16.mxu0 %v1884
        %2565 = vmatpush2.bf16.msra.mxu0 %v1883
        %2566 = vmatprep.subr.bf16.mxu0 %v1880
        %2567 = vmatpush2.bf16.msra.mxu0 %v1879
        %2568 = vmatprep.mubr.bf16.mxu0 %v860
        %2569 = vmatmul.mubr.bf16.gmra.mxu0 %v859
        %v2570 = vpop.f32.mrf.mxu0
        %v2571 = vadd.f32 %v2518, %v2570
        %v2572 = vpop.f32.mrf.mxu0
        %v2573 = vadd.f32 %v2520, %v2572
        %v2574 = vpop.f32.mrf.mxu0
        %v2575 = vadd.f32 %v2522, %v2574
        %v2576 = vpop.f32.mrf.mxu0
        %v2577 = vadd.f32 %v2524, %v2576
        %2578 = vmatprep.mubr.bf16.mxu0 %v868
        %2579 = vmatmul.mubr.bf16.gmra.mxu0 %v867
        %v2580 = vpop.f32.mrf.mxu0
        %v2581 = vadd.f32 %v2528, %v2580
        %v2582 = vpop.f32.mrf.mxu0
        %v2583 = vadd.f32 %v2530, %v2582
        %v2584 = vpop.f32.mrf.mxu0
        %v2585 = vadd.f32 %v2532, %v2584
        %v2586 = vpop.f32.mrf.mxu0
        %v2587 = vadd.f32 %v2534, %v2586
        %2588 = vdwg.mxu0
        %v2589 = vmax.f32 %v2359, 0.0
        %v2590 = vmax.f32 %v2361, 0.0
        %v2591 = vmax.f32 %v2571, 0.0
        %v2592 = vmax.f32 %v2573, 0.0
        %v2593 = vmax.f32 %v2363, 0.0
        %v2594 = vmax.f32 %v2365, 0.0
        %v2595 = vmax.f32 %v2575, 0.0
        %v2596 = vmax.f32 %v2577, 0.0
        %v2597 = vmax.f32 %v2369, 0.0
        %v2598 = vmax.f32 %v2371, 0.0
        %v2599 = vmax.f32 %v2581, 0.0
        %v2600 = vmax.f32 %v2583, 0.0
        %v2601 = vmax.f32 %v2373, 0.0
        %v2602 = vmax.f32 %v2375, 0.0
        %v2603 = vmax.f32 %v2585, 0.0
        %v2604 = vmax.f32 %v2587, 0.0
        %v2605 = vpack.c.bf16 %v2593, %v2589
        %v2606 = vpack.c.bf16 %v2594, %v2590
        %v2607 = vpack.c.bf16 %v2595, %v2591
        %v2608 = vpack.c.bf16 %v2596, %v2592
        %v2609 = vpack.c.bf16 %v2601, %v2597
        %v2610 = vpack.c.bf16 %v2602, %v2598
        %v2611 = vpack.c.bf16 %v2603, %v2599
        %v2612 = vpack.c.bf16 %v2604, %v2600
        %v2613 = vld [vmem:[#allocation8] sm:$0xf]
        %v2614 = vld [vmem:[#allocation8 + $0x4] sm:$0xf]
        %v2615 = vld [vmem:[#allocation8 + $0x8] sm:$0xf]
        %v2616 = vld [vmem:[#allocation8 + $0xc] sm:$0xf]
        %v2617 = vld [vmem:[#allocation8 + $0x10] sm:$0xf]
        %v2618 = vld [vmem:[#allocation8 + $0x14] sm:$0xf]
        %v2619 = vld [vmem:[#allocation8 + $0x18] sm:$0xf]
        %v2620 = vld [vmem:[#allocation8 + $0x1c] sm:$0xf]
        %v2621 = vld [vmem:[#allocation8 + $0x20] sm:$0xf]
        %v2622 = vld [vmem:[#allocation8 + $0x24] sm:$0xf]
        %v2623 = vld [vmem:[#allocation8 + $0x28] sm:$0xf]
        %v2624 = vld [vmem:[#allocation8 + $0x2c] sm:$0xf]
        %v2625 = vld [vmem:[#allocation8 + $0x30] sm:$0xf]
        %v2626 = vld [vmem:[#allocation8 + $0x34] sm:$0xf]
        %v2627 = vld [vmem:[#allocation8 + $0x38] sm:$0xf]
        %v2628 = vld [vmem:[#allocation8 + $0x3c] sm:$0xf]
        %v2629 = vld [vmem:[#allocation8 + $0x40] sm:$0xf]
        %v2630 = vld [vmem:[#allocation8 + $0x44] sm:$0xf]
        %v2631 = vld [vmem:[#allocation8 + $0x48] sm:$0xf]
        %v2632 = vld [vmem:[#allocation8 + $0x4c] sm:$0xf]
        %v2633 = vld [vmem:[#allocation8 + $0x50] sm:$0xf]
        %v2634 = vld [vmem:[#allocation8 + $0x54] sm:$0xf]
        %v2635 = vld [vmem:[#allocation8 + $0x58] sm:$0xf]
        %v2636 = vld [vmem:[#allocation8 + $0x5c] sm:$0xf]
        %v2637 = vld [vmem:[#allocation8 + $0x60] sm:$0xf]
        %v2638 = vld [vmem:[#allocation8 + $0x64] sm:$0xf]
        %v2639 = vld [vmem:[#allocation8 + $0x68] sm:$0xf]
        %v2640 = vld [vmem:[#allocation8 + $0x6c] sm:$0xf]
        %v2641 = vld [vmem:[#allocation8 + $0x70] sm:$0xf]
        %v2642 = vld [vmem:[#allocation8 + $0x74] sm:$0xf]
        %v2643 = vld [vmem:[#allocation8 + $0x78] sm:$0xf]
        %v2644 = vld [vmem:[#allocation8 + $0x7c] sm:$0xf]
        %v2645 = vld [vmem:[#allocation8 + $0x80] sm:$0xf]
        %v2646 = vld [vmem:[#allocation8 + $0x84] sm:$0xf]
        %v2647 = vld [vmem:[#allocation8 + $0x88] sm:$0xf]
        %v2648 = vld [vmem:[#allocation8 + $0x8c] sm:$0xf]
        %v2649 = vld [vmem:[#allocation8 + $0x90] sm:$0xf]
        %v2650 = vld [vmem:[#allocation8 + $0x94] sm:$0xf]
        %v2651 = vld [vmem:[#allocation8 + $0x98] sm:$0xf]
        %v2652 = vld [vmem:[#allocation8 + $0x9c] sm:$0xf]
        %v2653 = vld [vmem:[#allocation8 + $0xa0] sm:$0xf]
        %v2654 = vld [vmem:[#allocation8 + $0xa4] sm:$0xf]
        %v2655 = vld [vmem:[#allocation8 + $0xa8] sm:$0xf]
        %v2656 = vld [vmem:[#allocation8 + $0xac] sm:$0xf]
        %v2657 = vld [vmem:[#allocation8 + $0xb0] sm:$0xf]
        %v2658 = vld [vmem:[#allocation8 + $0xb4] sm:$0xf]
        %v2659 = vld [vmem:[#allocation8 + $0xb8] sm:$0xf]
        %v2660 = vld [vmem:[#allocation8 + $0xbc] sm:$0xf]
        %v2661 = vld [vmem:[#allocation8 + $0xc0] sm:$0xf]
        %v2662 = vld [vmem:[#allocation8 + $0xc4] sm:$0xf]
        %v2663 = vld [vmem:[#allocation8 + $0xc8] sm:$0xf]
        %v2664 = vld [vmem:[#allocation8 + $0xcc] sm:$0xf]
        %v2665 = vld [vmem:[#allocation8 + $0xd0] sm:$0xf]
        %v2666 = vld [vmem:[#allocation8 + $0xd4] sm:$0xf]
        %v2667 = vld [vmem:[#allocation8 + $0xd8] sm:$0xf]
        %v2668 = vld [vmem:[#allocation8 + $0xdc] sm:$0xf]
        %v2669 = vld [vmem:[#allocation8 + $0xe0] sm:$0xf]
        %v2670 = vld [vmem:[#allocation8 + $0xe4] sm:$0xf]
        %v2671 = vld [vmem:[#allocation8 + $0xe8] sm:$0xf]
        %v2672 = vld [vmem:[#allocation8 + $0xec] sm:$0xf]
        %v2673 = vld [vmem:[#allocation8 + $0xf0] sm:$0xf]
        %v2674 = vld [vmem:[#allocation8 + $0xf4] sm:$0xf]
        %v2675 = vld [vmem:[#allocation8 + $0xf8] sm:$0xf]
        %v2676 = vld [vmem:[#allocation8 + $0xfc] sm:$0xf]
        %v2677 = vld [vmem:[%s4] sm:$0x1]
        %v2679 = vlaneseq
        %v2680 = vshrl.u32 %v2679, 7
        %v2681 = vsub.s32 0, %v2680
        %v2682 = vrot.slane %v2677, %v2681
        %v2748 = vunpack.c.l.b16 %v2613
        %v2749 = vunpack.c.l.b16 %v2614
        %v2750 = vunpack.c.l.b16 %v2615
        %v2751 = vunpack.c.l.b16 %v2616
        %v2752 = vunpack.c.l.b16 %v2617
        %v2753 = vunpack.c.l.b16 %v2618
        %v2754 = vunpack.c.l.b16 %v2619
        %v2755 = vunpack.c.l.b16 %v2620
        %v2756 = vunpack.c.l.b16 %v2621
        %v2757 = vunpack.c.l.b16 %v2622
        %v2758 = vunpack.c.l.b16 %v2623
        %v2759 = vunpack.c.l.b16 %v2624
        %v2760 = vunpack.c.l.b16 %v2625
        %v2761 = vunpack.c.l.b16 %v2626
        %v2762 = vunpack.c.l.b16 %v2627
        %v2763 = vunpack.c.l.b16 %v2628
        %v2764 = vunpack.c.l.b16 %v2629
        %v2765 = vunpack.c.l.b16 %v2630
        %v2766 = vunpack.c.l.b16 %v2631
        %v2767 = vunpack.c.l.b16 %v2632
        %v2768 = vunpack.c.l.b16 %v2633
        %v2769 = vunpack.c.l.b16 %v2634
        %v2770 = vunpack.c.l.b16 %v2635
        %v2771 = vunpack.c.l.b16 %v2636
        %v2772 = vunpack.c.l.b16 %v2637
        %v2773 = vunpack.c.l.b16 %v2638
        %v2774 = vunpack.c.l.b16 %v2639
        %v2775 = vunpack.c.l.b16 %v2640
        %v2776 = vunpack.c.l.b16 %v2641
        %v2777 = vunpack.c.l.b16 %v2642
        %v2778 = vunpack.c.l.b16 %v2643
        %v2779 = vunpack.c.l.b16 %v2644
        %v2780 = vunpack.c.l.b16 %v2645
        %v2781 = vunpack.c.l.b16 %v2646
        %v2782 = vunpack.c.l.b16 %v2647
        %v2783 = vunpack.c.l.b16 %v2648
        %v2784 = vunpack.c.l.b16 %v2649
        %v2785 = vunpack.c.l.b16 %v2650
        %v2786 = vunpack.c.l.b16 %v2651
        %v2787 = vunpack.c.l.b16 %v2652
        %v2788 = vunpack.c.l.b16 %v2653
        %v2789 = vunpack.c.l.b16 %v2654
        %v2790 = vunpack.c.l.b16 %v2655
        %v2791 = vunpack.c.l.b16 %v2656
        %v2792 = vunpack.c.l.b16 %v2657
        %v2793 = vunpack.c.l.b16 %v2658
        %v2794 = vunpack.c.l.b16 %v2659
        %v2795 = vunpack.c.l.b16 %v2660
        %v2796 = vunpack.c.l.b16 %v2661
        %v2797 = vunpack.c.l.b16 %v2662
        %v2798 = vunpack.c.l.b16 %v2663
        %v2799 = vunpack.c.l.b16 %v2664
        %v2800 = vunpack.c.l.b16 %v2665
        %v2801 = vunpack.c.l.b16 %v2666
        %v2802 = vunpack.c.l.b16 %v2667
        %v2803 = vunpack.c.l.b16 %v2668
        %v2804 = vunpack.c.l.b16 %v2669
        %v2805 = vunpack.c.l.b16 %v2670
        %v2806 = vunpack.c.l.b16 %v2671
        %v2807 = vunpack.c.l.b16 %v2672
        %v2808 = vunpack.c.l.b16 %v2673
        %v2809 = vunpack.c.l.b16 %v2674
        %v2810 = vunpack.c.l.b16 %v2675
        %v2811 = vunpack.c.l.b16 %v2676
        %v2812 = vpack.c.b16 %v2749, %v2748
        %v2813 = vpack.c.b16 %v2751, %v2750
        %v2814 = vpack.c.b16 %v2753, %v2752
        %v2815 = vpack.c.b16 %v2755, %v2754
        %v2816 = vpack.c.b16 %v2757, %v2756
        %v2817 = vpack.c.b16 %v2759, %v2758
        %v2818 = vpack.c.b16 %v2761, %v2760
        %v2819 = vpack.c.b16 %v2763, %v2762
        %v2820 = vpack.c.b16 %v2765, %v2764
        %v2821 = vpack.c.b16 %v2767, %v2766
        %v2822 = vpack.c.b16 %v2769, %v2768
        %v2823 = vpack.c.b16 %v2771, %v2770
        %v2824 = vpack.c.b16 %v2773, %v2772
        %v2825 = vpack.c.b16 %v2775, %v2774
        %v2826 = vpack.c.b16 %v2777, %v2776
        %v2827 = vpack.c.b16 %v2779, %v2778
        %v2828 = vpack.c.b16 %v2781, %v2780
        %v2829 = vpack.c.b16 %v2783, %v2782
        %v2830 = vpack.c.b16 %v2785, %v2784
        %v2831 = vpack.c.b16 %v2787, %v2786
        %v2832 = vpack.c.b16 %v2789, %v2788
        %v2833 = vpack.c.b16 %v2791, %v2790
        %v2834 = vpack.c.b16 %v2793, %v2792
        %v2835 = vpack.c.b16 %v2795, %v2794
        %v2836 = vpack.c.b16 %v2797, %v2796
        %v2837 = vpack.c.b16 %v2799, %v2798
        %v2838 = vpack.c.b16 %v2801, %v2800
        %v2839 = vpack.c.b16 %v2803, %v2802
        %v2840 = vpack.c.b16 %v2805, %v2804
        %v2841 = vpack.c.b16 %v2807, %v2806
        %v2842 = vpack.c.b16 %v2809, %v2808
        %v2843 = vpack.c.b16 %v2811, %v2810
        %2876 = vmatprep.subr.bf16.mxu0 0
        %2877 = vmatpush1.bf16.msra.mxu0 %v2819
        %2878 = vmatprep.subr.bf16.mxu0 0
        %2879 = vmatpush1.bf16.msra.mxu0 %v2818
        %2880 = vmatprep.subr.bf16.mxu0 0
        %2881 = vmatpush1.bf16.msra.mxu0 %v2817
        %2882 = vmatprep.subr.bf16.mxu0 0
        %2883 = vmatpush1.bf16.msra.mxu0 %v2816
        %2884 = vmatprep.subr.bf16.mxu0 0
        %2885 = vmatpush1.bf16.msra.mxu0 %v2815
        %2886 = vmatprep.subr.bf16.mxu0 0
        %2887 = vmatpush1.bf16.msra.mxu0 %v2814
        %2888 = vmatprep.subr.bf16.mxu0 0
        %2889 = vmatpush1.bf16.msra.mxu0 %v2813
        %2890 = vmatprep.subr.bf16.mxu0 0
        %2891 = vmatpush1.bf16.msra.mxu0 %v2812
        %2892 = vmatprep.subr.bf16.mxu0 0
        %2893 = vmatpush2.bf16.msra.mxu0 %v2827
        %2894 = vmatprep.subr.bf16.mxu0 0
        %2895 = vmatpush2.bf16.msra.mxu0 %v2826
        %2896 = vmatprep.subr.bf16.mxu0 0
        %2897 = vmatpush2.bf16.msra.mxu0 %v2825
        %2898 = vmatprep.subr.bf16.mxu0 0
        %2899 = vmatpush2.bf16.msra.mxu0 %v2824
        %2900 = vmatprep.subr.bf16.mxu0 0
        %2901 = vmatpush2.bf16.msra.mxu0 %v2823
        %2902 = vmatprep.subr.bf16.mxu0 0
        %2903 = vmatpush2.bf16.msra.mxu0 %v2822
        %2904 = vmatprep.subr.bf16.mxu0 0
        %2905 = vmatpush2.bf16.msra.mxu0 %v2821
        %2906 = vmatprep.subr.bf16.mxu0 0
        %2907 = vmatpush2.bf16.msra.mxu0 %v2820
        %2908 = vmatprep.mubr.bf16.mxu0 %v2606
        %2909 = vmatmul.mubr.bf16.gmra.mxu0 %v2605
        %v2910 = vpop.f32.mrf.mxu0
        %v2911 = vadd.f32 %v2682, %v2910
        %v2912 = vpop.f32.mrf.mxu0
        %v2913 = vpop.f32.mrf.mxu0
        %v2914 = vadd.f32 %v2682, %v2913
        %v2915 = vpop.f32.mrf.mxu0
        %2916 = vmatprep.mubr.bf16.mxu0 %v2610
        %2917 = vmatmul.mubr.bf16.gmra.mxu0 %v2609
        %v2918 = vpop.f32.mrf.mxu0
        %v2919 = vadd.f32 %v2682, %v2918
        %v2920 = vpop.f32.mrf.mxu0
        %v2921 = vpop.f32.mrf.mxu0
        %v2922 = vadd.f32 %v2682, %v2921
        %v2923 = vpop.f32.mrf.mxu0
        %2924 = vdwg.mxu0
        %2925 = vmatprep.subr.bf16.mxu0 0
        %2926 = vmatpush1.bf16.msra.mxu0 %v2835
        %2927 = vmatprep.subr.bf16.mxu0 0
        %2928 = vmatpush1.bf16.msra.mxu0 %v2834
        %2929 = vmatprep.subr.bf16.mxu0 0
        %2930 = vmatpush1.bf16.msra.mxu0 %v2833
        %2931 = vmatprep.subr.bf16.mxu0 0
        %2932 = vmatpush1.bf16.msra.mxu0 %v2832
        %2933 = vmatprep.subr.bf16.mxu0 0
        %2934 = vmatpush1.bf16.msra.mxu0 %v2831
        %2935 = vmatprep.subr.bf16.mxu0 0
        %2936 = vmatpush1.bf16.msra.mxu0 %v2830
        %2937 = vmatprep.subr.bf16.mxu0 0
        %2938 = vmatpush1.bf16.msra.mxu0 %v2829
        %2939 = vmatprep.subr.bf16.mxu0 0
        %2940 = vmatpush1.bf16.msra.mxu0 %v2828
        %2941 = vmatprep.subr.bf16.mxu0 0
        %2942 = vmatpush2.bf16.msra.mxu0 %v2843
        %2943 = vmatprep.subr.bf16.mxu0 0
        %2944 = vmatpush2.bf16.msra.mxu0 %v2842
        %2945 = vmatprep.subr.bf16.mxu0 0
        %2946 = vmatpush2.bf16.msra.mxu0 %v2841
        %2947 = vmatprep.subr.bf16.mxu0 0
        %2948 = vmatpush2.bf16.msra.mxu0 %v2840
        %2949 = vmatprep.subr.bf16.mxu0 0
        %2950 = vmatpush2.bf16.msra.mxu0 %v2839
        %2951 = vmatprep.subr.bf16.mxu0 0
        %2952 = vmatpush2.bf16.msra.mxu0 %v2838
        %2953 = vmatprep.subr.bf16.mxu0 0
        %2954 = vmatpush2.bf16.msra.mxu0 %v2837
        %2955 = vmatprep.subr.bf16.mxu0 0
        %2956 = vmatpush2.bf16.msra.mxu0 %v2836
        %2957 = vmatprep.mubr.bf16.mxu0 %v2608
        %2958 = vmatmul.mubr.bf16.gmra.mxu0 %v2607
        %v2959 = vpop.f32.mrf.mxu0
        %v2960 = vadd.f32 %v2911, %v2959
        %v2961 = vpop.f32.mrf.mxu0
        %v2962 = vpop.f32.mrf.mxu0
        %v2963 = vadd.f32 %v2914, %v2962
        %v2964 = vpop.f32.mrf.mxu0
        %2965 = vmatprep.mubr.bf16.mxu0 %v2612
        %2966 = vmatmul.mubr.bf16.gmra.mxu0 %v2611
        %v2967 = vpop.f32.mrf.mxu0
        %v2968 = vadd.f32 %v2919, %v2967
        %v2969 = vpop.f32.mrf.mxu0
        %v2970 = vpop.f32.mrf.mxu0
        %v2971 = vadd.f32 %v2922, %v2970
        %v2972 = vpop.f32.mrf.mxu0
        %2973 = vdwg.mxu0
        %v2974 = vmax.f32 %v2960, 0.0
        %v2975 = vmax.f32 %v2963, 0.0
        %v2976 = vmax.f32 %v2968, 0.0
        %v2977 = vmax.f32 %v2971, 0.0
        %v2978 = vpack.c.bf16 %v2975, %v2974
        %v2979 = vpack.c.bf16 %v2977, %v2976
        %v2980 = vld [vmem:[#allocation10] sm:$0xf]
        %v2981 = vld [vmem:[#allocation10 + $0x4] sm:$0xf]
        %v2982 = vld [vmem:[#allocation10 + $0x8] sm:$0xf]
        %v2983 = vld [vmem:[#allocation10 + $0xc] sm:$0xf]
        %v2984 = vld [vmem:[#allocation10 + $0x10] sm:$0xf]
        %v2985 = vld [vmem:[#allocation10 + $0x14] sm:$0xf]
        %v2986 = vld [vmem:[#allocation10 + $0x18] sm:$0xf]
        %v2987 = vld [vmem:[#allocation10 + $0x1c] sm:$0xf]
        %v2988 = vld [vmem:[#allocation10 + $0x20] sm:$0xf]
        %v2989 = vld [vmem:[#allocation10 + $0x24] sm:$0xf]
        %v2990 = vld [vmem:[#allocation10 + $0x28] sm:$0xf]
        %v2991 = vld [vmem:[#allocation10 + $0x2c] sm:$0xf]
        %v2992 = vld [vmem:[#allocation10 + $0x30] sm:$0xf]
        %v2993 = vld [vmem:[#allocation10 + $0x34] sm:$0xf]
        %v2994 = vld [vmem:[#allocation10 + $0x38] sm:$0xf]
        %v2995 = vld [vmem:[#allocation10 + $0x3c] sm:$0xf]
        %v2996 = vld [vmem:[%s6] sm:$0x1]
        %v2998 = vlaneseq
        %v2999 = vshrl.u32 %v2998, 7
        %v3000 = vsub.s32 0, %v2999
        %v3001 = vrot.slane %v2996, %v3000
        %v3019 = vunpack.c.l.b16 %v2980
        %v3020 = vunpack.c.l.b16 %v2981
        %v3021 = vunpack.c.l.b16 %v2982
        %v3022 = vunpack.c.l.b16 %v2983
        %v3023 = vunpack.c.l.b16 %v2984
        %v3024 = vunpack.c.l.b16 %v2985
        %v3025 = vunpack.c.l.b16 %v2986
        %v3026 = vunpack.c.l.b16 %v2987
        %v3027 = vunpack.c.l.b16 %v2988
        %v3028 = vunpack.c.l.b16 %v2989
        %v3029 = vunpack.c.l.b16 %v2990
        %v3030 = vunpack.c.l.b16 %v2991
        %v3031 = vunpack.c.l.b16 %v2992
        %v3032 = vunpack.c.l.b16 %v2993
        %v3033 = vunpack.c.l.b16 %v2994
        %v3034 = vunpack.c.l.b16 %v2995
        %v3035 = vpack.c.b16 %v3020, %v3019
        %v3036 = vpack.c.b16 %v3022, %v3021
        %v3037 = vpack.c.b16 %v3024, %v3023
        %v3038 = vpack.c.b16 %v3026, %v3025
        %v3039 = vpack.c.b16 %v3028, %v3027
        %v3040 = vpack.c.b16 %v3030, %v3029
        %v3041 = vpack.c.b16 %v3032, %v3031
        %v3042 = vpack.c.b16 %v3034, %v3033
        %3051 = vmatprep.subr.bf16.mxu0 0
        %3052 = vmatpush1.bf16.msra.mxu0 %v3042
        %3053 = vmatprep.subr.bf16.mxu0 0
        %3054 = vmatpush1.bf16.msra.mxu0 %v3041
        %3055 = vmatprep.subr.bf16.mxu0 0
        %3056 = vmatpush1.bf16.msra.mxu0 %v3040
        %3057 = vmatprep.subr.bf16.mxu0 0
        %3058 = vmatpush1.bf16.msra.mxu0 %v3039
        %3059 = vmatprep.subr.bf16.mxu0 0
        %3060 = vmatpush1.bf16.msra.mxu0 %v3038
        %3061 = vmatprep.subr.bf16.mxu0 0
        %3062 = vmatpush1.bf16.msra.mxu0 %v3037
        %3063 = vmatprep.subr.bf16.mxu0 0
        %3064 = vmatpush1.bf16.msra.mxu0 %v3036
        %3065 = vmatprep.subr.bf16.mxu0 0
        %3066 = vmatpush1.bf16.msra.mxu0 %v3035
        %3067 = vmatprep.subr.bf16.mxu0 0
        %3068 = vmatpush2.bf16.msra.mxu0 0
        %3069 = vmatprep.subr.bf16.mxu0 0
        %3070 = vmatpush2.bf16.msra.mxu0 0
        %3071 = vmatprep.subr.bf16.mxu0 0
        %3072 = vmatpush2.bf16.msra.mxu0 0
        %3073 = vmatprep.subr.bf16.mxu0 0
        %3074 = vmatpush2.bf16.msra.mxu0 0
        %3075 = vmatprep.subr.bf16.mxu0 0
        %3076 = vmatpush2.bf16.msra.mxu0 0
        %3077 = vmatprep.subr.bf16.mxu0 0
        %3078 = vmatpush2.bf16.msra.mxu0 0
        %3079 = vmatprep.subr.bf16.mxu0 0
        %3080 = vmatpush2.bf16.msra.mxu0 0
        %3081 = vmatprep.subr.bf16.mxu0 0
        %3082 = vmatpush2.bf16.msra.mxu0 0
        %3083 = vmatprep.mubr.bf16.mxu0 0
        %3084 = vmatmul.mubr.bf16.gmra.mxu0 %v2978
        %v3085 = vpop.f32.mrf.mxu0
        %v3086 = vadd.f32 %v3001, %v3085
        %v3087 = vpop.f32.mrf.mxu0
        %v3088 = vpop.f32.mrf.mxu0
        %v3089 = vadd.f32 %v3001, %v3088
        %v3090 = vpop.f32.mrf.mxu0
        %3091 = vmatprep.mubr.bf16.mxu0 0
        %3092 = vmatmul.mubr.bf16.gmra.mxu0 %v2979
        %v3093 = vpop.f32.mrf.mxu0
        %v3094 = vadd.f32 %v3001, %v3093
        %v3095 = vpop.f32.mrf.mxu0
        %v3096 = vpop.f32.mrf.mxu0
        %v3097 = vadd.f32 %v3001, %v3096
        %v3098 = vpop.f32.mrf.mxu0
        %3099 = vdwg.mxu0
        %v3100 = vmax.f32 %v3086, 0.0
        %v3101 = vmax.f32 %v3089, 0.0
        %v3102 = vmax.f32 %v3094, 0.0
        %v3103 = vmax.f32 %v3097, 0.0
        %v3104 = vpack.c.bf16 %v3101, %v3100
        %v3105 = vpack.c.bf16 %v3103, %v3102
        %v3106 = vld [vmem:[#allocation11] sm:$0xff]
        %v3107 = vld [vmem:[#allocation11 + $0x8] sm:$0xff]
        %v3108 = vld [vmem:[#allocation11 + $0x10] sm:$0xff]
        %v3109 = vld [vmem:[#allocation11 + $0x18] sm:$0xff]
        %v3110 = vld [vmem:[#allocation11 + $0x20] sm:$0xff]
        %v3111 = vld [vmem:[#allocation11 + $0x28] sm:$0xff]
        %v3112 = vld [vmem:[#allocation11 + $0x30] sm:$0xff]
        %v3113 = vld [vmem:[#allocation11 + $0x38] sm:$0xff]
        %v3114 = vld [vmem:[#allocation11 + $0x40] sm:$0xff]
        %v3115 = vld [vmem:[#allocation11 + $0x48] sm:$0xff]
        %v3116 = vld [vmem:[#allocation11 + $0x50] sm:$0xff]
        %v3117 = vld [vmem:[#allocation11 + $0x58] sm:$0xff]
        %v3118 = vld [vmem:[#allocation11 + $0x60] sm:$0xff]
        %v3119 = vld [vmem:[#allocation11 + $0x68] sm:$0xff]
        %v3120 = vld [vmem:[#allocation11 + $0x70] sm:$0xff]
        %v3121 = vld [vmem:[#allocation11 + $0x78] sm:$0xff]
        %v3122 = vld [vmem:[#allocation11 + $0x80] sm:$0xff]
        %v3123 = vld [vmem:[#allocation11 + $0x88] sm:$0xff]
        %v3124 = vld [vmem:[#allocation11 + $0x90] sm:$0xff]
        %v3125 = vld [vmem:[#allocation11 + $0x98] sm:$0xff]
        %v3126 = vld [vmem:[#allocation11 + $0xa0] sm:$0xff]
        %v3127 = vld [vmem:[#allocation11 + $0xa8] sm:$0xff]
        %v3128 = vld [vmem:[#allocation11 + $0xb0] sm:$0xff]
        %v3129 = vld [vmem:[#allocation11 + $0xb8] sm:$0xff]
        %v3130 = vld [vmem:[#allocation11 + $0xc0] sm:$0xff]
        %v3131 = vld [vmem:[#allocation11 + $0xc8] sm:$0xff]
        %v3132 = vld [vmem:[#allocation11 + $0xd0] sm:$0xff]
        %v3133 = vld [vmem:[#allocation11 + $0xd8] sm:$0xff]
        %v3134 = vld [vmem:[#allocation11 + $0xe0] sm:$0xff]
        %v3135 = vld [vmem:[#allocation11 + $0xe8] sm:$0xff]
        %v3136 = vld [vmem:[#allocation11 + $0xf0] sm:$0xff]
        %v3137 = vld [vmem:[#allocation11 + $0xf8] sm:$0xff]
        %v3138 = vld [vmem:[%s8] sm:$0xf]
        %v3140 = vlaneseq
        %v3141 = vshrl.u32 %v3140, 7
        %v3142 = vsub.s32 0, %v3141
        %v3143 = vrot.slane %v3138, %v3142
        %v3144 = vlaneseq
        %v3145 = vshrl.u32 %v3144, 7
        %v3146 = vsub.s32 1, %v3145
        %v3147 = vrot.slane %v3138, %v3146
        %v3148 = vlaneseq
        %v3149 = vshrl.u32 %v3148, 7
        %v3150 = vsub.s32 2, %v3149
        %v3151 = vrot.slane %v3138, %v3150
        %v3152 = vlaneseq
        %v3153 = vshrl.u32 %v3152, 7
        %v3154 = vsub.s32 3, %v3153
        %v3155 = vrot.slane %v3138, %v3154
        %v3192 = vunpack.c.l.b16 %v3106
        %v3193 = vunpack.c.h.b16 %v3106
        %v3194 = vunpack.c.l.b16 %v3107
        %v3195 = vunpack.c.h.b16 %v3107
        %v3196 = vunpack.c.l.b16 %v3108
        %v3197 = vunpack.c.h.b16 %v3108
        %v3198 = vunpack.c.l.b16 %v3109
        %v3199 = vunpack.c.h.b16 %v3109
        %v3200 = vunpack.c.l.b16 %v3110
        %v3201 = vunpack.c.h.b16 %v3110
        %v3202 = vunpack.c.l.b16 %v3111
        %v3203 = vunpack.c.h.b16 %v3111
        %v3204 = vunpack.c.l.b16 %v3112
        %v3205 = vunpack.c.h.b16 %v3112
        %v3206 = vunpack.c.l.b16 %v3113
        %v3207 = vunpack.c.h.b16 %v3113
        %v3208 = vunpack.c.l.b16 %v3114
        %v3209 = vunpack.c.h.b16 %v3114
        %v3210 = vunpack.c.l.b16 %v3115
        %v3211 = vunpack.c.h.b16 %v3115
        %v3212 = vunpack.c.l.b16 %v3116
        %v3213 = vunpack.c.h.b16 %v3116
        %v3214 = vunpack.c.l.b16 %v3117
        %v3215 = vunpack.c.h.b16 %v3117
        %v3216 = vunpack.c.l.b16 %v3118
        %v3217 = vunpack.c.h.b16 %v3118
        %v3218 = vunpack.c.l.b16 %v3119
        %v3219 = vunpack.c.h.b16 %v3119
        %v3220 = vunpack.c.l.b16 %v3120
        %v3221 = vunpack.c.h.b16 %v3120
        %v3222 = vunpack.c.l.b16 %v3121
        %v3223 = vunpack.c.h.b16 %v3121
        %v3224 = vunpack.c.l.b16 %v3122
        %v3225 = vunpack.c.h.b16 %v3122
        %v3226 = vunpack.c.l.b16 %v3123
        %v3227 = vunpack.c.h.b16 %v3123
        %v3228 = vunpack.c.l.b16 %v3124
        %v3229 = vunpack.c.h.b16 %v3124
        %v3230 = vunpack.c.l.b16 %v3125
        %v3231 = vunpack.c.h.b16 %v3125
        %v3232 = vunpack.c.l.b16 %v3126
        %v3233 = vunpack.c.h.b16 %v3126
        %v3234 = vunpack.c.l.b16 %v3127
        %v3235 = vunpack.c.h.b16 %v3127
        %v3236 = vunpack.c.l.b16 %v3128
        %v3237 = vunpack.c.h.b16 %v3128
        %v3238 = vunpack.c.l.b16 %v3129
        %v3239 = vunpack.c.h.b16 %v3129
        %v3240 = vunpack.c.l.b16 %v3130
        %v3241 = vunpack.c.h.b16 %v3130
        %v3242 = vunpack.c.l.b16 %v3131
        %v3243 = vunpack.c.h.b16 %v3131
        %v3244 = vunpack.c.l.b16 %v3132
        %v3245 = vunpack.c.h.b16 %v3132
        %v3246 = vunpack.c.l.b16 %v3133
        %v3247 = vunpack.c.h.b16 %v3133
        %v3248 = vunpack.c.l.b16 %v3134
        %v3249 = vunpack.c.h.b16 %v3134
        %v3250 = vunpack.c.l.b16 %v3135
        %v3251 = vunpack.c.h.b16 %v3135
        %v3252 = vunpack.c.l.b16 %v3136
        %v3253 = vunpack.c.h.b16 %v3136
        %v3254 = vunpack.c.l.b16 %v3137
        %v3255 = vunpack.c.h.b16 %v3137
        %v3256 = vpack.c.b16 %v3196, %v3192
        %v3257 = vpack.c.b16 %v3197, %v3193
        %v3258 = vpack.c.b16 %v3198, %v3194
        %v3259 = vpack.c.b16 %v3199, %v3195
        %v3260 = vpack.c.b16 %v3204, %v3200
        %v3261 = vpack.c.b16 %v3205, %v3201
        %v3262 = vpack.c.b16 %v3206, %v3202
        %v3263 = vpack.c.b16 %v3207, %v3203
        %v3264 = vpack.c.b16 %v3212, %v3208
        %v3265 = vpack.c.b16 %v3213, %v3209
        %v3266 = vpack.c.b16 %v3214, %v3210
        %v3267 = vpack.c.b16 %v3215, %v3211
        %v3268 = vpack.c.b16 %v3220, %v3216
        %v3269 = vpack.c.b16 %v3221, %v3217
        %v3270 = vpack.c.b16 %v3222, %v3218
        %v3271 = vpack.c.b16 %v3223, %v3219
        %v3272 = vpack.c.b16 %v3228, %v3224
        %v3273 = vpack.c.b16 %v3229, %v3225
        %v3274 = vpack.c.b16 %v3230, %v3226
        %v3275 = vpack.c.b16 %v3231, %v3227
        %v3276 = vpack.c.b16 %v3236, %v3232
        %v3277 = vpack.c.b16 %v3237, %v3233
        %v3278 = vpack.c.b16 %v3238, %v3234
        %v3279 = vpack.c.b16 %v3239, %v3235
        %v3280 = vpack.c.b16 %v3244, %v3240
        %v3281 = vpack.c.b16 %v3245, %v3241
        %v3282 = vpack.c.b16 %v3246, %v3242
        %v3283 = vpack.c.b16 %v3247, %v3243
        %v3284 = vpack.c.b16 %v3252, %v3248
        %v3285 = vpack.c.b16 %v3253, %v3249
        %v3286 = vpack.c.b16 %v3254, %v3250
        %v3287 = vpack.c.b16 %v3255, %v3251
        %3320 = vmatprep.subr.bf16.mxu0 %v3285
        %3321 = vmatpush1.bf16.msra.mxu0 %v3284
        %3322 = vmatprep.subr.bf16.mxu0 %v3281
        %3323 = vmatpush1.bf16.msra.mxu0 %v3280
        %3324 = vmatprep.subr.bf16.mxu0 %v3277
        %3325 = vmatpush1.bf16.msra.mxu0 %v3276
        %3326 = vmatprep.subr.bf16.mxu0 %v3273
        %3327 = vmatpush1.bf16.msra.mxu0 %v3272
        %3328 = vmatprep.subr.bf16.mxu0 %v3269
        %3329 = vmatpush1.bf16.msra.mxu0 %v3268
        %3330 = vmatprep.subr.bf16.mxu0 %v3265
        %3331 = vmatpush1.bf16.msra.mxu0 %v3264
        %3332 = vmatprep.subr.bf16.mxu0 %v3261
        %3333 = vmatpush1.bf16.msra.mxu0 %v3260
        %3334 = vmatprep.subr.bf16.mxu0 %v3257
        %3335 = vmatpush1.bf16.msra.mxu0 %v3256
        %3336 = vmatprep.subr.bf16.mxu0 0
        %3337 = vmatpush2.bf16.msra.mxu0 0
        %3338 = vmatprep.subr.bf16.mxu0 0
        %3339 = vmatpush2.bf16.msra.mxu0 0
        %3340 = vmatprep.subr.bf16.mxu0 0
        %3341 = vmatpush2.bf16.msra.mxu0 0
        %3342 = vmatprep.subr.bf16.mxu0 0
        %3343 = vmatpush2.bf16.msra.mxu0 0
        %3344 = vmatprep.subr.bf16.mxu0 0
        %3345 = vmatpush2.bf16.msra.mxu0 0
        %3346 = vmatprep.subr.bf16.mxu0 0
        %3347 = vmatpush2.bf16.msra.mxu0 0
        %3348 = vmatprep.subr.bf16.mxu0 0
        %3349 = vmatpush2.bf16.msra.mxu0 0
        %3350 = vmatprep.subr.bf16.mxu0 0
        %3351 = vmatpush2.bf16.msra.mxu0 0
        %3352 = vmatprep.mubr.bf16.mxu0 0
        %3353 = vmatmul.mubr.bf16.gmra.mxu0 %v3104
        %v3354 = vpop.f32.mrf.mxu0
        %v3355 = vadd.f32 %v3143, %v3354
        %v3356 = vpop.f32.mrf.mxu0
        %v3357 = vadd.f32 %v3147, %v3356
        %v3358 = vpop.f32.mrf.mxu0
        %v3359 = vadd.f32 %v3143, %v3358
        %v3360 = vpop.f32.mrf.mxu0
        %v3361 = vadd.f32 %v3147, %v3360
        %3362 = vmatprep.mubr.bf16.mxu0 0
        %3363 = vmatmul.mubr.bf16.gmra.mxu0 %v3105
        %v3364 = vpop.f32.mrf.mxu0
        %v3365 = vadd.f32 %v3143, %v3364
        %v3366 = vpop.f32.mrf.mxu0
        %v3367 = vadd.f32 %v3147, %v3366
        %v3368 = vpop.f32.mrf.mxu0
        %v3369 = vadd.f32 %v3143, %v3368
        %v3370 = vpop.f32.mrf.mxu0
        %v3371 = vadd.f32 %v3147, %v3370
        %3372 = vdwg.mxu0
        %3373 = vmatprep.subr.bf16.mxu0 %v3287
        %3374 = vmatpush1.bf16.msra.mxu0 %v3286
        %3375 = vmatprep.subr.bf16.mxu0 %v3283
        %3376 = vmatpush1.bf16.msra.mxu0 %v3282
        %3377 = vmatprep.subr.bf16.mxu0 %v3279
        %3378 = vmatpush1.bf16.msra.mxu0 %v3278
        %3379 = vmatprep.subr.bf16.mxu0 %v3275
        %3380 = vmatpush1.bf16.msra.mxu0 %v3274
        %3381 = vmatprep.subr.bf16.mxu0 %v3271
        %3382 = vmatpush1.bf16.msra.mxu0 %v3270
        %3383 = vmatprep.subr.bf16.mxu0 %v3267
        %3384 = vmatpush1.bf16.msra.mxu0 %v3266
        %3385 = vmatprep.subr.bf16.mxu0 %v3263
        %3386 = vmatpush1.bf16.msra.mxu0 %v3262
        %3387 = vmatprep.subr.bf16.mxu0 %v3259
        %3388 = vmatpush1.bf16.msra.mxu0 %v3258
        %3389 = vmatprep.subr.bf16.mxu0 0
        %3390 = vmatpush2.bf16.msra.mxu0 0
        %3391 = vmatprep.subr.bf16.mxu0 0
        %3392 = vmatpush2.bf16.msra.mxu0 0
        %3393 = vmatprep.subr.bf16.mxu0 0
        %3394 = vmatpush2.bf16.msra.mxu0 0
        %3395 = vmatprep.subr.bf16.mxu0 0
        %3396 = vmatpush2.bf16.msra.mxu0 0
        %3397 = vmatprep.subr.bf16.mxu0 0
        %3398 = vmatpush2.bf16.msra.mxu0 0
        %3399 = vmatprep.subr.bf16.mxu0 0
        %3400 = vmatpush2.bf16.msra.mxu0 0
        %3401 = vmatprep.subr.bf16.mxu0 0
        %3402 = vmatpush2.bf16.msra.mxu0 0
        %3403 = vmatprep.subr.bf16.mxu0 0
        %3404 = vmatpush2.bf16.msra.mxu0 0
        %3405 = vmatprep.mubr.bf16.mxu0 0
        %3406 = vmatmul.mubr.bf16.gmra.mxu0 %v3104
        %v3407 = vpop.f32.mrf.mxu0
        %v3408 = vadd.f32 %v3151, %v3407
        %v3409 = vpop.f32.mrf.mxu0
        %v3410 = vadd.f32 %v3155, %v3409
        %v3411 = vpop.f32.mrf.mxu0
        %v3412 = vadd.f32 %v3151, %v3411
        %v3413 = vpop.f32.mrf.mxu0
        %v3414 = vadd.f32 %v3155, %v3413
        %3415 = vmatprep.mubr.bf16.mxu0 0
        %3416 = vmatmul.mubr.bf16.gmra.mxu0 %v3105
        %v3417 = vpop.f32.mrf.mxu0
        %v3418 = vadd.f32 %v3151, %v3417
        %v3419 = vpop.f32.mrf.mxu0
        %v3420 = vadd.f32 %v3155, %v3419
        %v3421 = vpop.f32.mrf.mxu0
        %v3422 = vadd.f32 %v3151, %v3421
        %v3423 = vpop.f32.mrf.mxu0
        %v3424 = vadd.f32 %v3155, %v3423
        %3425 = vdwg.mxu0
        %v3426 = vmax.f32 %v3355, 0.0
        %v3427 = vmax.f32 %v3357, 0.0
        %v3428 = vmax.f32 %v3408, 0.0
        %v3429 = vmax.f32 %v3410, 0.0
        %v3430 = vmax.f32 %v3359, 0.0
        %v3431 = vmax.f32 %v3361, 0.0
        %v3432 = vmax.f32 %v3412, 0.0
        %v3433 = vmax.f32 %v3414, 0.0
        %v3434 = vmax.f32 %v3365, 0.0
        %v3435 = vmax.f32 %v3367, 0.0
        %v3436 = vmax.f32 %v3418, 0.0
        %v3437 = vmax.f32 %v3420, 0.0
        %v3438 = vmax.f32 %v3369, 0.0
        %v3439 = vmax.f32 %v3371, 0.0
        %v3440 = vmax.f32 %v3422, 0.0
        %v3441 = vmax.f32 %v3424, 0.0
        %v3442 = vpack.c.bf16 %v3430, %v3426
        %v3443 = vpack.c.bf16 %v3431, %v3427
        %v3444 = vpack.c.bf16 %v3432, %v3428
        %v3445 = vpack.c.bf16 %v3433, %v3429
        %v3446 = vpack.c.bf16 %v3438, %v3434
        %v3447 = vpack.c.bf16 %v3439, %v3435
        %v3448 = vpack.c.bf16 %v3440, %v3436
        %v3449 = vpack.c.bf16 %v3441, %v3437
        %v3450 = vld [vmem:[#allocation13] sm:$0xff]
        %v3451 = vld [vmem:[#allocation13 + $0x8] sm:$0xff]
        %v3452 = vld [vmem:[#allocation13 + $0x10] sm:$0xff]
        %v3453 = vld [vmem:[#allocation13 + $0x18] sm:$0xff]
        %v3454 = vld [vmem:[#allocation13 + $0x20] sm:$0xff]
        %v3455 = vld [vmem:[#allocation13 + $0x28] sm:$0xff]
        %v3456 = vld [vmem:[#allocation13 + $0x30] sm:$0xff]
        %v3457 = vld [vmem:[#allocation13 + $0x38] sm:$0xff]
        %v3458 = vld [vmem:[#allocation13 + $0x40] sm:$0xff]
        %v3459 = vld [vmem:[#allocation13 + $0x48] sm:$0xff]
        %v3460 = vld [vmem:[#allocation13 + $0x50] sm:$0xff]
        %v3461 = vld [vmem:[#allocation13 + $0x58] sm:$0xff]
        %v3462 = vld [vmem:[#allocation13 + $0x60] sm:$0xff]
        %v3463 = vld [vmem:[#allocation13 + $0x68] sm:$0xff]
        %v3464 = vld [vmem:[#allocation13 + $0x70] sm:$0xff]
        %v3465 = vld [vmem:[#allocation13 + $0x78] sm:$0xff]
        %v3466 = vld [vmem:[#allocation13 + $0x80] sm:$0xff]
        %v3467 = vld [vmem:[#allocation13 + $0x88] sm:$0xff]
        %v3468 = vld [vmem:[#allocation13 + $0x90] sm:$0xff]
        %v3469 = vld [vmem:[#allocation13 + $0x98] sm:$0xff]
        %v3470 = vld [vmem:[#allocation13 + $0xa0] sm:$0xff]
        %v3471 = vld [vmem:[#allocation13 + $0xa8] sm:$0xff]
        %v3472 = vld [vmem:[#allocation13 + $0xb0] sm:$0xff]
        %v3473 = vld [vmem:[#allocation13 + $0xb8] sm:$0xff]
        %v3474 = vld [vmem:[#allocation13 + $0xc0] sm:$0xff]
        %v3475 = vld [vmem:[#allocation13 + $0xc8] sm:$0xff]
        %v3476 = vld [vmem:[#allocation13 + $0xd0] sm:$0xff]
        %v3477 = vld [vmem:[#allocation13 + $0xd8] sm:$0xff]
        %v3478 = vld [vmem:[#allocation13 + $0xe0] sm:$0xff]
        %v3479 = vld [vmem:[#allocation13 + $0xe8] sm:$0xff]
        %v3480 = vld [vmem:[#allocation13 + $0xf0] sm:$0xff]
        %v3481 = vld [vmem:[#allocation13 + $0xf8] sm:$0xff]
        %v3482 = vld [vmem:[#allocation13 + $0x100] sm:$0xff]
        %v3483 = vld [vmem:[#allocation13 + $0x108] sm:$0xff]
        %v3484 = vld [vmem:[#allocation13 + $0x110] sm:$0xff]
        %v3485 = vld [vmem:[#allocation13 + $0x118] sm:$0xff]
        %v3486 = vld [vmem:[#allocation13 + $0x120] sm:$0xff]
        %v3487 = vld [vmem:[#allocation13 + $0x128] sm:$0xff]
        %v3488 = vld [vmem:[#allocation13 + $0x130] sm:$0xff]
        %v3489 = vld [vmem:[#allocation13 + $0x138] sm:$0xff]
        %v3490 = vld [vmem:[#allocation13 + $0x140] sm:$0xff]
        %v3491 = vld [vmem:[#allocation13 + $0x148] sm:$0xff]
        %v3492 = vld [vmem:[#allocation13 + $0x150] sm:$0xff]
        %v3493 = vld [vmem:[#allocation13 + $0x158] sm:$0xff]
        %v3494 = vld [vmem:[#allocation13 + $0x160] sm:$0xff]
        %v3495 = vld [vmem:[#allocation13 + $0x168] sm:$0xff]
        %v3496 = vld [vmem:[#allocation13 + $0x170] sm:$0xff]
        %v3497 = vld [vmem:[#allocation13 + $0x178] sm:$0xff]
        %v3498 = vld [vmem:[#allocation13 + $0x180] sm:$0xff]
        %v3499 = vld [vmem:[#allocation13 + $0x188] sm:$0xff]
        %v3500 = vld [vmem:[#allocation13 + $0x190] sm:$0xff]
        %v3501 = vld [vmem:[#allocation13 + $0x198] sm:$0xff]
        %v3502 = vld [vmem:[#allocation13 + $0x1a0] sm:$0xff]
        %v3503 = vld [vmem:[#allocation13 + $0x1a8] sm:$0xff]
        %v3504 = vld [vmem:[#allocation13 + $0x1b0] sm:$0xff]
        %v3505 = vld [vmem:[#allocation13 + $0x1b8] sm:$0xff]
        %v3506 = vld [vmem:[#allocation13 + $0x1c0] sm:$0xff]
        %v3507 = vld [vmem:[#allocation13 + $0x1c8] sm:$0xff]
        %v3508 = vld [vmem:[#allocation13 + $0x1d0] sm:$0xff]
        %v3509 = vld [vmem:[#allocation13 + $0x1d8] sm:$0xff]
        %v3510 = vld [vmem:[#allocation13 + $0x1e0] sm:$0xff]
        %v3511 = vld [vmem:[#allocation13 + $0x1e8] sm:$0xff]
        %v3512 = vld [vmem:[#allocation13 + $0x1f0] sm:$0xff]
        %v3513 = vld [vmem:[#allocation13 + $0x1f8] sm:$0xff]
        %v3514 = vld [vmem:[#allocation13 + $0x200] sm:$0xff]
        %v3515 = vld [vmem:[#allocation13 + $0x208] sm:$0xff]
        %v3516 = vld [vmem:[#allocation13 + $0x210] sm:$0xff]
        %v3517 = vld [vmem:[#allocation13 + $0x218] sm:$0xff]
        %v3518 = vld [vmem:[#allocation13 + $0x220] sm:$0xff]
        %v3519 = vld [vmem:[#allocation13 + $0x228] sm:$0xff]
        %v3520 = vld [vmem:[#allocation13 + $0x230] sm:$0xff]
        %v3521 = vld [vmem:[#allocation13 + $0x238] sm:$0xff]
        %v3522 = vld [vmem:[#allocation13 + $0x240] sm:$0xff]
        %v3523 = vld [vmem:[#allocation13 + $0x248] sm:$0xff]
        %v3524 = vld [vmem:[#allocation13 + $0x250] sm:$0xff]
        %v3525 = vld [vmem:[#allocation13 + $0x258] sm:$0xff]
        %v3526 = vld [vmem:[#allocation13 + $0x260] sm:$0xff]
        %v3527 = vld [vmem:[#allocation13 + $0x268] sm:$0xff]
        %v3528 = vld [vmem:[#allocation13 + $0x270] sm:$0xff]
        %v3529 = vld [vmem:[#allocation13 + $0x278] sm:$0xff]
        %v3530 = vld [vmem:[#allocation13 + $0x280] sm:$0xff]
        %v3531 = vld [vmem:[#allocation13 + $0x288] sm:$0xff]
        %v3532 = vld [vmem:[#allocation13 + $0x290] sm:$0xff]
        %v3533 = vld [vmem:[#allocation13 + $0x298] sm:$0xff]
        %v3534 = vld [vmem:[#allocation13 + $0x2a0] sm:$0xff]
        %v3535 = vld [vmem:[#allocation13 + $0x2a8] sm:$0xff]
        %v3536 = vld [vmem:[#allocation13 + $0x2b0] sm:$0xff]
        %v3537 = vld [vmem:[#allocation13 + $0x2b8] sm:$0xff]
        %v3538 = vld [vmem:[#allocation13 + $0x2c0] sm:$0xff]
        %v3539 = vld [vmem:[#allocation13 + $0x2c8] sm:$0xff]
        %v3540 = vld [vmem:[#allocation13 + $0x2d0] sm:$0xff]
        %v3541 = vld [vmem:[#allocation13 + $0x2d8] sm:$0xff]
        %v3542 = vld [vmem:[#allocation13 + $0x2e0] sm:$0xff]
        %v3543 = vld [vmem:[#allocation13 + $0x2e8] sm:$0xff]
        %v3544 = vld [vmem:[#allocation13 + $0x2f0] sm:$0xff]
        %v3545 = vld [vmem:[#allocation13 + $0x2f8] sm:$0xff]
        %v3546 = vld [vmem:[#allocation13 + $0x300] sm:$0xff]
        %v3547 = vld [vmem:[#allocation13 + $0x308] sm:$0xff]
        %v3548 = vld [vmem:[#allocation13 + $0x310] sm:$0xff]
        %v3549 = vld [vmem:[#allocation13 + $0x318] sm:$0xff]
        %v3550 = vld [vmem:[#allocation13 + $0x320] sm:$0xff]
        %v3551 = vld [vmem:[#allocation13 + $0x328] sm:$0xff]
        %v3552 = vld [vmem:[#allocation13 + $0x330] sm:$0xff]
        %v3553 = vld [vmem:[#allocation13 + $0x338] sm:$0xff]
        %v3554 = vld [vmem:[#allocation13 + $0x340] sm:$0xff]
        %v3555 = vld [vmem:[#allocation13 + $0x348] sm:$0xff]
        %v3556 = vld [vmem:[#allocation13 + $0x350] sm:$0xff]
        %v3557 = vld [vmem:[#allocation13 + $0x358] sm:$0xff]
        %v3558 = vld [vmem:[#allocation13 + $0x360] sm:$0xff]
        %v3559 = vld [vmem:[#allocation13 + $0x368] sm:$0xff]
        %v3560 = vld [vmem:[#allocation13 + $0x370] sm:$0xff]
        %v3561 = vld [vmem:[#allocation13 + $0x378] sm:$0xff]
        %v3562 = vld [vmem:[#allocation13 + $0x380] sm:$0xff]
        %v3563 = vld [vmem:[#allocation13 + $0x388] sm:$0xff]
        %v3564 = vld [vmem:[#allocation13 + $0x390] sm:$0xff]
        %v3565 = vld [vmem:[#allocation13 + $0x398] sm:$0xff]
        %v3566 = vld [vmem:[#allocation13 + $0x3a0] sm:$0xff]
        %v3567 = vld [vmem:[#allocation13 + $0x3a8] sm:$0xff]
        %v3568 = vld [vmem:[#allocation13 + $0x3b0] sm:$0xff]
        %v3569 = vld [vmem:[#allocation13 + $0x3b8] sm:$0xff]
        %v3570 = vld [vmem:[#allocation13 + $0x3c0] sm:$0xff]
        %v3571 = vld [vmem:[#allocation13 + $0x3c8] sm:$0xff]
        %v3572 = vld [vmem:[#allocation13 + $0x3d0] sm:$0xff]
        %v3573 = vld [vmem:[#allocation13 + $0x3d8] sm:$0xff]
        %v3574 = vld [vmem:[#allocation13 + $0x3e0] sm:$0xff]
        %v3575 = vld [vmem:[#allocation13 + $0x3e8] sm:$0xff]
        %v3576 = vld [vmem:[#allocation13 + $0x3f0] sm:$0xff]
        %v3577 = vld [vmem:[#allocation13 + $0x3f8] sm:$0xff]
        %v3578 = vld [vmem:[#allocation13 + $0x400] sm:$0xff]
        %v3579 = vld [vmem:[#allocation13 + $0x408] sm:$0xff]
        %v3580 = vld [vmem:[#allocation13 + $0x410] sm:$0xff]
        %v3581 = vld [vmem:[#allocation13 + $0x418] sm:$0xff]
        %v3582 = vld [vmem:[#allocation13 + $0x420] sm:$0xff]
        %v3583 = vld [vmem:[#allocation13 + $0x428] sm:$0xff]
        %v3584 = vld [vmem:[#allocation13 + $0x430] sm:$0xff]
        %v3585 = vld [vmem:[#allocation13 + $0x438] sm:$0xff]
        %v3586 = vld [vmem:[#allocation13 + $0x440] sm:$0xff]
        %v3587 = vld [vmem:[#allocation13 + $0x448] sm:$0xff]
        %v3588 = vld [vmem:[#allocation13 + $0x450] sm:$0xff]
        %v3589 = vld [vmem:[#allocation13 + $0x458] sm:$0xff]
        %v3590 = vld [vmem:[#allocation13 + $0x460] sm:$0xff]
        %v3591 = vld [vmem:[#allocation13 + $0x468] sm:$0xff]
        %v3592 = vld [vmem:[#allocation13 + $0x470] sm:$0xff]
        %v3593 = vld [vmem:[#allocation13 + $0x478] sm:$0xff]
        %v3594 = vld [vmem:[#allocation13 + $0x480] sm:$0xff]
        %v3595 = vld [vmem:[#allocation13 + $0x488] sm:$0xff]
        %v3596 = vld [vmem:[#allocation13 + $0x490] sm:$0xff]
        %v3597 = vld [vmem:[#allocation13 + $0x498] sm:$0xff]
        %v3598 = vld [vmem:[#allocation13 + $0x4a0] sm:$0xff]
        %v3599 = vld [vmem:[#allocation13 + $0x4a8] sm:$0xff]
        %v3600 = vld [vmem:[#allocation13 + $0x4b0] sm:$0xff]
        %v3601 = vld [vmem:[#allocation13 + $0x4b8] sm:$0xff]
        %v3602 = vld [vmem:[#allocation13 + $0x4c0] sm:$0xff]
        %v3603 = vld [vmem:[#allocation13 + $0x4c8] sm:$0xff]
        %v3604 = vld [vmem:[#allocation13 + $0x4d0] sm:$0xff]
        %v3605 = vld [vmem:[#allocation13 + $0x4d8] sm:$0xff]
        %v3606 = vld [vmem:[#allocation13 + $0x4e0] sm:$0xff]
        %v3607 = vld [vmem:[#allocation13 + $0x4e8] sm:$0xff]
        %v3608 = vld [vmem:[#allocation13 + $0x4f0] sm:$0xff]
        %v3609 = vld [vmem:[#allocation13 + $0x4f8] sm:$0xff]
        %v3610 = vld [vmem:[#allocation13 + $0x500] sm:$0xff]
        %v3611 = vld [vmem:[#allocation13 + $0x508] sm:$0xff]
        %v3612 = vld [vmem:[#allocation13 + $0x510] sm:$0xff]
        %v3613 = vld [vmem:[#allocation13 + $0x518] sm:$0xff]
        %v3614 = vld [vmem:[#allocation13 + $0x520] sm:$0xff]
        %v3615 = vld [vmem:[#allocation13 + $0x528] sm:$0xff]
        %v3616 = vld [vmem:[#allocation13 + $0x530] sm:$0xff]
        %v3617 = vld [vmem:[#allocation13 + $0x538] sm:$0xff]
        %v3618 = vld [vmem:[#allocation13 + $0x540] sm:$0xff]
        %v3619 = vld [vmem:[#allocation13 + $0x548] sm:$0xff]
        %v3620 = vld [vmem:[#allocation13 + $0x550] sm:$0xff]
        %v3621 = vld [vmem:[#allocation13 + $0x558] sm:$0xff]
        %v3622 = vld [vmem:[#allocation13 + $0x560] sm:$0xff]
        %v3623 = vld [vmem:[#allocation13 + $0x568] sm:$0xff]
        %v3624 = vld [vmem:[#allocation13 + $0x570] sm:$0xff]
        %v3625 = vld [vmem:[#allocation13 + $0x578] sm:$0xff]
        %v3626 = vld [vmem:[#allocation13 + $0x580] sm:$0xff]
        %v3627 = vld [vmem:[#allocation13 + $0x588] sm:$0xff]
        %v3628 = vld [vmem:[#allocation13 + $0x590] sm:$0xff]
        %v3629 = vld [vmem:[#allocation13 + $0x598] sm:$0xff]
        %v3630 = vld [vmem:[#allocation13 + $0x5a0] sm:$0xff]
        %v3631 = vld [vmem:[#allocation13 + $0x5a8] sm:$0xff]
        %v3632 = vld [vmem:[#allocation13 + $0x5b0] sm:$0xff]
        %v3633 = vld [vmem:[#allocation13 + $0x5b8] sm:$0xff]
        %v3634 = vld [vmem:[#allocation13 + $0x5c0] sm:$0xff]
        %v3635 = vld [vmem:[#allocation13 + $0x5c8] sm:$0xff]
        %v3636 = vld [vmem:[#allocation13 + $0x5d0] sm:$0xff]
        %v3637 = vld [vmem:[#allocation13 + $0x5d8] sm:$0xff]
        %v3638 = vld [vmem:[#allocation13 + $0x5e0] sm:$0xff]
        %v3639 = vld [vmem:[#allocation13 + $0x5e8] sm:$0xff]
        %v3640 = vld [vmem:[#allocation13 + $0x5f0] sm:$0xff]
        %v3641 = vld [vmem:[#allocation13 + $0x5f8] sm:$0xff]
        %v3642 = vld [vmem:[#allocation13 + $0x600] sm:$0xff]
        %v3643 = vld [vmem:[#allocation13 + $0x608] sm:$0xff]
        %v3644 = vld [vmem:[#allocation13 + $0x610] sm:$0xff]
        %v3645 = vld [vmem:[#allocation13 + $0x618] sm:$0xff]
        %v3646 = vld [vmem:[#allocation13 + $0x620] sm:$0xff]
        %v3647 = vld [vmem:[#allocation13 + $0x628] sm:$0xff]
        %v3648 = vld [vmem:[#allocation13 + $0x630] sm:$0xff]
        %v3649 = vld [vmem:[#allocation13 + $0x638] sm:$0xff]
        %v3650 = vld [vmem:[#allocation13 + $0x640] sm:$0xff]
        %v3651 = vld [vmem:[#allocation13 + $0x648] sm:$0xff]
        %v3652 = vld [vmem:[#allocation13 + $0x650] sm:$0xff]
        %v3653 = vld [vmem:[#allocation13 + $0x658] sm:$0xff]
        %v3654 = vld [vmem:[#allocation13 + $0x660] sm:$0xff]
        %v3655 = vld [vmem:[#allocation13 + $0x668] sm:$0xff]
        %v3656 = vld [vmem:[#allocation13 + $0x670] sm:$0xff]
        %v3657 = vld [vmem:[#allocation13 + $0x678] sm:$0xff]
        %v3658 = vld [vmem:[#allocation13 + $0x680] sm:$0xff]
        %v3659 = vld [vmem:[#allocation13 + $0x688] sm:$0xff]
        %v3660 = vld [vmem:[#allocation13 + $0x690] sm:$0xff]
        %v3661 = vld [vmem:[#allocation13 + $0x698] sm:$0xff]
        %v3662 = vld [vmem:[#allocation13 + $0x6a0] sm:$0xff]
        %v3663 = vld [vmem:[#allocation13 + $0x6a8] sm:$0xff]
        %v3664 = vld [vmem:[#allocation13 + $0x6b0] sm:$0xff]
        %v3665 = vld [vmem:[#allocation13 + $0x6b8] sm:$0xff]
        %v3666 = vld [vmem:[#allocation13 + $0x6c0] sm:$0xff]
        %v3667 = vld [vmem:[#allocation13 + $0x6c8] sm:$0xff]
        %v3668 = vld [vmem:[#allocation13 + $0x6d0] sm:$0xff]
        %v3669 = vld [vmem:[#allocation13 + $0x6d8] sm:$0xff]
        %v3670 = vld [vmem:[#allocation13 + $0x6e0] sm:$0xff]
        %v3671 = vld [vmem:[#allocation13 + $0x6e8] sm:$0xff]
        %v3672 = vld [vmem:[#allocation13 + $0x6f0] sm:$0xff]
        %v3673 = vld [vmem:[#allocation13 + $0x6f8] sm:$0xff]
        %v3674 = vld [vmem:[#allocation13 + $0x700] sm:$0xff]
        %v3675 = vld [vmem:[#allocation13 + $0x708] sm:$0xff]
        %v3676 = vld [vmem:[#allocation13 + $0x710] sm:$0xff]
        %v3677 = vld [vmem:[#allocation13 + $0x718] sm:$0xff]
        %v3678 = vld [vmem:[#allocation13 + $0x720] sm:$0xff]
        %v3679 = vld [vmem:[#allocation13 + $0x728] sm:$0xff]
        %v3680 = vld [vmem:[#allocation13 + $0x730] sm:$0xff]
        %v3681 = vld [vmem:[#allocation13 + $0x738] sm:$0xff]
        %v3682 = vld [vmem:[#allocation13 + $0x740] sm:$0xff]
        %v3683 = vld [vmem:[#allocation13 + $0x748] sm:$0xff]
        %v3684 = vld [vmem:[#allocation13 + $0x750] sm:$0xff]
        %v3685 = vld [vmem:[#allocation13 + $0x758] sm:$0xff]
        %v3686 = vld [vmem:[#allocation13 + $0x760] sm:$0xff]
        %v3687 = vld [vmem:[#allocation13 + $0x768] sm:$0xff]
        %v3688 = vld [vmem:[#allocation13 + $0x770] sm:$0xff]
        %v3689 = vld [vmem:[#allocation13 + $0x778] sm:$0xff]
        %v3690 = vld [vmem:[#allocation13 + $0x780] sm:$0xff]
        %v3691 = vld [vmem:[#allocation13 + $0x788] sm:$0xff]
        %v3692 = vld [vmem:[#allocation13 + $0x790] sm:$0xff]
        %v3693 = vld [vmem:[#allocation13 + $0x798] sm:$0xff]
        %v3694 = vld [vmem:[#allocation13 + $0x7a0] sm:$0xff]
        %v3695 = vld [vmem:[#allocation13 + $0x7a8] sm:$0xff]
        %v3696 = vld [vmem:[#allocation13 + $0x7b0] sm:$0xff]
        %v3697 = vld [vmem:[#allocation13 + $0x7b8] sm:$0xff]
        %v3698 = vld [vmem:[#allocation13 + $0x7c0] sm:$0xff]
        %v3699 = vld [vmem:[#allocation13 + $0x7c8] sm:$0xff]
        %v3700 = vld [vmem:[#allocation13 + $0x7d0] sm:$0xff]
        %v3701 = vld [vmem:[#allocation13 + $0x7d8] sm:$0xff]
        %v3702 = vld [vmem:[#allocation13 + $0x7e0] sm:$0xff]
        %v3703 = vld [vmem:[#allocation13 + $0x7e8] sm:$0xff]
        %v3704 = vld [vmem:[#allocation13 + $0x7f0] sm:$0xff]
        %v3705 = vld [vmem:[#allocation13 + $0x7f8] sm:$0xff]
        %v3706 = vld [vmem:[%s10] sm:$0xff]
        %v3708 = vlaneseq
        %v3709 = vshrl.u32 %v3708, 7
        %v3710 = vsub.s32 0, %v3709
        %v3711 = vrot.slane %v3706, %v3710
        %v3712 = vlaneseq
        %v3713 = vshrl.u32 %v3712, 7
        %v3714 = vsub.s32 1, %v3713
        %v3715 = vrot.slane %v3706, %v3714
        %v3716 = vlaneseq
        %v3717 = vshrl.u32 %v3716, 7
        %v3718 = vsub.s32 2, %v3717
        %v3719 = vrot.slane %v3706, %v3718
        %v3720 = vlaneseq
        %v3721 = vshrl.u32 %v3720, 7
        %v3722 = vsub.s32 3, %v3721
        %v3723 = vrot.slane %v3706, %v3722
        %v3724 = vlaneseq
        %v3725 = vshrl.u32 %v3724, 7
        %v3726 = vsub.s32 4, %v3725
        %v3727 = vrot.slane %v3706, %v3726
        %v3728 = vlaneseq
        %v3729 = vshrl.u32 %v3728, 7
        %v3730 = vsub.s32 5, %v3729
        %v3731 = vrot.slane %v3706, %v3730
        %v3732 = vlaneseq
        %v3733 = vshrl.u32 %v3732, 7
        %v3734 = vsub.s32 6, %v3733
        %v3735 = vrot.slane %v3706, %v3734
        %v3736 = vlaneseq
        %v3737 = vshrl.u32 %v3736, 7
        %v3738 = vsub.s32 7, %v3737
        %v3739 = vrot.slane %v3706, %v3738
        %v4004 = vunpack.c.l.b16 %v3450
        %v4005 = vunpack.c.h.b16 %v3450
        %v4006 = vunpack.c.l.b16 %v3451
        %v4007 = vunpack.c.h.b16 %v3451
        %v4008 = vunpack.c.l.b16 %v3452
        %v4009 = vunpack.c.h.b16 %v3452
        %v4010 = vunpack.c.l.b16 %v3453
        %v4011 = vunpack.c.h.b16 %v3453
        %v4012 = vunpack.c.l.b16 %v3454
        %v4013 = vunpack.c.h.b16 %v3454
        %v4014 = vunpack.c.l.b16 %v3455
        %v4015 = vunpack.c.h.b16 %v3455
        %v4016 = vunpack.c.l.b16 %v3456
        %v4017 = vunpack.c.h.b16 %v3456
        %v4018 = vunpack.c.l.b16 %v3457
        %v4019 = vunpack.c.h.b16 %v3457
        %v4020 = vunpack.c.l.b16 %v3458
        %v4021 = vunpack.c.h.b16 %v3458
        %v4022 = vunpack.c.l.b16 %v3459
        %v4023 = vunpack.c.h.b16 %v3459
        %v4024 = vunpack.c.l.b16 %v3460
        %v4025 = vunpack.c.h.b16 %v3460
        %v4026 = vunpack.c.l.b16 %v3461
        %v4027 = vunpack.c.h.b16 %v3461
        %v4028 = vunpack.c.l.b16 %v3462
        %v4029 = vunpack.c.h.b16 %v3462
        %v4030 = vunpack.c.l.b16 %v3463
        %v4031 = vunpack.c.h.b16 %v3463
        %v4032 = vunpack.c.l.b16 %v3464
        %v4033 = vunpack.c.h.b16 %v3464
        %v4034 = vunpack.c.l.b16 %v3465
        %v4035 = vunpack.c.h.b16 %v3465
        %v4036 = vunpack.c.l.b16 %v3466
        %v4037 = vunpack.c.h.b16 %v3466
        %v4038 = vunpack.c.l.b16 %v3467
        %v4039 = vunpack.c.h.b16 %v3467
        %v4040 = vunpack.c.l.b16 %v3468
        %v4041 = vunpack.c.h.b16 %v3468
        %v4042 = vunpack.c.l.b16 %v3469
        %v4043 = vunpack.c.h.b16 %v3469
        %v4044 = vunpack.c.l.b16 %v3470
        %v4045 = vunpack.c.h.b16 %v3470
        %v4046 = vunpack.c.l.b16 %v3471
        %v4047 = vunpack.c.h.b16 %v3471
        %v4048 = vunpack.c.l.b16 %v3472
        %v4049 = vunpack.c.h.b16 %v3472
        %v4050 = vunpack.c.l.b16 %v3473
        %v4051 = vunpack.c.h.b16 %v3473
        %v4052 = vunpack.c.l.b16 %v3474
        %v4053 = vunpack.c.h.b16 %v3474
        %v4054 = vunpack.c.l.b16 %v3475
        %v4055 = vunpack.c.h.b16 %v3475
        %v4056 = vunpack.c.l.b16 %v3476
        %v4057 = vunpack.c.h.b16 %v3476
        %v4058 = vunpack.c.l.b16 %v3477
        %v4059 = vunpack.c.h.b16 %v3477
        %v4060 = vunpack.c.l.b16 %v3478
        %v4061 = vunpack.c.h.b16 %v3478
        %v4062 = vunpack.c.l.b16 %v3479
        %v4063 = vunpack.c.h.b16 %v3479
        %v4064 = vunpack.c.l.b16 %v3480
        %v4065 = vunpack.c.h.b16 %v3480
        %v4066 = vunpack.c.l.b16 %v3481
        %v4067 = vunpack.c.h.b16 %v3481
        %v4068 = vunpack.c.l.b16 %v3482
        %v4069 = vunpack.c.h.b16 %v3482
        %v4070 = vunpack.c.l.b16 %v3483
        %v4071 = vunpack.c.h.b16 %v3483
        %v4072 = vunpack.c.l.b16 %v3484
        %v4073 = vunpack.c.h.b16 %v3484
        %v4074 = vunpack.c.l.b16 %v3485
        %v4075 = vunpack.c.h.b16 %v3485
        %v4076 = vunpack.c.l.b16 %v3486
        %v4077 = vunpack.c.h.b16 %v3486
        %v4078 = vunpack.c.l.b16 %v3487
        %v4079 = vunpack.c.h.b16 %v3487
        %v4080 = vunpack.c.l.b16 %v3488
        %v4081 = vunpack.c.h.b16 %v3488
        %v4082 = vunpack.c.l.b16 %v3489
        %v4083 = vunpack.c.h.b16 %v3489
        %v4084 = vunpack.c.l.b16 %v3490
        %v4085 = vunpack.c.h.b16 %v3490
        %v4086 = vunpack.c.l.b16 %v3491
        %v4087 = vunpack.c.h.b16 %v3491
        %v4088 = vunpack.c.l.b16 %v3492
        %v4089 = vunpack.c.h.b16 %v3492
        %v4090 = vunpack.c.l.b16 %v3493
        %v4091 = vunpack.c.h.b16 %v3493
        %v4092 = vunpack.c.l.b16 %v3494
        %v4093 = vunpack.c.h.b16 %v3494
        %v4094 = vunpack.c.l.b16 %v3495
        %v4095 = vunpack.c.h.b16 %v3495
        %v4096 = vunpack.c.l.b16 %v3496
        %v4097 = vunpack.c.h.b16 %v3496
        %v4098 = vunpack.c.l.b16 %v3497
        %v4099 = vunpack.c.h.b16 %v3497
        %v4100 = vunpack.c.l.b16 %v3498
        %v4101 = vunpack.c.h.b16 %v3498
        %v4102 = vunpack.c.l.b16 %v3499
        %v4103 = vunpack.c.h.b16 %v3499
        %v4104 = vunpack.c.l.b16 %v3500
        %v4105 = vunpack.c.h.b16 %v3500
        %v4106 = vunpack.c.l.b16 %v3501
        %v4107 = vunpack.c.h.b16 %v3501
        %v4108 = vunpack.c.l.b16 %v3502
        %v4109 = vunpack.c.h.b16 %v3502
        %v4110 = vunpack.c.l.b16 %v3503
        %v4111 = vunpack.c.h.b16 %v3503
        %v4112 = vunpack.c.l.b16 %v3504
        %v4113 = vunpack.c.h.b16 %v3504
        %v4114 = vunpack.c.l.b16 %v3505
        %v4115 = vunpack.c.h.b16 %v3505
        %v4116 = vunpack.c.l.b16 %v3506
        %v4117 = vunpack.c.h.b16 %v3506
        %v4118 = vunpack.c.l.b16 %v3507
        %v4119 = vunpack.c.h.b16 %v3507
        %v4120 = vunpack.c.l.b16 %v3508
        %v4121 = vunpack.c.h.b16 %v3508
        %v4122 = vunpack.c.l.b16 %v3509
        %v4123 = vunpack.c.h.b16 %v3509
        %v4124 = vunpack.c.l.b16 %v3510
        %v4125 = vunpack.c.h.b16 %v3510
        %v4126 = vunpack.c.l.b16 %v3511
        %v4127 = vunpack.c.h.b16 %v3511
        %v4128 = vunpack.c.l.b16 %v3512
        %v4129 = vunpack.c.h.b16 %v3512
        %v4130 = vunpack.c.l.b16 %v3513
        %v4131 = vunpack.c.h.b16 %v3513
        %v4132 = vunpack.c.l.b16 %v3514
        %v4133 = vunpack.c.h.b16 %v3514
        %v4134 = vunpack.c.l.b16 %v3515
        %v4135 = vunpack.c.h.b16 %v3515
        %v4136 = vunpack.c.l.b16 %v3516
        %v4137 = vunpack.c.h.b16 %v3516
        %v4138 = vunpack.c.l.b16 %v3517
        %v4139 = vunpack.c.h.b16 %v3517
        %v4140 = vunpack.c.l.b16 %v3518
        %v4141 = vunpack.c.h.b16 %v3518
        %v4142 = vunpack.c.l.b16 %v3519
        %v4143 = vunpack.c.h.b16 %v3519
        %v4144 = vunpack.c.l.b16 %v3520
        %v4145 = vunpack.c.h.b16 %v3520
        %v4146 = vunpack.c.l.b16 %v3521
        %v4147 = vunpack.c.h.b16 %v3521
        %v4148 = vunpack.c.l.b16 %v3522
        %v4149 = vunpack.c.h.b16 %v3522
        %v4150 = vunpack.c.l.b16 %v3523
        %v4151 = vunpack.c.h.b16 %v3523
        %v4152 = vunpack.c.l.b16 %v3524
        %v4153 = vunpack.c.h.b16 %v3524
        %v4154 = vunpack.c.l.b16 %v3525
        %v4155 = vunpack.c.h.b16 %v3525
        %v4156 = vunpack.c.l.b16 %v3526
        %v4157 = vunpack.c.h.b16 %v3526
        %v4158 = vunpack.c.l.b16 %v3527
        %v4159 = vunpack.c.h.b16 %v3527
        %v4160 = vunpack.c.l.b16 %v3528
        %v4161 = vunpack.c.h.b16 %v3528
        %v4162 = vunpack.c.l.b16 %v3529
        %v4163 = vunpack.c.h.b16 %v3529
        %v4164 = vunpack.c.l.b16 %v3530
        %v4165 = vunpack.c.h.b16 %v3530
        %v4166 = vunpack.c.l.b16 %v3531
        %v4167 = vunpack.c.h.b16 %v3531
        %v4168 = vunpack.c.l.b16 %v3532
        %v4169 = vunpack.c.h.b16 %v3532
        %v4170 = vunpack.c.l.b16 %v3533
        %v4171 = vunpack.c.h.b16 %v3533
        %v4172 = vunpack.c.l.b16 %v3534
        %v4173 = vunpack.c.h.b16 %v3534
        %v4174 = vunpack.c.l.b16 %v3535
        %v4175 = vunpack.c.h.b16 %v3535
        %v4176 = vunpack.c.l.b16 %v3536
        %v4177 = vunpack.c.h.b16 %v3536
        %v4178 = vunpack.c.l.b16 %v3537
        %v4179 = vunpack.c.h.b16 %v3537
        %v4180 = vunpack.c.l.b16 %v3538
        %v4181 = vunpack.c.h.b16 %v3538
        %v4182 = vunpack.c.l.b16 %v3539
        %v4183 = vunpack.c.h.b16 %v3539
        %v4184 = vunpack.c.l.b16 %v3540
        %v4185 = vunpack.c.h.b16 %v3540
        %v4186 = vunpack.c.l.b16 %v3541
        %v4187 = vunpack.c.h.b16 %v3541
        %v4188 = vunpack.c.l.b16 %v3542
        %v4189 = vunpack.c.h.b16 %v3542
        %v4190 = vunpack.c.l.b16 %v3543
        %v4191 = vunpack.c.h.b16 %v3543
        %v4192 = vunpack.c.l.b16 %v3544
        %v4193 = vunpack.c.h.b16 %v3544
        %v4194 = vunpack.c.l.b16 %v3545
        %v4195 = vunpack.c.h.b16 %v3545
        %v4196 = vunpack.c.l.b16 %v3546
        %v4197 = vunpack.c.h.b16 %v3546
        %v4198 = vunpack.c.l.b16 %v3547
        %v4199 = vunpack.c.h.b16 %v3547
        %v4200 = vunpack.c.l.b16 %v3548
        %v4201 = vunpack.c.h.b16 %v3548
        %v4202 = vunpack.c.l.b16 %v3549
        %v4203 = vunpack.c.h.b16 %v3549
        %v4204 = vunpack.c.l.b16 %v3550
        %v4205 = vunpack.c.h.b16 %v3550
        %v4206 = vunpack.c.l.b16 %v3551
        %v4207 = vunpack.c.h.b16 %v3551
        %v4208 = vunpack.c.l.b16 %v3552
        %v4209 = vunpack.c.h.b16 %v3552
        %v4210 = vunpack.c.l.b16 %v3553
        %v4211 = vunpack.c.h.b16 %v3553
        %v4212 = vunpack.c.l.b16 %v3554
        %v4213 = vunpack.c.h.b16 %v3554
        %v4214 = vunpack.c.l.b16 %v3555
        %v4215 = vunpack.c.h.b16 %v3555
        %v4216 = vunpack.c.l.b16 %v3556
        %v4217 = vunpack.c.h.b16 %v3556
        %v4218 = vunpack.c.l.b16 %v3557
        %v4219 = vunpack.c.h.b16 %v3557
        %v4220 = vunpack.c.l.b16 %v3558
        %v4221 = vunpack.c.h.b16 %v3558
        %v4222 = vunpack.c.l.b16 %v3559
        %v4223 = vunpack.c.h.b16 %v3559
        %v4224 = vunpack.c.l.b16 %v3560
        %v4225 = vunpack.c.h.b16 %v3560
        %v4226 = vunpack.c.l.b16 %v3561
        %v4227 = vunpack.c.h.b16 %v3561
        %v4228 = vunpack.c.l.b16 %v3562
        %v4229 = vunpack.c.h.b16 %v3562
        %v4230 = vunpack.c.l.b16 %v3563
        %v4231 = vunpack.c.h.b16 %v3563
        %v4232 = vunpack.c.l.b16 %v3564
        %v4233 = vunpack.c.h.b16 %v3564
        %v4234 = vunpack.c.l.b16 %v3565
        %v4235 = vunpack.c.h.b16 %v3565
        %v4236 = vunpack.c.l.b16 %v3566
        %v4237 = vunpack.c.h.b16 %v3566
        %v4238 = vunpack.c.l.b16 %v3567
        %v4239 = vunpack.c.h.b16 %v3567
        %v4240 = vunpack.c.l.b16 %v3568
        %v4241 = vunpack.c.h.b16 %v3568
        %v4242 = vunpack.c.l.b16 %v3569
        %v4243 = vunpack.c.h.b16 %v3569
        %v4244 = vunpack.c.l.b16 %v3570
        %v4245 = vunpack.c.h.b16 %v3570
        %v4246 = vunpack.c.l.b16 %v3571
        %v4247 = vunpack.c.h.b16 %v3571
        %v4248 = vunpack.c.l.b16 %v3572
        %v4249 = vunpack.c.h.b16 %v3572
        %v4250 = vunpack.c.l.b16 %v3573
        %v4251 = vunpack.c.h.b16 %v3573
        %v4252 = vunpack.c.l.b16 %v3574
        %v4253 = vunpack.c.h.b16 %v3574
        %v4254 = vunpack.c.l.b16 %v3575
        %v4255 = vunpack.c.h.b16 %v3575
        %v4256 = vunpack.c.l.b16 %v3576
        %v4257 = vunpack.c.h.b16 %v3576
        %v4258 = vunpack.c.l.b16 %v3577
        %v4259 = vunpack.c.h.b16 %v3577
        %v4260 = vunpack.c.l.b16 %v3578
        %v4261 = vunpack.c.h.b16 %v3578
        %v4262 = vunpack.c.l.b16 %v3579
        %v4263 = vunpack.c.h.b16 %v3579
        %v4264 = vunpack.c.l.b16 %v3580
        %v4265 = vunpack.c.h.b16 %v3580
        %v4266 = vunpack.c.l.b16 %v3581
        %v4267 = vunpack.c.h.b16 %v3581
        %v4268 = vunpack.c.l.b16 %v3582
        %v4269 = vunpack.c.h.b16 %v3582
        %v4270 = vunpack.c.l.b16 %v3583
        %v4271 = vunpack.c.h.b16 %v3583
        %v4272 = vunpack.c.l.b16 %v3584
        %v4273 = vunpack.c.h.b16 %v3584
        %v4274 = vunpack.c.l.b16 %v3585
        %v4275 = vunpack.c.h.b16 %v3585
        %v4276 = vunpack.c.l.b16 %v3586
        %v4277 = vunpack.c.h.b16 %v3586
        %v4278 = vunpack.c.l.b16 %v3587
        %v4279 = vunpack.c.h.b16 %v3587
        %v4280 = vunpack.c.l.b16 %v3588
        %v4281 = vunpack.c.h.b16 %v3588
        %v4282 = vunpack.c.l.b16 %v3589
        %v4283 = vunpack.c.h.b16 %v3589
        %v4284 = vunpack.c.l.b16 %v3590
        %v4285 = vunpack.c.h.b16 %v3590
        %v4286 = vunpack.c.l.b16 %v3591
        %v4287 = vunpack.c.h.b16 %v3591
        %v4288 = vunpack.c.l.b16 %v3592
        %v4289 = vunpack.c.h.b16 %v3592
        %v4290 = vunpack.c.l.b16 %v3593
        %v4291 = vunpack.c.h.b16 %v3593
        %v4292 = vunpack.c.l.b16 %v3594
        %v4293 = vunpack.c.h.b16 %v3594
        %v4294 = vunpack.c.l.b16 %v3595
        %v4295 = vunpack.c.h.b16 %v3595
        %v4296 = vunpack.c.l.b16 %v3596
        %v4297 = vunpack.c.h.b16 %v3596
        %v4298 = vunpack.c.l.b16 %v3597
        %v4299 = vunpack.c.h.b16 %v3597
        %v4300 = vunpack.c.l.b16 %v3598
        %v4301 = vunpack.c.h.b16 %v3598
        %v4302 = vunpack.c.l.b16 %v3599
        %v4303 = vunpack.c.h.b16 %v3599
        %v4304 = vunpack.c.l.b16 %v3600
        %v4305 = vunpack.c.h.b16 %v3600
        %v4306 = vunpack.c.l.b16 %v3601
        %v4307 = vunpack.c.h.b16 %v3601
        %v4308 = vunpack.c.l.b16 %v3602
        %v4309 = vunpack.c.h.b16 %v3602
        %v4310 = vunpack.c.l.b16 %v3603
        %v4311 = vunpack.c.h.b16 %v3603
        %v4312 = vunpack.c.l.b16 %v3604
        %v4313 = vunpack.c.h.b16 %v3604
        %v4314 = vunpack.c.l.b16 %v3605
        %v4315 = vunpack.c.h.b16 %v3605
        %v4316 = vunpack.c.l.b16 %v3606
        %v4317 = vunpack.c.h.b16 %v3606
        %v4318 = vunpack.c.l.b16 %v3607
        %v4319 = vunpack.c.h.b16 %v3607
        %v4320 = vunpack.c.l.b16 %v3608
        %v4321 = vunpack.c.h.b16 %v3608
        %v4322 = vunpack.c.l.b16 %v3609
        %v4323 = vunpack.c.h.b16 %v3609
        %v4324 = vunpack.c.l.b16 %v3610
        %v4325 = vunpack.c.h.b16 %v3610
        %v4326 = vunpack.c.l.b16 %v3611
        %v4327 = vunpack.c.h.b16 %v3611
        %v4328 = vunpack.c.l.b16 %v3612
        %v4329 = vunpack.c.h.b16 %v3612
        %v4330 = vunpack.c.l.b16 %v3613
        %v4331 = vunpack.c.h.b16 %v3613
        %v4332 = vunpack.c.l.b16 %v3614
        %v4333 = vunpack.c.h.b16 %v3614
        %v4334 = vunpack.c.l.b16 %v3615
        %v4335 = vunpack.c.h.b16 %v3615
        %v4336 = vunpack.c.l.b16 %v3616
        %v4337 = vunpack.c.h.b16 %v3616
        %v4338 = vunpack.c.l.b16 %v3617
        %v4339 = vunpack.c.h.b16 %v3617
        %v4340 = vunpack.c.l.b16 %v3618
        %v4341 = vunpack.c.h.b16 %v3618
        %v4342 = vunpack.c.l.b16 %v3619
        %v4343 = vunpack.c.h.b16 %v3619
        %v4344 = vunpack.c.l.b16 %v3620
        %v4345 = vunpack.c.h.b16 %v3620
        %v4346 = vunpack.c.l.b16 %v3621
        %v4347 = vunpack.c.h.b16 %v3621
        %v4348 = vunpack.c.l.b16 %v3622
        %v4349 = vunpack.c.h.b16 %v3622
        %v4350 = vunpack.c.l.b16 %v3623
        %v4351 = vunpack.c.h.b16 %v3623
        %v4352 = vunpack.c.l.b16 %v3624
        %v4353 = vunpack.c.h.b16 %v3624
        %v4354 = vunpack.c.l.b16 %v3625
        %v4355 = vunpack.c.h.b16 %v3625
        %v4356 = vunpack.c.l.b16 %v3626
        %v4357 = vunpack.c.h.b16 %v3626
        %v4358 = vunpack.c.l.b16 %v3627
        %v4359 = vunpack.c.h.b16 %v3627
        %v4360 = vunpack.c.l.b16 %v3628
        %v4361 = vunpack.c.h.b16 %v3628
        %v4362 = vunpack.c.l.b16 %v3629
        %v4363 = vunpack.c.h.b16 %v3629
        %v4364 = vunpack.c.l.b16 %v3630
        %v4365 = vunpack.c.h.b16 %v3630
        %v4366 = vunpack.c.l.b16 %v3631
        %v4367 = vunpack.c.h.b16 %v3631
        %v4368 = vunpack.c.l.b16 %v3632
        %v4369 = vunpack.c.h.b16 %v3632
        %v4370 = vunpack.c.l.b16 %v3633
        %v4371 = vunpack.c.h.b16 %v3633
        %v4372 = vunpack.c.l.b16 %v3634
        %v4373 = vunpack.c.h.b16 %v3634
        %v4374 = vunpack.c.l.b16 %v3635
        %v4375 = vunpack.c.h.b16 %v3635
        %v4376 = vunpack.c.l.b16 %v3636
        %v4377 = vunpack.c.h.b16 %v3636
        %v4378 = vunpack.c.l.b16 %v3637
        %v4379 = vunpack.c.h.b16 %v3637
        %v4380 = vunpack.c.l.b16 %v3638
        %v4381 = vunpack.c.h.b16 %v3638
        %v4382 = vunpack.c.l.b16 %v3639
        %v4383 = vunpack.c.h.b16 %v3639
        %v4384 = vunpack.c.l.b16 %v3640
        %v4385 = vunpack.c.h.b16 %v3640
        %v4386 = vunpack.c.l.b16 %v3641
        %v4387 = vunpack.c.h.b16 %v3641
        %v4388 = vunpack.c.l.b16 %v3642
        %v4389 = vunpack.c.h.b16 %v3642
        %v4390 = vunpack.c.l.b16 %v3643
        %v4391 = vunpack.c.h.b16 %v3643
        %v4392 = vunpack.c.l.b16 %v3644
        %v4393 = vunpack.c.h.b16 %v3644
        %v4394 = vunpack.c.l.b16 %v3645
        %v4395 = vunpack.c.h.b16 %v3645
        %v4396 = vunpack.c.l.b16 %v3646
        %v4397 = vunpack.c.h.b16 %v3646
        %v4398 = vunpack.c.l.b16 %v3647
        %v4399 = vunpack.c.h.b16 %v3647
        %v4400 = vunpack.c.l.b16 %v3648
        %v4401 = vunpack.c.h.b16 %v3648
        %v4402 = vunpack.c.l.b16 %v3649
        %v4403 = vunpack.c.h.b16 %v3649
        %v4404 = vunpack.c.l.b16 %v3650
        %v4405 = vunpack.c.h.b16 %v3650
        %v4406 = vunpack.c.l.b16 %v3651
        %v4407 = vunpack.c.h.b16 %v3651
        %v4408 = vunpack.c.l.b16 %v3652
        %v4409 = vunpack.c.h.b16 %v3652
        %v4410 = vunpack.c.l.b16 %v3653
        %v4411 = vunpack.c.h.b16 %v3653
        %v4412 = vunpack.c.l.b16 %v3654
        %v4413 = vunpack.c.h.b16 %v3654
        %v4414 = vunpack.c.l.b16 %v3655
        %v4415 = vunpack.c.h.b16 %v3655
        %v4416 = vunpack.c.l.b16 %v3656
        %v4417 = vunpack.c.h.b16 %v3656
        %v4418 = vunpack.c.l.b16 %v3657
        %v4419 = vunpack.c.h.b16 %v3657
        %v4420 = vunpack.c.l.b16 %v3658
        %v4421 = vunpack.c.h.b16 %v3658
        %v4422 = vunpack.c.l.b16 %v3659
        %v4423 = vunpack.c.h.b16 %v3659
        %v4424 = vunpack.c.l.b16 %v3660
        %v4425 = vunpack.c.h.b16 %v3660
        %v4426 = vunpack.c.l.b16 %v3661
        %v4427 = vunpack.c.h.b16 %v3661
        %v4428 = vunpack.c.l.b16 %v3662
        %v4429 = vunpack.c.h.b16 %v3662
        %v4430 = vunpack.c.l.b16 %v3663
        %v4431 = vunpack.c.h.b16 %v3663
        %v4432 = vunpack.c.l.b16 %v3664
        %v4433 = vunpack.c.h.b16 %v3664
        %v4434 = vunpack.c.l.b16 %v3665
        %v4435 = vunpack.c.h.b16 %v3665
        %v4436 = vunpack.c.l.b16 %v3666
        %v4437 = vunpack.c.h.b16 %v3666
        %v4438 = vunpack.c.l.b16 %v3667
        %v4439 = vunpack.c.h.b16 %v3667
        %v4440 = vunpack.c.l.b16 %v3668
        %v4441 = vunpack.c.h.b16 %v3668
        %v4442 = vunpack.c.l.b16 %v3669
        %v4443 = vunpack.c.h.b16 %v3669
        %v4444 = vunpack.c.l.b16 %v3670
        %v4445 = vunpack.c.h.b16 %v3670
        %v4446 = vunpack.c.l.b16 %v3671
        %v4447 = vunpack.c.h.b16 %v3671
        %v4448 = vunpack.c.l.b16 %v3672
        %v4449 = vunpack.c.h.b16 %v3672
        %v4450 = vunpack.c.l.b16 %v3673
        %v4451 = vunpack.c.h.b16 %v3673
        %v4452 = vunpack.c.l.b16 %v3674
        %v4453 = vunpack.c.h.b16 %v3674
        %v4454 = vunpack.c.l.b16 %v3675
        %v4455 = vunpack.c.h.b16 %v3675
        %v4456 = vunpack.c.l.b16 %v3676
        %v4457 = vunpack.c.h.b16 %v3676
        %v4458 = vunpack.c.l.b16 %v3677
        %v4459 = vunpack.c.h.b16 %v3677
        %v4460 = vunpack.c.l.b16 %v3678
        %v4461 = vunpack.c.h.b16 %v3678
        %v4462 = vunpack.c.l.b16 %v3679
        %v4463 = vunpack.c.h.b16 %v3679
        %v4464 = vunpack.c.l.b16 %v3680
        %v4465 = vunpack.c.h.b16 %v3680
        %v4466 = vunpack.c.l.b16 %v3681
        %v4467 = vunpack.c.h.b16 %v3681
        %v4468 = vunpack.c.l.b16 %v3682
        %v4469 = vunpack.c.h.b16 %v3682
        %v4470 = vunpack.c.l.b16 %v3683
        %v4471 = vunpack.c.h.b16 %v3683
        %v4472 = vunpack.c.l.b16 %v3684
        %v4473 = vunpack.c.h.b16 %v3684
        %v4474 = vunpack.c.l.b16 %v3685
        %v4475 = vunpack.c.h.b16 %v3685
        %v4476 = vunpack.c.l.b16 %v3686
        %v4477 = vunpack.c.h.b16 %v3686
        %v4478 = vunpack.c.l.b16 %v3687
        %v4479 = vunpack.c.h.b16 %v3687
        %v4480 = vunpack.c.l.b16 %v3688
        %v4481 = vunpack.c.h.b16 %v3688
        %v4482 = vunpack.c.l.b16 %v3689
        %v4483 = vunpack.c.h.b16 %v3689
        %v4484 = vunpack.c.l.b16 %v3690
        %v4485 = vunpack.c.h.b16 %v3690
        %v4486 = vunpack.c.l.b16 %v3691
        %v4487 = vunpack.c.h.b16 %v3691
        %v4488 = vunpack.c.l.b16 %v3692
        %v4489 = vunpack.c.h.b16 %v3692
        %v4490 = vunpack.c.l.b16 %v3693
        %v4491 = vunpack.c.h.b16 %v3693
        %v4492 = vunpack.c.l.b16 %v3694
        %v4493 = vunpack.c.h.b16 %v3694
        %v4494 = vunpack.c.l.b16 %v3695
        %v4495 = vunpack.c.h.b16 %v3695
        %v4496 = vunpack.c.l.b16 %v3696
        %v4497 = vunpack.c.h.b16 %v3696
        %v4498 = vunpack.c.l.b16 %v3697
        %v4499 = vunpack.c.h.b16 %v3697
        %v4500 = vunpack.c.l.b16 %v3698
        %v4501 = vunpack.c.h.b16 %v3698
        %v4502 = vunpack.c.l.b16 %v3699
        %v4503 = vunpack.c.h.b16 %v3699
        %v4504 = vunpack.c.l.b16 %v3700
        %v4505 = vunpack.c.h.b16 %v3700
        %v4506 = vunpack.c.l.b16 %v3701
        %v4507 = vunpack.c.h.b16 %v3701
        %v4508 = vunpack.c.l.b16 %v3702
        %v4509 = vunpack.c.h.b16 %v3702
        %v4510 = vunpack.c.l.b16 %v3703
        %v4511 = vunpack.c.h.b16 %v3703
        %v4512 = vunpack.c.l.b16 %v3704
        %v4513 = vunpack.c.h.b16 %v3704
        %v4514 = vunpack.c.l.b16 %v3705
        %v4515 = vunpack.c.h.b16 %v3705
        %v4516 = vpack.c.b16 %v4012, %v4004
        %v4517 = vpack.c.b16 %v4013, %v4005
        %v4518 = vpack.c.b16 %v4014, %v4006
        %v4519 = vpack.c.b16 %v4015, %v4007
        %v4520 = vpack.c.b16 %v4016, %v4008
        %v4521 = vpack.c.b16 %v4017, %v4009
        %v4522 = vpack.c.b16 %v4018, %v4010
        %v4523 = vpack.c.b16 %v4019, %v4011
        %v4524 = vpack.c.b16 %v4028, %v4020
        %v4525 = vpack.c.b16 %v4029, %v4021
        %v4526 = vpack.c.b16 %v4030, %v4022
        %v4527 = vpack.c.b16 %v4031, %v4023
        %v4528 = vpack.c.b16 %v4032, %v4024
        %v4529 = vpack.c.b16 %v4033, %v4025
        %v4530 = vpack.c.b16 %v4034, %v4026
        %v4531 = vpack.c.b16 %v4035, %v4027
        %v4532 = vpack.c.b16 %v4044, %v4036
        %v4533 = vpack.c.b16 %v4045, %v4037
        %v4534 = vpack.c.b16 %v4046, %v4038
        %v4535 = vpack.c.b16 %v4047, %v4039
        %v4536 = vpack.c.b16 %v4048, %v4040
        %v4537 = vpack.c.b16 %v4049, %v4041
        %v4538 = vpack.c.b16 %v4050, %v4042
        %v4539 = vpack.c.b16 %v4051, %v4043
        %v4540 = vpack.c.b16 %v4060, %v4052
        %v4541 = vpack.c.b16 %v4061, %v4053
        %v4542 = vpack.c.b16 %v4062, %v4054
        %v4543 = vpack.c.b16 %v4063, %v4055
        %v4544 = vpack.c.b16 %v4064, %v4056
        %v4545 = vpack.c.b16 %v4065, %v4057
        %v4546 = vpack.c.b16 %v4066, %v4058
        %v4547 = vpack.c.b16 %v4067, %v4059
        %v4548 = vpack.c.b16 %v4076, %v4068
        %v4549 = vpack.c.b16 %v4077, %v4069
        %v4550 = vpack.c.b16 %v4078, %v4070
        %v4551 = vpack.c.b16 %v4079, %v4071
        %v4552 = vpack.c.b16 %v4080, %v4072
        %v4553 = vpack.c.b16 %v4081, %v4073
        %v4554 = vpack.c.b16 %v4082, %v4074
        %v4555 = vpack.c.b16 %v4083, %v4075
        %v4556 = vpack.c.b16 %v4092, %v4084
        %v4557 = vpack.c.b16 %v4093, %v4085
        %v4558 = vpack.c.b16 %v4094, %v4086
        %v4559 = vpack.c.b16 %v4095, %v4087
        %v4560 = vpack.c.b16 %v4096, %v4088
        %v4561 = vpack.c.b16 %v4097, %v4089
        %v4562 = vpack.c.b16 %v4098, %v4090
        %v4563 = vpack.c.b16 %v4099, %v4091
        %v4564 = vpack.c.b16 %v4108, %v4100
        %v4565 = vpack.c.b16 %v4109, %v4101
        %v4566 = vpack.c.b16 %v4110, %v4102
        %v4567 = vpack.c.b16 %v4111, %v4103
        %v4568 = vpack.c.b16 %v4112, %v4104
        %v4569 = vpack.c.b16 %v4113, %v4105
        %v4570 = vpack.c.b16 %v4114, %v4106
        %v4571 = vpack.c.b16 %v4115, %v4107
        %v4572 = vpack.c.b16 %v4124, %v4116
        %v4573 = vpack.c.b16 %v4125, %v4117
        %v4574 = vpack.c.b16 %v4126, %v4118
        %v4575 = vpack.c.b16 %v4127, %v4119
        %v4576 = vpack.c.b16 %v4128, %v4120
        %v4577 = vpack.c.b16 %v4129, %v4121
        %v4578 = vpack.c.b16 %v4130, %v4122
        %v4579 = vpack.c.b16 %v4131, %v4123
        %v4580 = vpack.c.b16 %v4140, %v4132
        %v4581 = vpack.c.b16 %v4141, %v4133
        %v4582 = vpack.c.b16 %v4142, %v4134
        %v4583 = vpack.c.b16 %v4143, %v4135
        %v4584 = vpack.c.b16 %v4144, %v4136
        %v4585 = vpack.c.b16 %v4145, %v4137
        %v4586 = vpack.c.b16 %v4146, %v4138
        %v4587 = vpack.c.b16 %v4147, %v4139
        %v4588 = vpack.c.b16 %v4156, %v4148
        %v4589 = vpack.c.b16 %v4157, %v4149
        %v4590 = vpack.c.b16 %v4158, %v4150
        %v4591 = vpack.c.b16 %v4159, %v4151
        %v4592 = vpack.c.b16 %v4160, %v4152
        %v4593 = vpack.c.b16 %v4161, %v4153
        %v4594 = vpack.c.b16 %v4162, %v4154
        %v4595 = vpack.c.b16 %v4163, %v4155
        %v4596 = vpack.c.b16 %v4172, %v4164
        %v4597 = vpack.c.b16 %v4173, %v4165
        %v4598 = vpack.c.b16 %v4174, %v4166
        %v4599 = vpack.c.b16 %v4175, %v4167
        %v4600 = vpack.c.b16 %v4176, %v4168
        %v4601 = vpack.c.b16 %v4177, %v4169
        %v4602 = vpack.c.b16 %v4178, %v4170
        %v4603 = vpack.c.b16 %v4179, %v4171
        %v4604 = vpack.c.b16 %v4188, %v4180
        %v4605 = vpack.c.b16 %v4189, %v4181
        %v4606 = vpack.c.b16 %v4190, %v4182
        %v4607 = vpack.c.b16 %v4191, %v4183
        %v4608 = vpack.c.b16 %v4192, %v4184
        %v4609 = vpack.c.b16 %v4193, %v4185
        %v4610 = vpack.c.b16 %v4194, %v4186
        %v4611 = vpack.c.b16 %v4195, %v4187
        %v4612 = vpack.c.b16 %v4204, %v4196
        %v4613 = vpack.c.b16 %v4205, %v4197
        %v4614 = vpack.c.b16 %v4206, %v4198
        %v4615 = vpack.c.b16 %v4207, %v4199
        %v4616 = vpack.c.b16 %v4208, %v4200
        %v4617 = vpack.c.b16 %v4209, %v4201
        %v4618 = vpack.c.b16 %v4210, %v4202
        %v4619 = vpack.c.b16 %v4211, %v4203
        %v4620 = vpack.c.b16 %v4220, %v4212
        %v4621 = vpack.c.b16 %v4221, %v4213
        %v4622 = vpack.c.b16 %v4222, %v4214
        %v4623 = vpack.c.b16 %v4223, %v4215
        %v4624 = vpack.c.b16 %v4224, %v4216
        %v4625 = vpack.c.b16 %v4225, %v4217
        %v4626 = vpack.c.b16 %v4226, %v4218
        %v4627 = vpack.c.b16 %v4227, %v4219
        %v4628 = vpack.c.b16 %v4236, %v4228
        %v4629 = vpack.c.b16 %v4237, %v4229
        %v4630 = vpack.c.b16 %v4238, %v4230
        %v4631 = vpack.c.b16 %v4239, %v4231
        %v4632 = vpack.c.b16 %v4240, %v4232
        %v4633 = vpack.c.b16 %v4241, %v4233
        %v4634 = vpack.c.b16 %v4242, %v4234
        %v4635 = vpack.c.b16 %v4243, %v4235
        %v4636 = vpack.c.b16 %v4252, %v4244
        %v4637 = vpack.c.b16 %v4253, %v4245
        %v4638 = vpack.c.b16 %v4254, %v4246
        %v4639 = vpack.c.b16 %v4255, %v4247
        %v4640 = vpack.c.b16 %v4256, %v4248
        %v4641 = vpack.c.b16 %v4257, %v4249
        %v4642 = vpack.c.b16 %v4258, %v4250
        %v4643 = vpack.c.b16 %v4259, %v4251
        %v4644 = vpack.c.b16 %v4268, %v4260
        %v4645 = vpack.c.b16 %v4269, %v4261
        %v4646 = vpack.c.b16 %v4270, %v4262
        %v4647 = vpack.c.b16 %v4271, %v4263
        %v4648 = vpack.c.b16 %v4272, %v4264
        %v4649 = vpack.c.b16 %v4273, %v4265
        %v4650 = vpack.c.b16 %v4274, %v4266
        %v4651 = vpack.c.b16 %v4275, %v4267
        %v4652 = vpack.c.b16 %v4284, %v4276
        %v4653 = vpack.c.b16 %v4285, %v4277
        %v4654 = vpack.c.b16 %v4286, %v4278
        %v4655 = vpack.c.b16 %v4287, %v4279
        %v4656 = vpack.c.b16 %v4288, %v4280
        %v4657 = vpack.c.b16 %v4289, %v4281
        %v4658 = vpack.c.b16 %v4290, %v4282
        %v4659 = vpack.c.b16 %v4291, %v4283
        %v4660 = vpack.c.b16 %v4300, %v4292
        %v4661 = vpack.c.b16 %v4301, %v4293
        %v4662 = vpack.c.b16 %v4302, %v4294
        %v4663 = vpack.c.b16 %v4303, %v4295
        %v4664 = vpack.c.b16 %v4304, %v4296
        %v4665 = vpack.c.b16 %v4305, %v4297
        %v4666 = vpack.c.b16 %v4306, %v4298
        %v4667 = vpack.c.b16 %v4307, %v4299
        %v4668 = vpack.c.b16 %v4316, %v4308
        %v4669 = vpack.c.b16 %v4317, %v4309
        %v4670 = vpack.c.b16 %v4318, %v4310
        %v4671 = vpack.c.b16 %v4319, %v4311
        %v4672 = vpack.c.b16 %v4320, %v4312
        %v4673 = vpack.c.b16 %v4321, %v4313
        %v4674 = vpack.c.b16 %v4322, %v4314
        %v4675 = vpack.c.b16 %v4323, %v4315
        %v4676 = vpack.c.b16 %v4332, %v4324
        %v4677 = vpack.c.b16 %v4333, %v4325
        %v4678 = vpack.c.b16 %v4334, %v4326
        %v4679 = vpack.c.b16 %v4335, %v4327
        %v4680 = vpack.c.b16 %v4336, %v4328
        %v4681 = vpack.c.b16 %v4337, %v4329
        %v4682 = vpack.c.b16 %v4338, %v4330
        %v4683 = vpack.c.b16 %v4339, %v4331
        %v4684 = vpack.c.b16 %v4348, %v4340
        %v4685 = vpack.c.b16 %v4349, %v4341
        %v4686 = vpack.c.b16 %v4350, %v4342
        %v4687 = vpack.c.b16 %v4351, %v4343
        %v4688 = vpack.c.b16 %v4352, %v4344
        %v4689 = vpack.c.b16 %v4353, %v4345
        %v4690 = vpack.c.b16 %v4354, %v4346
        %v4691 = vpack.c.b16 %v4355, %v4347
        %v4692 = vpack.c.b16 %v4364, %v4356
        %v4693 = vpack.c.b16 %v4365, %v4357
        %v4694 = vpack.c.b16 %v4366, %v4358
        %v4695 = vpack.c.b16 %v4367, %v4359
        %v4696 = vpack.c.b16 %v4368, %v4360
        %v4697 = vpack.c.b16 %v4369, %v4361
        %v4698 = vpack.c.b16 %v4370, %v4362
        %v4699 = vpack.c.b16 %v4371, %v4363
        %v4700 = vpack.c.b16 %v4380, %v4372
        %v4701 = vpack.c.b16 %v4381, %v4373
        %v4702 = vpack.c.b16 %v4382, %v4374
        %v4703 = vpack.c.b16 %v4383, %v4375
        %v4704 = vpack.c.b16 %v4384, %v4376
        %v4705 = vpack.c.b16 %v4385, %v4377
        %v4706 = vpack.c.b16 %v4386, %v4378
        %v4707 = vpack.c.b16 %v4387, %v4379
        %v4708 = vpack.c.b16 %v4396, %v4388
        %v4709 = vpack.c.b16 %v4397, %v4389
        %v4710 = vpack.c.b16 %v4398, %v4390
        %v4711 = vpack.c.b16 %v4399, %v4391
        %v4712 = vpack.c.b16 %v4400, %v4392
        %v4713 = vpack.c.b16 %v4401, %v4393
        %v4714 = vpack.c.b16 %v4402, %v4394
        %v4715 = vpack.c.b16 %v4403, %v4395
        %v4716 = vpack.c.b16 %v4412, %v4404
        %v4717 = vpack.c.b16 %v4413, %v4405
        %v4718 = vpack.c.b16 %v4414, %v4406
        %v4719 = vpack.c.b16 %v4415, %v4407
        %v4720 = vpack.c.b16 %v4416, %v4408
        %v4721 = vpack.c.b16 %v4417, %v4409
        %v4722 = vpack.c.b16 %v4418, %v4410
        %v4723 = vpack.c.b16 %v4419, %v4411
        %v4724 = vpack.c.b16 %v4428, %v4420
        %v4725 = vpack.c.b16 %v4429, %v4421
        %v4726 = vpack.c.b16 %v4430, %v4422
        %v4727 = vpack.c.b16 %v4431, %v4423
        %v4728 = vpack.c.b16 %v4432, %v4424
        %v4729 = vpack.c.b16 %v4433, %v4425
        %v4730 = vpack.c.b16 %v4434, %v4426
        %v4731 = vpack.c.b16 %v4435, %v4427
        %v4732 = vpack.c.b16 %v4444, %v4436
        %v4733 = vpack.c.b16 %v4445, %v4437
        %v4734 = vpack.c.b16 %v4446, %v4438
        %v4735 = vpack.c.b16 %v4447, %v4439
        %v4736 = vpack.c.b16 %v4448, %v4440
        %v4737 = vpack.c.b16 %v4449, %v4441
        %v4738 = vpack.c.b16 %v4450, %v4442
        %v4739 = vpack.c.b16 %v4451, %v4443
        %v4740 = vpack.c.b16 %v4460, %v4452
        %v4741 = vpack.c.b16 %v4461, %v4453
        %v4742 = vpack.c.b16 %v4462, %v4454
        %v4743 = vpack.c.b16 %v4463, %v4455
        %v4744 = vpack.c.b16 %v4464, %v4456
        %v4745 = vpack.c.b16 %v4465, %v4457
        %v4746 = vpack.c.b16 %v4466, %v4458
        %v4747 = vpack.c.b16 %v4467, %v4459
        %v4748 = vpack.c.b16 %v4476, %v4468
        %v4749 = vpack.c.b16 %v4477, %v4469
        %v4750 = vpack.c.b16 %v4478, %v4470
        %v4751 = vpack.c.b16 %v4479, %v4471
        %v4752 = vpack.c.b16 %v4480, %v4472
        %v4753 = vpack.c.b16 %v4481, %v4473
        %v4754 = vpack.c.b16 %v4482, %v4474
        %v4755 = vpack.c.b16 %v4483, %v4475
        %v4756 = vpack.c.b16 %v4492, %v4484
        %v4757 = vpack.c.b16 %v4493, %v4485
        %v4758 = vpack.c.b16 %v4494, %v4486
        %v4759 = vpack.c.b16 %v4495, %v4487
        %v4760 = vpack.c.b16 %v4496, %v4488
        %v4761 = vpack.c.b16 %v4497, %v4489
        %v4762 = vpack.c.b16 %v4498, %v4490
        %v4763 = vpack.c.b16 %v4499, %v4491
        %v4764 = vpack.c.b16 %v4508, %v4500
        %v4765 = vpack.c.b16 %v4509, %v4501
        %v4766 = vpack.c.b16 %v4510, %v4502
        %v4767 = vpack.c.b16 %v4511, %v4503
        %v4768 = vpack.c.b16 %v4512, %v4504
        %v4769 = vpack.c.b16 %v4513, %v4505
        %v4770 = vpack.c.b16 %v4514, %v4506
        %v4771 = vpack.c.b16 %v4515, %v4507
        %5028 = vmatprep.subr.bf16.mxu0 %v4573
        %5029 = vmatpush1.bf16.msra.mxu0 %v4572
        %5030 = vmatprep.subr.bf16.mxu0 %v4565
        %5031 = vmatpush1.bf16.msra.mxu0 %v4564
        %5032 = vmatprep.subr.bf16.mxu0 %v4557
        %5033 = vmatpush1.bf16.msra.mxu0 %v4556
        %5034 = vmatprep.subr.bf16.mxu0 %v4549
        %5035 = vmatpush1.bf16.msra.mxu0 %v4548
        %5036 = vmatprep.subr.bf16.mxu0 %v4541
        %5037 = vmatpush1.bf16.msra.mxu0 %v4540
        %5038 = vmatprep.subr.bf16.mxu0 %v4533
        %5039 = vmatpush1.bf16.msra.mxu0 %v4532
        %5040 = vmatprep.subr.bf16.mxu0 %v4525
        %5041 = vmatpush1.bf16.msra.mxu0 %v4524
        %5042 = vmatprep.subr.bf16.mxu0 %v4517
        %5043 = vmatpush1.bf16.msra.mxu0 %v4516
        %5044 = vmatprep.subr.bf16.mxu0 %v4637
        %5045 = vmatpush2.bf16.msra.mxu0 %v4636
        %5046 = vmatprep.subr.bf16.mxu0 %v4629
        %5047 = vmatpush2.bf16.msra.mxu0 %v4628
        %5048 = vmatprep.subr.bf16.mxu0 %v4621
        %5049 = vmatpush2.bf16.msra.mxu0 %v4620
        %5050 = vmatprep.subr.bf16.mxu0 %v4613
        %5051 = vmatpush2.bf16.msra.mxu0 %v4612
        %5052 = vmatprep.subr.bf16.mxu0 %v4605
        %5053 = vmatpush2.bf16.msra.mxu0 %v4604
        %5054 = vmatprep.subr.bf16.mxu0 %v4597
        %5055 = vmatpush2.bf16.msra.mxu0 %v4596
        %5056 = vmatprep.subr.bf16.mxu0 %v4589
        %5057 = vmatpush2.bf16.msra.mxu0 %v4588
        %5058 = vmatprep.subr.bf16.mxu0 %v4581
        %5059 = vmatpush2.bf16.msra.mxu0 %v4580
        %5060 = vmatprep.mubr.bf16.mxu0 %v3443
        %5061 = vmatmul.mubr.bf16.gmra.mxu0 %v3442
        %v5062 = vpop.f32.mrf.mxu0
        %v5063 = vadd.f32 %v3711, %v5062
        %v5064 = vpop.f32.mrf.mxu0
        %v5065 = vadd.f32 %v3715, %v5064
        %v5066 = vpop.f32.mrf.mxu0
        %v5067 = vadd.f32 %v3711, %v5066
        %v5068 = vpop.f32.mrf.mxu0
        %v5069 = vadd.f32 %v3715, %v5068
        %5070 = vmatprep.mubr.bf16.mxu0 %v3447
        %5071 = vmatmul.mubr.bf16.gmra.mxu0 %v3446
        %v5072 = vpop.f32.mrf.mxu0
        %v5073 = vadd.f32 %v3711, %v5072
        %v5074 = vpop.f32.mrf.mxu0
        %v5075 = vadd.f32 %v3715, %v5074
        %v5076 = vpop.f32.mrf.mxu0
        %v5077 = vadd.f32 %v3711, %v5076
        %v5078 = vpop.f32.mrf.mxu0
        %v5079 = vadd.f32 %v3715, %v5078
        %5080 = vdwg.mxu0
        %5081 = vmatprep.subr.bf16.mxu0 %v4701
        %5082 = vmatpush1.bf16.msra.mxu0 %v4700
        %5083 = vmatprep.subr.bf16.mxu0 %v4693
        %5084 = vmatpush1.bf16.msra.mxu0 %v4692
        %5085 = vmatprep.subr.bf16.mxu0 %v4685
        %5086 = vmatpush1.bf16.msra.mxu0 %v4684
        %5087 = vmatprep.subr.bf16.mxu0 %v4677
        %5088 = vmatpush1.bf16.msra.mxu0 %v4676
        %5089 = vmatprep.subr.bf16.mxu0 %v4669
        %5090 = vmatpush1.bf16.msra.mxu0 %v4668
        %5091 = vmatprep.subr.bf16.mxu0 %v4661
        %5092 = vmatpush1.bf16.msra.mxu0 %v4660
        %5093 = vmatprep.subr.bf16.mxu0 %v4653
        %5094 = vmatpush1.bf16.msra.mxu0 %v4652
        %5095 = vmatprep.subr.bf16.mxu0 %v4645
        %5096 = vmatpush1.bf16.msra.mxu0 %v4644
        %5097 = vmatprep.subr.bf16.mxu0 %v4765
        %5098 = vmatpush2.bf16.msra.mxu0 %v4764
        %5099 = vmatprep.subr.bf16.mxu0 %v4757
        %5100 = vmatpush2.bf16.msra.mxu0 %v4756
        %5101 = vmatprep.subr.bf16.mxu0 %v4749
        %5102 = vmatpush2.bf16.msra.mxu0 %v4748
        %5103 = vmatprep.subr.bf16.mxu0 %v4741
        %5104 = vmatpush2.bf16.msra.mxu0 %v4740
        %5105 = vmatprep.subr.bf16.mxu0 %v4733
        %5106 = vmatpush2.bf16.msra.mxu0 %v4732
        %5107 = vmatprep.subr.bf16.mxu0 %v4725
        %5108 = vmatpush2.bf16.msra.mxu0 %v4724
        %5109 = vmatprep.subr.bf16.mxu0 %v4717
        %5110 = vmatpush2.bf16.msra.mxu0 %v4716
        %5111 = vmatprep.subr.bf16.mxu0 %v4709
        %5112 = vmatpush2.bf16.msra.mxu0 %v4708
        %5113 = vmatprep.mubr.bf16.mxu0 %v3445
        %5114 = vmatmul.mubr.bf16.gmra.mxu0 %v3444
        %v5115 = vpop.f32.mrf.mxu0
        %v5116 = vadd.f32 %v5063, %v5115
        %v5117 = vpop.f32.mrf.mxu0
        %v5118 = vadd.f32 %v5065, %v5117
        %v5119 = vpop.f32.mrf.mxu0
        %v5120 = vadd.f32 %v5067, %v5119
        %v5121 = vpop.f32.mrf.mxu0
        %v5122 = vadd.f32 %v5069, %v5121
        %5123 = vmatprep.mubr.bf16.mxu0 %v3449
        %5124 = vmatmul.mubr.bf16.gmra.mxu0 %v3448
        %v5125 = vpop.f32.mrf.mxu0
        %v5126 = vadd.f32 %v5073, %v5125
        %v5127 = vpop.f32.mrf.mxu0
        %v5128 = vadd.f32 %v5075, %v5127
        %v5129 = vpop.f32.mrf.mxu0
        %v5130 = vadd.f32 %v5077, %v5129
        %v5131 = vpop.f32.mrf.mxu0
        %v5132 = vadd.f32 %v5079, %v5131
        %5133 = vdwg.mxu0
        %5134 = vmatprep.subr.bf16.mxu0 %v4575
        %5135 = vmatpush1.bf16.msra.mxu0 %v4574
        %5136 = vmatprep.subr.bf16.mxu0 %v4567
        %5137 = vmatpush1.bf16.msra.mxu0 %v4566
        %5138 = vmatprep.subr.bf16.mxu0 %v4559
        %5139 = vmatpush1.bf16.msra.mxu0 %v4558
        %5140 = vmatprep.subr.bf16.mxu0 %v4551
        %5141 = vmatpush1.bf16.msra.mxu0 %v4550
        %5142 = vmatprep.subr.bf16.mxu0 %v4543
        %5143 = vmatpush1.bf16.msra.mxu0 %v4542
        %5144 = vmatprep.subr.bf16.mxu0 %v4535
        %5145 = vmatpush1.bf16.msra.mxu0 %v4534
        %5146 = vmatprep.subr.bf16.mxu0 %v4527
        %5147 = vmatpush1.bf16.msra.mxu0 %v4526
        %5148 = vmatprep.subr.bf16.mxu0 %v4519
        %5149 = vmatpush1.bf16.msra.mxu0 %v4518
        %5150 = vmatprep.subr.bf16.mxu0 %v4639
        %5151 = vmatpush2.bf16.msra.mxu0 %v4638
        %5152 = vmatprep.subr.bf16.mxu0 %v4631
        %5153 = vmatpush2.bf16.msra.mxu0 %v4630
        %5154 = vmatprep.subr.bf16.mxu0 %v4623
        %5155 = vmatpush2.bf16.msra.mxu0 %v4622
        %5156 = vmatprep.subr.bf16.mxu0 %v4615
        %5157 = vmatpush2.bf16.msra.mxu0 %v4614
        %5158 = vmatprep.subr.bf16.mxu0 %v4607
        %5159 = vmatpush2.bf16.msra.mxu0 %v4606
        %5160 = vmatprep.subr.bf16.mxu0 %v4599
        %5161 = vmatpush2.bf16.msra.mxu0 %v4598
        %5162 = vmatprep.subr.bf16.mxu0 %v4591
        %5163 = vmatpush2.bf16.msra.mxu0 %v4590
        %5164 = vmatprep.subr.bf16.mxu0 %v4583
        %5165 = vmatpush2.bf16.msra.mxu0 %v4582
        %5166 = vmatprep.mubr.bf16.mxu0 %v3443
        %5167 = vmatmul.mubr.bf16.gmra.mxu0 %v3442
        %v5168 = vpop.f32.mrf.mxu0
        %v5169 = vadd.f32 %v3719, %v5168
        %v5170 = vpop.f32.mrf.mxu0
        %v5171 = vadd.f32 %v3723, %v5170
        %v5172 = vpop.f32.mrf.mxu0
        %v5173 = vadd.f32 %v3719, %v5172
        %v5174 = vpop.f32.mrf.mxu0
        %v5175 = vadd.f32 %v3723, %v5174
        %5176 = vmatprep.mubr.bf16.mxu0 %v3447
        %5177 = vmatmul.mubr.bf16.gmra.mxu0 %v3446
        %v5178 = vpop.f32.mrf.mxu0
        %v5179 = vadd.f32 %v3719, %v5178
        %v5180 = vpop.f32.mrf.mxu0
        %v5181 = vadd.f32 %v3723, %v5180
        %v5182 = vpop.f32.mrf.mxu0
        %v5183 = vadd.f32 %v3719, %v5182
        %v5184 = vpop.f32.mrf.mxu0
        %v5185 = vadd.f32 %v3723, %v5184
        %5186 = vdwg.mxu0
        %5187 = vmatprep.subr.bf16.mxu0 %v4703
        %5188 = vmatpush1.bf16.msra.mxu0 %v4702
        %5189 = vmatprep.subr.bf16.mxu0 %v4695
        %5190 = vmatpush1.bf16.msra.mxu0 %v4694
        %5191 = vmatprep.subr.bf16.mxu0 %v4687
        %5192 = vmatpush1.bf16.msra.mxu0 %v4686
        %5193 = vmatprep.subr.bf16.mxu0 %v4679
        %5194 = vmatpush1.bf16.msra.mxu0 %v4678
        %5195 = vmatprep.subr.bf16.mxu0 %v4671
        %5196 = vmatpush1.bf16.msra.mxu0 %v4670
        %5197 = vmatprep.subr.bf16.mxu0 %v4663
        %5198 = vmatpush1.bf16.msra.mxu0 %v4662
        %5199 = vmatprep.subr.bf16.mxu0 %v4655
        %5200 = vmatpush1.bf16.msra.mxu0 %v4654
        %5201 = vmatprep.subr.bf16.mxu0 %v4647
        %5202 = vmatpush1.bf16.msra.mxu0 %v4646
        %5203 = vmatprep.subr.bf16.mxu0 %v4767
        %5204 = vmatpush2.bf16.msra.mxu0 %v4766
        %5205 = vmatprep.subr.bf16.mxu0 %v4759
        %5206 = vmatpush2.bf16.msra.mxu0 %v4758
        %5207 = vmatprep.subr.bf16.mxu0 %v4751
        %5208 = vmatpush2.bf16.msra.mxu0 %v4750
        %5209 = vmatprep.subr.bf16.mxu0 %v4743
        %5210 = vmatpush2.bf16.msra.mxu0 %v4742
        %5211 = vmatprep.subr.bf16.mxu0 %v4735
        %5212 = vmatpush2.bf16.msra.mxu0 %v4734
        %5213 = vmatprep.subr.bf16.mxu0 %v4727
        %5214 = vmatpush2.bf16.msra.mxu0 %v4726
        %5215 = vmatprep.subr.bf16.mxu0 %v4719
        %5216 = vmatpush2.bf16.msra.mxu0 %v4718
        %5217 = vmatprep.subr.bf16.mxu0 %v4711
        %5218 = vmatpush2.bf16.msra.mxu0 %v4710
        %5219 = vmatprep.mubr.bf16.mxu0 %v3445
        %5220 = vmatmul.mubr.bf16.gmra.mxu0 %v3444
        %v5221 = vpop.f32.mrf.mxu0
        %v5222 = vadd.f32 %v5169, %v5221
        %v5223 = vpop.f32.mrf.mxu0
        %v5224 = vadd.f32 %v5171, %v5223
        %v5225 = vpop.f32.mrf.mxu0
        %v5226 = vadd.f32 %v5173, %v5225
        %v5227 = vpop.f32.mrf.mxu0
        %v5228 = vadd.f32 %v5175, %v5227
        %5229 = vmatprep.mubr.bf16.mxu0 %v3449
        %5230 = vmatmul.mubr.bf16.gmra.mxu0 %v3448
        %v5231 = vpop.f32.mrf.mxu0
        %v5232 = vadd.f32 %v5179, %v5231
        %v5233 = vpop.f32.mrf.mxu0
        %v5234 = vadd.f32 %v5181, %v5233
        %v5235 = vpop.f32.mrf.mxu0
        %v5236 = vadd.f32 %v5183, %v5235
        %v5237 = vpop.f32.mrf.mxu0
        %v5238 = vadd.f32 %v5185, %v5237
        %5239 = vdwg.mxu0
        %5240 = vmatprep.subr.bf16.mxu0 %v4577
        %5241 = vmatpush1.bf16.msra.mxu0 %v4576
        %5242 = vmatprep.subr.bf16.mxu0 %v4569
        %5243 = vmatpush1.bf16.msra.mxu0 %v4568
        %5244 = vmatprep.subr.bf16.mxu0 %v4561
        %5245 = vmatpush1.bf16.msra.mxu0 %v4560
        %5246 = vmatprep.subr.bf16.mxu0 %v4553
        %5247 = vmatpush1.bf16.msra.mxu0 %v4552
        %5248 = vmatprep.subr.bf16.mxu0 %v4545
        %5249 = vmatpush1.bf16.msra.mxu0 %v4544
        %5250 = vmatprep.subr.bf16.mxu0 %v4537
        %5251 = vmatpush1.bf16.msra.mxu0 %v4536
        %5252 = vmatprep.subr.bf16.mxu0 %v4529
        %5253 = vmatpush1.bf16.msra.mxu0 %v4528
        %5254 = vmatprep.subr.bf16.mxu0 %v4521
        %5255 = vmatpush1.bf16.msra.mxu0 %v4520
        %5256 = vmatprep.subr.bf16.mxu0 %v4641
        %5257 = vmatpush2.bf16.msra.mxu0 %v4640
        %5258 = vmatprep.subr.bf16.mxu0 %v4633
        %5259 = vmatpush2.bf16.msra.mxu0 %v4632
        %5260 = vmatprep.subr.bf16.mxu0 %v4625
        %5261 = vmatpush2.bf16.msra.mxu0 %v4624
        %5262 = vmatprep.subr.bf16.mxu0 %v4617
        %5263 = vmatpush2.bf16.msra.mxu0 %v4616
        %5264 = vmatprep.subr.bf16.mxu0 %v4609
        %5265 = vmatpush2.bf16.msra.mxu0 %v4608
        %5266 = vmatprep.subr.bf16.mxu0 %v4601
        %5267 = vmatpush2.bf16.msra.mxu0 %v4600
        %5268 = vmatprep.subr.bf16.mxu0 %v4593
        %5269 = vmatpush2.bf16.msra.mxu0 %v4592
        %5270 = vmatprep.subr.bf16.mxu0 %v4585
        %5271 = vmatpush2.bf16.msra.mxu0 %v4584
        %5272 = vmatprep.mubr.bf16.mxu0 %v3443
        %5273 = vmatmul.mubr.bf16.gmra.mxu0 %v3442
        %v5274 = vpop.f32.mrf.mxu0
        %v5275 = vadd.f32 %v3727, %v5274
        %v5276 = vpop.f32.mrf.mxu0
        %v5277 = vadd.f32 %v3731, %v5276
        %v5278 = vpop.f32.mrf.mxu0
        %v5279 = vadd.f32 %v3727, %v5278
        %v5280 = vpop.f32.mrf.mxu0
        %v5281 = vadd.f32 %v3731, %v5280
        %5282 = vmatprep.mubr.bf16.mxu0 %v3447
        %5283 = vmatmul.mubr.bf16.gmra.mxu0 %v3446
        %v5284 = vpop.f32.mrf.mxu0
        %v5285 = vadd.f32 %v3727, %v5284
        %v5286 = vpop.f32.mrf.mxu0
        %v5287 = vadd.f32 %v3731, %v5286
        %v5288 = vpop.f32.mrf.mxu0
        %v5289 = vadd.f32 %v3727, %v5288
        %v5290 = vpop.f32.mrf.mxu0
        %v5291 = vadd.f32 %v3731, %v5290
        %5292 = vdwg.mxu0
        %5293 = vmatprep.subr.bf16.mxu0 %v4705
        %5294 = vmatpush1.bf16.msra.mxu0 %v4704
        %5295 = vmatprep.subr.bf16.mxu0 %v4697
        %5296 = vmatpush1.bf16.msra.mxu0 %v4696
        %5297 = vmatprep.subr.bf16.mxu0 %v4689
        %5298 = vmatpush1.bf16.msra.mxu0 %v4688
        %5299 = vmatprep.subr.bf16.mxu0 %v4681
        %5300 = vmatpush1.bf16.msra.mxu0 %v4680
        %5301 = vmatprep.subr.bf16.mxu0 %v4673
        %5302 = vmatpush1.bf16.msra.mxu0 %v4672
        %5303 = vmatprep.subr.bf16.mxu0 %v4665
        %5304 = vmatpush1.bf16.msra.mxu0 %v4664
        %5305 = vmatprep.subr.bf16.mxu0 %v4657
        %5306 = vmatpush1.bf16.msra.mxu0 %v4656
        %5307 = vmatprep.subr.bf16.mxu0 %v4649
        %5308 = vmatpush1.bf16.msra.mxu0 %v4648
        %5309 = vmatprep.subr.bf16.mxu0 %v4769
        %5310 = vmatpush2.bf16.msra.mxu0 %v4768
        %5311 = vmatprep.subr.bf16.mxu0 %v4761
        %5312 = vmatpush2.bf16.msra.mxu0 %v4760
        %5313 = vmatprep.subr.bf16.mxu0 %v4753
        %5314 = vmatpush2.bf16.msra.mxu0 %v4752
        %5315 = vmatprep.subr.bf16.mxu0 %v4745
        %5316 = vmatpush2.bf16.msra.mxu0 %v4744
        %5317 = vmatprep.subr.bf16.mxu0 %v4737
        %5318 = vmatpush2.bf16.msra.mxu0 %v4736
        %5319 = vmatprep.subr.bf16.mxu0 %v4729
        %5320 = vmatpush2.bf16.msra.mxu0 %v4728
        %5321 = vmatprep.subr.bf16.mxu0 %v4721
        %5322 = vmatpush2.bf16.msra.mxu0 %v4720
        %5323 = vmatprep.subr.bf16.mxu0 %v4713
        %5324 = vmatpush2.bf16.msra.mxu0 %v4712
        %5325 = vmatprep.mubr.bf16.mxu0 %v3445
        %5326 = vmatmul.mubr.bf16.gmra.mxu0 %v3444
        %v5327 = vpop.f32.mrf.mxu0
        %v5328 = vadd.f32 %v5275, %v5327
        %v5329 = vpop.f32.mrf.mxu0
        %v5330 = vadd.f32 %v5277, %v5329
        %v5331 = vpop.f32.mrf.mxu0
        %v5332 = vadd.f32 %v5279, %v5331
        %v5333 = vpop.f32.mrf.mxu0
        %v5334 = vadd.f32 %v5281, %v5333
        %5335 = vmatprep.mubr.bf16.mxu0 %v3449
        %5336 = vmatmul.mubr.bf16.gmra.mxu0 %v3448
        %v5337 = vpop.f32.mrf.mxu0
        %v5338 = vadd.f32 %v5285, %v5337
        %v5339 = vpop.f32.mrf.mxu0
        %v5340 = vadd.f32 %v5287, %v5339
        %v5341 = vpop.f32.mrf.mxu0
        %v5342 = vadd.f32 %v5289, %v5341
        %v5343 = vpop.f32.mrf.mxu0
        %v5344 = vadd.f32 %v5291, %v5343
        %5345 = vdwg.mxu0
        %5346 = vmatprep.subr.bf16.mxu0 %v4579
        %5347 = vmatpush1.bf16.msra.mxu0 %v4578
        %5348 = vmatprep.subr.bf16.mxu0 %v4571
        %5349 = vmatpush1.bf16.msra.mxu0 %v4570
        %5350 = vmatprep.subr.bf16.mxu0 %v4563
        %5351 = vmatpush1.bf16.msra.mxu0 %v4562
        %5352 = vmatprep.subr.bf16.mxu0 %v4555
        %5353 = vmatpush1.bf16.msra.mxu0 %v4554
        %5354 = vmatprep.subr.bf16.mxu0 %v4547
        %5355 = vmatpush1.bf16.msra.mxu0 %v4546
        %5356 = vmatprep.subr.bf16.mxu0 %v4539
        %5357 = vmatpush1.bf16.msra.mxu0 %v4538
        %5358 = vmatprep.subr.bf16.mxu0 %v4531
        %5359 = vmatpush1.bf16.msra.mxu0 %v4530
        %5360 = vmatprep.subr.bf16.mxu0 %v4523
        %5361 = vmatpush1.bf16.msra.mxu0 %v4522
        %5362 = vmatprep.subr.bf16.mxu0 %v4643
        %5363 = vmatpush2.bf16.msra.mxu0 %v4642
        %5364 = vmatprep.subr.bf16.mxu0 %v4635
        %5365 = vmatpush2.bf16.msra.mxu0 %v4634
        %5366 = vmatprep.subr.bf16.mxu0 %v4627
        %5367 = vmatpush2.bf16.msra.mxu0 %v4626
        %5368 = vmatprep.subr.bf16.mxu0 %v4619
        %5369 = vmatpush2.bf16.msra.mxu0 %v4618
        %5370 = vmatprep.subr.bf16.mxu0 %v4611
        %5371 = vmatpush2.bf16.msra.mxu0 %v4610
        %5372 = vmatprep.subr.bf16.mxu0 %v4603
        %5373 = vmatpush2.bf16.msra.mxu0 %v4602
        %5374 = vmatprep.subr.bf16.mxu0 %v4595
        %5375 = vmatpush2.bf16.msra.mxu0 %v4594
        %5376 = vmatprep.subr.bf16.mxu0 %v4587
        %5377 = vmatpush2.bf16.msra.mxu0 %v4586
        %5378 = vmatprep.mubr.bf16.mxu0 %v3443
        %5379 = vmatmul.mubr.bf16.gmra.mxu0 %v3442
        %v5380 = vpop.f32.mrf.mxu0
        %v5381 = vadd.f32 %v3735, %v5380
        %v5382 = vpop.f32.mrf.mxu0
        %v5383 = vadd.f32 %v3739, %v5382
        %v5384 = vpop.f32.mrf.mxu0
        %v5385 = vadd.f32 %v3735, %v5384
        %v5386 = vpop.f32.mrf.mxu0
        %v5387 = vadd.f32 %v3739, %v5386
        %5388 = vmatprep.mubr.bf16.mxu0 %v3447
        %5389 = vmatmul.mubr.bf16.gmra.mxu0 %v3446
        %v5390 = vpop.f32.mrf.mxu0
        %v5391 = vadd.f32 %v3735, %v5390
        %v5392 = vpop.f32.mrf.mxu0
        %v5393 = vadd.f32 %v3739, %v5392
        %v5394 = vpop.f32.mrf.mxu0
        %v5395 = vadd.f32 %v3735, %v5394
        %v5396 = vpop.f32.mrf.mxu0
        %v5397 = vadd.f32 %v3739, %v5396
        %5398 = vdwg.mxu0
        %5399 = vmatprep.subr.bf16.mxu0 %v4707
        %5400 = vmatpush1.bf16.msra.mxu0 %v4706
        %5401 = vmatprep.subr.bf16.mxu0 %v4699
        %5402 = vmatpush1.bf16.msra.mxu0 %v4698
        %5403 = vmatprep.subr.bf16.mxu0 %v4691
        %5404 = vmatpush1.bf16.msra.mxu0 %v4690
        %5405 = vmatprep.subr.bf16.mxu0 %v4683
        %5406 = vmatpush1.bf16.msra.mxu0 %v4682
        %5407 = vmatprep.subr.bf16.mxu0 %v4675
        %5408 = vmatpush1.bf16.msra.mxu0 %v4674
        %5409 = vmatprep.subr.bf16.mxu0 %v4667
        %5410 = vmatpush1.bf16.msra.mxu0 %v4666
        %5411 = vmatprep.subr.bf16.mxu0 %v4659
        %5412 = vmatpush1.bf16.msra.mxu0 %v4658
        %5413 = vmatprep.subr.bf16.mxu0 %v4651
        %5414 = vmatpush1.bf16.msra.mxu0 %v4650
        %5415 = vmatprep.subr.bf16.mxu0 %v4771
        %5416 = vmatpush2.bf16.msra.mxu0 %v4770
        %5417 = vmatprep.subr.bf16.mxu0 %v4763
        %5418 = vmatpush2.bf16.msra.mxu0 %v4762
        %5419 = vmatprep.subr.bf16.mxu0 %v4755
        %5420 = vmatpush2.bf16.msra.mxu0 %v4754
        %5421 = vmatprep.subr.bf16.mxu0 %v4747
        %5422 = vmatpush2.bf16.msra.mxu0 %v4746
        %5423 = vmatprep.subr.bf16.mxu0 %v4739
        %5424 = vmatpush2.bf16.msra.mxu0 %v4738
        %5425 = vmatprep.subr.bf16.mxu0 %v4731
        %5426 = vmatpush2.bf16.msra.mxu0 %v4730
        %5427 = vmatprep.subr.bf16.mxu0 %v4723
        %5428 = vmatpush2.bf16.msra.mxu0 %v4722
        %5429 = vmatprep.subr.bf16.mxu0 %v4715
        %5430 = vmatpush2.bf16.msra.mxu0 %v4714
        %5431 = vmatprep.mubr.bf16.mxu0 %v3445
        %5432 = vmatmul.mubr.bf16.gmra.mxu0 %v3444
        %v5433 = vpop.f32.mrf.mxu0
        %v5434 = vadd.f32 %v5381, %v5433
        %v5435 = vpop.f32.mrf.mxu0
        %v5436 = vadd.f32 %v5383, %v5435
        %v5437 = vpop.f32.mrf.mxu0
        %v5438 = vadd.f32 %v5385, %v5437
        %v5439 = vpop.f32.mrf.mxu0
        %v5440 = vadd.f32 %v5387, %v5439
        %5441 = vmatprep.mubr.bf16.mxu0 %v3449
        %5442 = vmatmul.mubr.bf16.gmra.mxu0 %v3448
        %v5443 = vpop.f32.mrf.mxu0
        %v5444 = vadd.f32 %v5391, %v5443
        %v5445 = vpop.f32.mrf.mxu0
        %v5446 = vadd.f32 %v5393, %v5445
        %v5447 = vpop.f32.mrf.mxu0
        %v5448 = vadd.f32 %v5395, %v5447
        %v5449 = vpop.f32.mrf.mxu0
        %v5450 = vadd.f32 %v5397, %v5449
        %5451 = vdwg.mxu0
        %v5452 = vsub.f32 0.0, %v5116
        %v5453 = vsub.f32 0.0, %v5118
        %v5454 = vsub.f32 0.0, %v5222
        %v5455 = vsub.f32 0.0, %v5224
        %v5456 = vsub.f32 0.0, %v5328
        %v5457 = vsub.f32 0.0, %v5330
        %v5458 = vsub.f32 0.0, %v5434
        %v5459 = vsub.f32 0.0, %v5436
        %v5460 = vsub.f32 0.0, %v5120
        %v5461 = vsub.f32 0.0, %v5122
        %v5462 = vsub.f32 0.0, %v5226
        %v5463 = vsub.f32 0.0, %v5228
        %v5464 = vsub.f32 0.0, %v5332
        %v5465 = vsub.f32 0.0, %v5334
        %v5466 = vsub.f32 0.0, %v5438
        %v5467 = vsub.f32 0.0, %v5440
        %v5468 = vsub.f32 0.0, %v5126
        %v5469 = vsub.f32 0.0, %v5128
        %v5470 = vsub.f32 0.0, %v5232
        %v5471 = vsub.f32 0.0, %v5234
        %v5472 = vsub.f32 0.0, %v5338
        %v5473 = vsub.f32 0.0, %v5340
        %v5474 = vsub.f32 0.0, %v5444
        %v5475 = vsub.f32 0.0, %v5446
        %v5476 = vsub.f32 0.0, %v5130
        %v5477 = vsub.f32 0.0, %v5132
        %v5478 = vsub.f32 0.0, %v5236
        %v5479 = vsub.f32 0.0, %v5238
        %v5480 = vsub.f32 0.0, %v5342
        %v5481 = vsub.f32 0.0, %v5344
        %v5482 = vsub.f32 0.0, %v5448
        %v5483 = vsub.f32 0.0, %v5450
        %v5484 = vmul.f32 %v5452, 1.442695
        %v5485 = vpow.pop %v5484
        %v5486 = vmul.f32 %v5453, 1.442695
        %v5487 = vpow.pop %v5486
        %v5488 = vmul.f32 %v5454, 1.442695
        %v5489 = vpow.pop %v5488
        %v5490 = vmul.f32 %v5455, 1.442695
        %v5491 = vpow.pop %v5490
        %v5492 = vmul.f32 %v5456, 1.442695
        %v5493 = vpow.pop %v5492
        %v5494 = vmul.f32 %v5457, 1.442695
        %v5495 = vpow.pop %v5494
        %v5496 = vmul.f32 %v5458, 1.442695
        %v5497 = vpow.pop %v5496
        %v5498 = vmul.f32 %v5459, 1.442695
        %v5499 = vpow.pop %v5498
        %v5500 = vmul.f32 %v5460, 1.442695
        %v5501 = vpow.pop %v5500
        %v5502 = vmul.f32 %v5461, 1.442695
        %v5503 = vpow.pop %v5502
        %v5504 = vmul.f32 %v5462, 1.442695
        %v5505 = vpow.pop %v5504
        %v5506 = vmul.f32 %v5463, 1.442695
        %v5507 = vpow.pop %v5506
        %v5508 = vmul.f32 %v5464, 1.442695
        %v5509 = vpow.pop %v5508
        %v5510 = vmul.f32 %v5465, 1.442695
        %v5511 = vpow.pop %v5510
        %v5512 = vmul.f32 %v5466, 1.442695
        %v5513 = vpow.pop %v5512
        %v5514 = vmul.f32 %v5467, 1.442695
        %v5515 = vpow.pop %v5514
        %v5516 = vmul.f32 %v5468, 1.442695
        %v5517 = vpow.pop %v5516
        %v5518 = vmul.f32 %v5469, 1.442695
        %v5519 = vpow.pop %v5518
        %v5520 = vmul.f32 %v5470, 1.442695
        %v5521 = vpow.pop %v5520
        %v5522 = vmul.f32 %v5471, 1.442695
        %v5523 = vpow.pop %v5522
        %v5524 = vmul.f32 %v5472, 1.442695
        %v5525 = vpow.pop %v5524
        %v5526 = vmul.f32 %v5473, 1.442695
        %v5527 = vpow.pop %v5526
        %v5528 = vmul.f32 %v5474, 1.442695
        %v5529 = vpow.pop %v5528
        %v5530 = vmul.f32 %v5475, 1.442695
        %v5531 = vpow.pop %v5530
        %v5532 = vmul.f32 %v5476, 1.442695
        %v5533 = vpow.pop %v5532
        %v5534 = vmul.f32 %v5477, 1.442695
        %v5535 = vpow.pop %v5534
        %v5536 = vmul.f32 %v5478, 1.442695
        %v5537 = vpow.pop %v5536
        %v5538 = vmul.f32 %v5479, 1.442695
        %v5539 = vpow.pop %v5538
        %v5540 = vmul.f32 %v5480, 1.442695
        %v5541 = vpow.pop %v5540
        %v5542 = vmul.f32 %v5481, 1.442695
        %v5543 = vpow.pop %v5542
        %v5544 = vmul.f32 %v5482, 1.442695
        %v5545 = vpow.pop %v5544
        %v5546 = vmul.f32 %v5483, 1.442695
        %v5547 = vpow.pop %v5546
        %v5548 = vadd.f32 %v5485, 1.0
        %v5549 = vadd.f32 %v5487, 1.0
        %v5550 = vadd.f32 %v5489, 1.0
        %v5551 = vadd.f32 %v5491, 1.0
        %v5552 = vadd.f32 %v5493, 1.0
        %v5553 = vadd.f32 %v5495, 1.0
        %v5554 = vadd.f32 %v5497, 1.0
        %v5555 = vadd.f32 %v5499, 1.0
        %v5556 = vadd.f32 %v5501, 1.0
        %v5557 = vadd.f32 %v5503, 1.0
        %v5558 = vadd.f32 %v5505, 1.0
        %v5559 = vadd.f32 %v5507, 1.0
        %v5560 = vadd.f32 %v5509, 1.0
        %v5561 = vadd.f32 %v5511, 1.0
        %v5562 = vadd.f32 %v5513, 1.0
        %v5563 = vadd.f32 %v5515, 1.0
        %v5564 = vadd.f32 %v5517, 1.0
        %v5565 = vadd.f32 %v5519, 1.0
        %v5566 = vadd.f32 %v5521, 1.0
        %v5567 = vadd.f32 %v5523, 1.0
        %v5568 = vadd.f32 %v5525, 1.0
        %v5569 = vadd.f32 %v5527, 1.0
        %v5570 = vadd.f32 %v5529, 1.0
        %v5571 = vadd.f32 %v5531, 1.0
        %v5572 = vadd.f32 %v5533, 1.0
        %v5573 = vadd.f32 %v5535, 1.0
        %v5574 = vadd.f32 %v5537, 1.0
        %v5575 = vadd.f32 %v5539, 1.0
        %v5576 = vadd.f32 %v5541, 1.0
        %v5577 = vadd.f32 %v5543, 1.0
        %v5578 = vadd.f32 %v5545, 1.0
        %v5579 = vadd.f32 %v5547, 1.0
        %v5580 = vrcp.pop %v5548
        %v5581 = vrcp.pop %v5549
        %v5582 = vrcp.pop %v5550
        %v5583 = vrcp.pop %v5551
        %v5584 = vrcp.pop %v5552
        %v5585 = vrcp.pop %v5553
        %v5586 = vrcp.pop %v5554
        %v5587 = vrcp.pop %v5555
        %v5588 = vrcp.pop %v5556
        %v5589 = vrcp.pop %v5557
        %v5590 = vrcp.pop %v5558
        %v5591 = vrcp.pop %v5559
        %v5592 = vrcp.pop %v5560
        %v5593 = vrcp.pop %v5561
        %v5594 = vrcp.pop %v5562
        %v5595 = vrcp.pop %v5563
        %v5596 = vrcp.pop %v5564
        %v5597 = vrcp.pop %v5565
        %v5598 = vrcp.pop %v5566
        %v5599 = vrcp.pop %v5567
        %v5600 = vrcp.pop %v5568
        %v5601 = vrcp.pop %v5569
        %v5602 = vrcp.pop %v5570
        %v5603 = vrcp.pop %v5571
        %v5604 = vrcp.pop %v5572
        %v5605 = vrcp.pop %v5573
        %v5606 = vrcp.pop %v5574
        %v5607 = vrcp.pop %v5575
        %v5608 = vrcp.pop %v5576
        %v5609 = vrcp.pop %v5577
        %v5610 = vrcp.pop %v5578
        %v5611 = vrcp.pop %v5579
        %v5612 = vpack.c.bf16 %v5588, %v5580
        %v5613 = vpack.c.bf16 %v5589, %v5581
        %v5614 = vpack.c.bf16 %v5590, %v5582
        %v5615 = vpack.c.bf16 %v5591, %v5583
        %v5616 = vpack.c.bf16 %v5592, %v5584
        %v5617 = vpack.c.bf16 %v5593, %v5585
        %v5618 = vpack.c.bf16 %v5594, %v5586
        %v5619 = vpack.c.bf16 %v5595, %v5587
        %v5620 = vpack.c.bf16 %v5604, %v5596
        %v5621 = vpack.c.bf16 %v5605, %v5597
        %v5622 = vpack.c.bf16 %v5606, %v5598
        %v5623 = vpack.c.bf16 %v5607, %v5599
        %v5624 = vpack.c.bf16 %v5608, %v5600
        %v5625 = vpack.c.bf16 %v5609, %v5601
        %v5626 = vpack.c.bf16 %v5610, %v5602
        %v5627 = vpack.c.bf16 %v5611, %v5603
        %v5644 = vunpack.c.l.b16 %v5612
        %v5645 = vunpack.c.l.b16 %v5613
        %v5646 = vunpack.c.l.b16 %v5614
        %v5647 = vunpack.c.l.b16 %v5615
        %v5648 = vunpack.c.l.b16 %v5616
        %v5649 = vunpack.c.l.b16 %v5617
        %v5650 = vunpack.c.l.b16 %v5618
        %v5651 = vunpack.c.l.b16 %v5619
        %v5652 = vunpack.c.h.b16 %v5612
        %v5653 = vunpack.c.h.b16 %v5613
        %v5654 = vunpack.c.h.b16 %v5614
        %v5655 = vunpack.c.h.b16 %v5615
        %v5656 = vunpack.c.h.b16 %v5616
        %v5657 = vunpack.c.h.b16 %v5617
        %v5658 = vunpack.c.h.b16 %v5618
        %v5659 = vunpack.c.h.b16 %v5619
        %v5660 = vunpack.c.l.b16 %v5620
        %v5661 = vunpack.c.l.b16 %v5621
        %v5662 = vunpack.c.l.b16 %v5622
        %v5663 = vunpack.c.l.b16 %v5623
        %v5664 = vunpack.c.l.b16 %v5624
        %v5665 = vunpack.c.l.b16 %v5625
        %v5666 = vunpack.c.l.b16 %v5626
        %v5667 = vunpack.c.l.b16 %v5627
        %v5668 = vunpack.c.h.b16 %v5620
        %v5669 = vunpack.c.h.b16 %v5621
        %v5670 = vunpack.c.h.b16 %v5622
        %v5671 = vunpack.c.h.b16 %v5623
        %v5672 = vunpack.c.h.b16 %v5624
        %v5673 = vunpack.c.h.b16 %v5625
        %v5674 = vunpack.c.h.b16 %v5626
        %v5675 = vunpack.c.h.b16 %v5627
        %v5676 = vpack.c.b16 %v5645, %v5644
        %v5677 = vpack.c.b16 %v5647, %v5646
        %v5678 = vpack.c.b16 %v5649, %v5648
        %v5679 = vpack.c.b16 %v5651, %v5650
        %v5680 = vpack.c.b16 %v5653, %v5652
        %v5681 = vpack.c.b16 %v5655, %v5654
        %v5682 = vpack.c.b16 %v5657, %v5656
        %v5683 = vpack.c.b16 %v5659, %v5658
        %v5684 = vpack.c.b16 %v5661, %v5660
        %v5685 = vpack.c.b16 %v5663, %v5662
        %v5686 = vpack.c.b16 %v5665, %v5664
        %v5687 = vpack.c.b16 %v5667, %v5666
        %v5688 = vpack.c.b16 %v5669, %v5668
        %v5689 = vpack.c.b16 %v5671, %v5670
        %v5690 = vpack.c.b16 %v5673, %v5672
        %v5691 = vpack.c.b16 %v5675, %v5674
        %5708 = vst [vmem:[%s497] sm:$0xff] %v5676
        %5709 = vst [vmem:[%s497 + $0x8] sm:$0xff] %v5677
        %5710 = vst [vmem:[%s497 + $0x10] sm:$0xff] %v5678
        %5711 = vst [vmem:[%s497 + $0x18] sm:$0xff] %v5679
        %5712 = vst [vmem:[%s497 + $0x20] sm:$0xff] %v5680
        %5713 = vst [vmem:[%s497 + $0x28] sm:$0xff] %v5681
        %5714 = vst [vmem:[%s497 + $0x30] sm:$0xff] %v5682
        %5715 = vst [vmem:[%s497 + $0x38] sm:$0xff] %v5683
        %5716 = vst [vmem:[%s497 + $0x40] sm:$0xff] %v5684
        %5717 = vst [vmem:[%s497 + $0x48] sm:$0xff] %v5685
        %5718 = vst [vmem:[%s497 + $0x50] sm:$0xff] %v5686
        %5719 = vst [vmem:[%s497 + $0x58] sm:$0xff] %v5687
        %5720 = vst [vmem:[%s497 + $0x60] sm:$0xff] %v5688
        %5721 = vst [vmem:[%s497 + $0x68] sm:$0xff] %v5689
        %5722 = vst [vmem:[%s497 + $0x70] sm:$0xff] %v5690
        %5723 = vst [vmem:[%s497 + $0x78] sm:$0xff] %v5691
        %s5724 = sand.u32 %s275, 1
        %s5725 = scalar_lea.sflag [#allocation4], %s5724
        %s5726 = sand.u32 %s275, 1
        %s5727 = smul.addr %s5726, 128
        %s5728 = scalar_lea.vmem [#allocation14], %s5727
        // Predicated region
        $region93: #{autoencoder_forward.1} parent=63 // pred_check
          %p5729 = pneg %p285
        $region94: #{autoencoder_forward.1} parent=63 // pred_check_branch
          %5731 = sbr.rel (%p5729) target = $region96
        $region95: #{autoencoder_forward.1} parent=63 // pred_region
          %s5732 = smul.u32 4, %s31
          %s5733 = ssub.s32 5, %s5732
          %p5734 = scmp.lt.s32.totalorder %s5733, 4
          %s5735 = scalar_select %p5734, %s5733, 4
          %s5736 = smul.u32 64, %s5735
          %s5737 = smul.u32 %s5736, 8
          %s5739 = ssub.s32 2048, %s5737
          %5740 = vsyncadd %s5725, %s5739
          %p5741 = scmp.ne.s32.totalorder 0, %s5737
          %s5742 = smul.addr %s5732, 8
          %s5743 = smul.addr %s5742, 64
          %s5744 = scalar_lea.hbm %s11, %s5743
          %s5745 = smul.u32 32, %s5735
          %s5746 = sshll.u32 %s5728, 4
          %s5747 = int_to_ptr.vmem [resolvable:$true] %s5746
          %s5748 = sshll.u32 %s5745, 4
          %5752 = dma.vmem_to_hbm [thread:$0]  (%p5741), %s5747, %s5748, %s5744, %s5725, 512, 512, 32
        $region96: #{autoencoder_forward.1} parent=63 // pred_fallthru
          _
      $region64: #{autoencoder_forward.1} parent=5 // pred_fallthru
        _
      %p5753 = scmp.le.s32.totalorder 2, %s26
      // Predicated region
      $region97: #{autoencoder_forward.1} parent=5 // pred_check
        %p5754 = pneg %p5753
      $region98: #{autoencoder_forward.1} parent=5 // pred_check_branch
        %5756 = sbr.rel (%p5754) target = $region100
      $region99: #{autoencoder_forward.1} parent=5 // pred_region
        %s5757 = ssub.s32 %s26, 2
        // Predicated region
        $region101: #{autoencoder_forward.1} parent=99 // pred_check
          %p5758 = pneg %p291
        $region102: #{autoencoder_forward.1} parent=99 // pred_check_branch
          %5760 = sbr.rel (%p5758) target = $region104
        $region103: #{autoencoder_forward.1} parent=99 // pred_region
          %s5761 = sand.u32 %s276, 1
          %s5762 = scalar_lea.sflag [#allocation4], %s5761
          %s5763 = sand.u32 %s276, 1
          %s5764 = smul.addr %s5763, 128
          %s5765 = scalar_lea.vmem [#allocation14], %s5764
          %5766 = dma.done %s5762, 2048
        $region104: #{autoencoder_forward.1} parent=99 // pred_fallthru
          _
      $region100: #{autoencoder_forward.1} parent=5 // pred_fallthru
        _
    $region6: #{autoencoder_forward.1} parent=1 // loop_footer
      %s30 = sadd.s32 1, %s26
    $region7: #{autoencoder_forward.1} parent=1 // loop_footer_branch
      %25 = sbr.rel target = $region3
    $region8: #{autoencoder_forward.1} parent=1 // loop_exit
      _
    %5767 = vsyncpa [#allocation3], 1
    %s5768 = scalar_lea.sflag [#allocation3], 1
    %5769 = vsyncpa %s5768, 1
    %5770 = vsyncpa [#allocation6], 1
    %5771 = vsyncpa [#allocation9], 1
    %5772 = vsyncpa [#allocation12], 1
    %5773 = vsyncpa [#allocation4], 1
    %s5774 = scalar_lea.sflag [#allocation4], 1
    %5775 = vsyncpa %s5774, 1

</llo_original>
